<compile_context>
chip_gen: v7x
topology: tpu7x:2x2x1
jax: 0.10.0
libtpu: 0.0.40
codegen_flags: <defaults>
</compile_context>

<pallas_src>
import functools

import jax
import jax.numpy as jnp
from jax import lax
from jax.experimental import pallas as pl
from jax.experimental.pallas import tpu as pltpu

_NEG = -1e30  # finite softmax mask value (avoids inf-inf NaNs)


# ----------------------------------------------------------------- sizing helpers
def _vmem_capacity_bytes():
    try:
        return int(pltpu.get_tpu_info().vmem_capacity_bytes)
    except Exception:
        return 64 << 20  # conservative (v7x-sized) fallback


def _pick_tile(hw, vmem_cap):
    """Largest spatial tile (multiple of 128) with bounded padding overhead."""
    t_max = 1024 if vmem_cap >= (100 << 20) else 512  # T=1024 only on 128 MiB parts
    hw128 = ((hw + 127) // 128) * 128
    for t in (1024, 512, 256, 128):
        if t > t_max:
            continue
        hwp = ((hw + t - 1) // t) * t
        if hwp - hw <= hwp // 8 or hwp == hw128:
            return t, hwp
    return 128, hw128


def _vmem_limit_bytes(C, T, vmem_cap):
    est = (5 * T * T * 4            # (T, T) score / exp intermediates in flight
           + 2 * 5 * C * T * 2      # double-buffered bf16 input blocks
           + 4 * C * T * 4          # output block + f32 accumulators
           + 6 * T * 128 * 4        # z block + lane-padded (T,1)/(1,T) stats
           + 8 * C * C * 2          # resident weights
           + (2 << 20))
    return int(min(max(32 << 20, 2 * est), int(0.72 * vmem_cap)))


# ----------------------------------------- kernel 1: fused f/g/h 1x1 convs + packing
def _proj_pack_kernel(x_ref, w_ref, b_ref, xgh_ref, f_ref, *, C):
    # x: (1, C, T) f32 ; w: (3C, C) bf16 rows [Wg; Wh; Wf] ; b: (3C, 1) f32
    xb = x_ref[0].astype(jnp.bfloat16)
    proj = (jnp.dot(w_ref[...], xb, preferred_element_type=jnp.float32)
            + b_ref[...]).astype(jnp.bfloat16)            # (3C, T)
    xgh_ref[0, 0] = xb                                    # x (channel-branch key/value)
    xgh_ref[0, 1] = proj[0:C]                             # g
    xgh_ref[0, 2] = proj[C:2 * C]                         # h
    f_ref[0] = proj[2 * C:3 * C]                          # f


# ------------------------ kernel 2: channel-branch per-row logsumexp of X^T X (Gram)
def _chan_stats_kernel(xp_ref, xq_ref, z_ref, m_sc, l_sc, *, T, HW, masked):
    q = pl.program_id(2)

    @pl.when(q == 0)
    def _():
        m_sc[...] = jnp.full(m_sc.shape, -jnp.inf, m_sc.dtype)
        l_sc[...] = jnp.zeros(l_sc.shape, l_sc.dtype)

    xp = xp_ref[0, 0]                                     # (C, Tp) bf16 — stats rows
    xq = xq_ref[0, 0]                                     # (C, Tq) bf16 — reduction cols
    s = lax.dot_general(xp, xq, (((0,), (0,)), ((), ())),
                        preferred_element_type=jnp.float32)        # (Tp, Tq)
    if masked:
        col = lax.broadcasted_iota(jnp.int32, (1, T), 1) + q * T
        s = jnp.where(col < HW, s, _NEG)

    m_new = jnp.maximum(m_sc[...], jnp.max(s, axis=-1, keepdims=True))   # (Tp, 1)
    alpha = jnp.exp(m_sc[...] - m_new)
    p = jnp.exp((s - m_new).astype(jnp.bfloat16))
    l_sc[...] = alpha * l_sc[...] + jnp.sum(p.astype(jnp.float32),
                                            axis=-1, keepdims=True)
    m_sc[...] = m_new

    @pl.when(q == pl.num_programs(2) - 1)
    def _():
        z_ref[0] = m_sc[...] + jnp.log(l_sc[...])         # per-row logsumexp (Tp, 1)


# --------------- kernel 3: position + channel attention + fused 2C->C output conv
def _dual_attn_kernel(xghj_ref, xi_ref, fi_ref, z_ref, w3_ref, bc_ref, y_ref,
                      mp_sc, lp_sc, accp_sc, accc_sc, *, T, HW, masked):
    j = pl.program_id(2)

    @pl.when(j == 0)
    def _():
        mp_sc[...] = jnp.full(mp_sc.shape, -jnp.inf, mp_sc.dtype)
        lp_sc[...] = jnp.zeros(lp_sc.shape, lp_sc.dtype)
        accp_sc[...] = jnp.zeros(accp_sc.shape, accp_sc.dtype)
        accc_sc[...] = jnp.zeros(accc_sc.shape, accc_sc.dtype)

    x_j = xghj_ref[0, 0]                                  # (C, Tj) bf16
    g_j = xghj_ref[0, 1]                                  # (C, Tj) bf16
    h_j = xghj_ref[0, 2]                                  # (C, Tj) bf16
    x_i = xi_ref[0, 0]                                    # (C, Ti) bf16 (residual)
    f_i = fi_ref[0]                                       # (C, Ti) bf16
    z_j = z_ref[0]                                        # (Tj, 1) f32 Gram-row logsumexp

    cc = (((0,), (0,)), ((), ()))                         # contract over channel dim

    # ---- position attention: online softmax over the key (sublane) axis --------
    s_p = lax.dot_general(g_j, f_i, cc, preferred_element_type=jnp.float32)  # (Tj, Ti)
    if masked:
        row = lax.broadcasted_iota(jnp.int32, (T, 1), 0) + j * T
        s_p = jnp.where(row < HW, s_p, _NEG)
    m_new = jnp.maximum(mp_sc[...], jnp.max(s_p, axis=0, keepdims=True))     # (1, Ti)
    alpha = jnp.exp(mp_sc[...] - m_new)
    p = jnp.exp((s_p - m_new).astype(jnp.bfloat16))                          # (Tj, Ti)
    lp_sc[...] = alpha * lp_sc[...] + jnp.sum(p.astype(jnp.float32),
                                              axis=0, keepdims=True)
    accp_sc[...] = alpha * accp_sc[...] + jnp.dot(h_j, p,
                                                  preferred_element_type=jnp.float32)
    mp_sc[...] = m_new

    # ---- channel attention: chan[c, i] = sum_j x[c, j] * exp(S[j, i] - z_j) -----
    # (S = X^T X is symmetric; padded key rows contribute 0 because x_j is zero there)
    s_c = lax.dot_general(x_j, x_i, cc, preferred_element_type=jnp.float32)  # (Tj, Ti)
    e = jnp.exp((s_c - z_j).astype(jnp.bfloat16))
    accc_sc[...] += jnp.dot(x_j, e, preferred_element_type=jnp.float32)      # (C, Ti)

    # ---- finalize: deferred normalization + fused 2C->C output conv ------------
    @pl.when(j == pl.num_programs(2) - 1)
    def _():
        pos = accp_sc[...] * pl.reciprocal(lp_sc[...], approx=False)         # (C, Ti)
        # y = Wc1 (pos_attn + x) + Wc2 (chan_attn + x) + bc ; residual folded via wsum
        y = (jnp.dot(w3_ref[0], pos.astype(jnp.bfloat16),
                     preferred_element_type=jnp.float32)
             + jnp.dot(w3_ref[1], accc_sc[...].astype(jnp.bfloat16),
                       preferred_element_type=jnp.float32)
             + jnp.dot(w3_ref[2], x_i, preferred_element_type=jnp.float32)
             + bc_ref[...])                                                  # (C, Ti)
        y_ref[0] = y.astype(y_ref.dtype)


# ------------------------------------------------------------------------ wrapper
def dual_attention(x_nchw, params):
    """Forward pass of DualAttentionModule. x_nchw: (B, C, H, W) float32."""
    B, C, H, W = x_nchw.shape
    HW = H * W
    f32 = jnp.float32
    bf16 = jnp.bfloat16

    vmem_cap = _vmem_capacity_bytes()
    T, HWp = _pick_tile(HW, vmem_cap)
    NT = HWp // T
    masked = HWp != HW
    vmem_limit = _vmem_limit_bytes(C, T, vmem_cap)

    x = x_nchw.reshape(B, C, HW).astype(f32)
    if masked:
        x = jnp.pad(x, ((0, 0), (0, 0), (0, HWp - HW)))

    # Fused projection weights; row order [g; h; f] matches the packing kernel.
    w_ghf = jnp.concatenate([params["wg"], params["wh"], params["wf"]],
                            axis=0).astype(bf16)
    b_ghf = jnp.concatenate([params["bg"], params["bh"], params["bf"]]
                            ).reshape(3 * C, 1).astype(f32)
    wc1 = params["wc"][:, :C]
    wc2 = params["wc"][:, C:]
    w3 = jnp.stack([wc1, wc2, wc1 + wc2], axis=0).astype(bf16)     # (3, C, C)
    bc = params["bc"].reshape(C, 1).astype(f32)

    cp2 = pltpu.CompilerParams(
        dimension_semantics=("parallel", "parallel"),
        vmem_limit_bytes=vmem_limit)
    cp3 = pltpu.CompilerParams(
        dimension_semantics=("parallel", "parallel", "arbitrary"),
        vmem_limit_bytes=vmem_limit)

    # ---- 1) fused f/g/h projections + bf16 packing: [x; g; h] slab and f -------
    xgh, fmap = pl.pallas_call(
        functools.partial(_proj_pack_kernel, C=C),
        out_shape=(jax.ShapeDtypeStruct((B, 3, C, HWp), bf16),
                   jax.ShapeDtypeStruct((B, C, HWp), bf16)),
        grid_spec=pltpu.PrefetchScalarGridSpec(
            num_scalar_prefetch=0,
            grid=(B, NT),
            in_specs=[
                pl.BlockSpec((1, C, T), lambda b, t: (b, 0, t)),
                pl.BlockSpec((3 * C, C), lambda b, t: (0, 0)),
                pl.BlockSpec((3 * C, 1), lambda b, t: (0, 0)),
            ],
            out_specs=[
                pl.BlockSpec((1, 3, C, T), lambda b, t: (b, 0, 0, t)),
                pl.BlockSpec((1, C, T), lambda b, t: (b, 0, t)),
            ],
        ),
        compiler_params=cp2,
    )(x, w_ghf, b_ghf)

    # ---- 2) channel-branch per-row logsumexp of the Gram matrix X^T X ----------
    z = pl.pallas_call(
        functools.partial(_chan_stats_kernel, T=T, HW=HW, masked=masked),
        out_shape=jax.ShapeDtypeStruct((B, HWp, 1), f32),
        grid_spec=pltpu.PrefetchScalarGridSpec(
            num_scalar_prefetch=0,
            grid=(B, NT, NT),
            in_specs=[
                pl.BlockSpec((1, 1, C, T), lambda b, p, q: (b, 0, 0, p)),  # stats rows
                pl.BlockSpec((1, 1, C, T), lambda b, p, q: (b, 0, 0, q)),  # reduction
            ],
            out_specs=pl.BlockSpec((1, T, 1), lambda b, p, q: (b, p, 0)),
            scratch_shapes=[pltpu.VMEM((T, 1), f32), pltpu.VMEM((T, 1), f32)],
        ),
        compiler_params=cp3,
    )(xgh, xgh)

    # ---- 3) main kernel: both attentions + fused 2C->C output conv -------------
    out = pl.pallas_call(
        functools.partial(_dual_attn_kernel, T=T, HW=HW, masked=masked),
        out_shape=jax.ShapeDtypeStruct((B, C, HWp), f32),
        grid_spec=pltpu.PrefetchScalarGridSpec(
            num_scalar_prefetch=0,
            grid=(B, NT, NT),
            in_specs=[
                pl.BlockSpec((1, 3, C, T), lambda b, i, j: (b, 0, 0, j)),  # [x;g;h]_j
                pl.BlockSpec((1, 1, C, T), lambda b, i, j: (b, 0, 0, i)),  # x_i
                pl.BlockSpec((1, C, T), lambda b, i, j: (b, 0, i)),        # f_i
                pl.BlockSpec((1, T, 1), lambda b, i, j: (b, j, 0)),        # z_j
                pl.BlockSpec((3, C, C), lambda b, i, j: (0, 0, 0)),        # wc1/wc2/wsum
                pl.BlockSpec((C, 1), lambda b, i, j: (0, 0)),              # bc
            ],
            out_specs=pl.BlockSpec((1, C, T), lambda b, i, j: (b, 0, i)),
            scratch_shapes=[
                pltpu.VMEM((1, T), f32),      # position online max
                pltpu.VMEM((1, T), f32),      # position online sum
                pltpu.VMEM((C, T), f32),      # position accumulator
                pltpu.VMEM((C, T), f32),      # channel  accumulator
            ],
        ),
        compiler_params=cp3,
    )(xgh, xgh, fmap, z, w3, bc)

    if masked:
        out = out[:, :, :HW]
    return out.reshape(B, C, H, W)


# ------------------------------------------------------------------ params / reference
def init_params(in_channels, key):
    """Deterministic synthetic parameters matching DualAttentionModule shapes."""
    C = in_channels
    ks = jax.random.split(key, 8)
    scale = 1.0 / (C ** 0.5)
    return {
        # PositionAttentionModule: three 1x1 convs C->C (weights squeezed to (C, C))
        "wf": jax.random.normal(ks[0], (C, C), jnp.float32) * scale,
        "bf": jax.random.normal(ks[1], (C,), jnp.float32) * 0.1,
        "wg": jax.random.normal(ks[2], (C, C), jnp.float32) * scale,
        "bg": jax.random.normal(ks[3], (C,), jnp.float32) * 0.1,
        "wh": jax.random.normal(ks[4], (C, C), jnp.float32) * scale,
        "bh": jax.random.normal(ks[5], (C,), jnp.float32) * 0.1,
        # DualAttentionModule.conv: 1x1 conv 2C->C
        "wc": jax.random.normal(ks[6], (C, 2 * C), jnp.float32) * (1.0 / (2 * C) ** 0.5),
        "bc": jax.random.normal(ks[7], (C,), jnp.float32) * 0.1,
        # ChannelAttentionModule.conv is defined in __init__ but unused in forward().
    }


def _reference(x_nchw, params):
    """Pure-JAX reference matching the PyTorch forward() exactly (f32 everywhere)."""
    B, C, H, W = x_nchw.shape
    x = x_nchw.reshape(B, C, H * W).astype(jnp.float32)

    def conv1x1(w, b, v):
        return jnp.einsum("oc,bcn->bon", w, v) + b[None, :, None]

    fx = conv1x1(params["wf"], params["bf"], x)
    gx = conv1x1(params["wg"], params["bg"], x)
    hx = conv1x1(params["wh"], params["bh"], x)
    att_p = jax.nn.softmax(jnp.einsum("bci,bcj->bij", fx, gx), axis=-1)
    pos = jnp.einsum("bcj,bij->bci", hx, att_p) + x
    att_c = jax.nn.softmax(jnp.einsum("bci,bcj->bij", x, x), axis=-1)
    chan = jnp.einsum("bci,bij->bcj", x, att_c) + x
    y = conv1x1(params["wc"], params["bc"], jnp.concatenate([pos, chan], axis=1))
    return y.reshape(B, C, H, W)


if __name__ == "__main__":
    B, C, H, W = 2, 4, 16, 16
    key = jax.random.PRNGKey(0)
    kx, kp = jax.random.split(key)
    x = jax.random.normal(kx, (B, C, H, W), jnp.float32)
    params = init_params(C, kp)

    y = jax.jit(dual_attention)(x, params)
    jax.block_until_ready(y)
    assert y.shape == (B, C, H, W) and y.dtype == jnp.float32

    # Loose tolerance because the kernels deliberately use bf16 MXU operands and
    # bf16 exponentials (with f32 accumulation / stats); structural errors would
    # be O(1), not O(1e-1).
    y_ref = _reference(x, params)
    max_err = float(jnp.max(jnp.abs(y - y_ref)))
    assert max_err < 0.3, f"max abs error vs reference: {max_err}"

    print("KERNEL_OK")
</pallas_src>

<mosaic_0001>
module attributes {stable_mosaic.version = 11 : i64} {
  func.func @_proj_pack_kernel(%arg0: i32, %arg1: i32, %arg2: memref<1x4x256xf32, #tpu.memory_space<vmem>>, %arg3: memref<12x4xbf16, #tpu.memory_space<vmem>>, %arg4: memref<12x1xf32, #tpu.memory_space<vmem>>, %arg5: memref<1x3x4x256xbf16, #tpu.memory_space<vmem>>, %arg6: memref<1x4x256xbf16, #tpu.memory_space<vmem>>) attributes {dimension_semantics = [#tpu.dimension_semantics<parallel>, #tpu.dimension_semantics<parallel>], iteration_bounds = array<i64: 2, 1>, scalar_prefetch = 0 : i64, scratch_operands = 0 : i64, tpu.core_type = #tpu.core_type<tc>, window_params = [{transform_indices = @transform_0, window_bounds = array<i64: 1, 4, 256>}, {pipeline_mode = #tpu.pipeline_mode<synchronous>, transform_indices = @transform_1, window_bounds = array<i64: 12, 4>}, {pipeline_mode = #tpu.pipeline_mode<synchronous>, transform_indices = @transform_2, window_bounds = array<i64: 12, 1>}, {transform_indices = @transform_3, window_bounds = array<i64: 1, 3, 4, 256>}, {transform_indices = @transform_4, window_bounds = array<i64: 1, 4, 256>}]} {
    %c0 = arith.constant 0 : index
    %c0_0 = arith.constant 0 : index
    %c0_1 = arith.constant 0 : index
    %0 = vector.load %arg2[%c0, %c0_0, %c0_1] : memref<1x4x256xf32, #tpu.memory_space<vmem>>, vector<1x4x256xf32>
    %1 = vector.shape_cast %0 : vector<1x4x256xf32> to vector<4x256xf32>
    %2 = arith.truncf %1 : vector<4x256xf32> to vector<4x256xbf16>
    %c0_2 = arith.constant 0 : index
    %c0_3 = arith.constant 0 : index
    %3 = vector.load %arg3[%c0_2, %c0_3] : memref<12x4xbf16, #tpu.memory_space<vmem>>, vector<12x4xbf16>
    %cst = arith.constant dense<0.000000e+00> : vector<12x256xf32>
    %4 = tpu.matmul %3, %2, %cst {dimension_numbers = #tpu.dot_dimension_numbers<[1], [0], [0], [1], [0, 0, 1, 1], [], []>} : vector<12x4xbf16>, vector<4x256xbf16>, vector<12x256xf32> -> vector<12x256xf32>
    %c0_4 = arith.constant 0 : index
    %c0_5 = arith.constant 0 : index
    %5 = vector.load %arg4[%c0_4, %c0_5] : memref<12x1xf32, #tpu.memory_space<vmem>>, vector<12x1xf32>
    %6 = vector.broadcast %5 : vector<12x1xf32> to vector<12x256xf32>
    %7 = arith.addf %4, %6 : vector<12x256xf32>
    %8 = arith.truncf %7 : vector<12x256xf32> to vector<12x256xbf16>
    %c0_6 = arith.constant 0 : index
    %c0_7 = arith.constant 0 : index
    %c0_8 = arith.constant 0 : index
    %c0_9 = arith.constant 0 : index
    %9 = vector.load %arg5[%c0_6, %c0_7, %c0_8, %c0_9] : memref<1x3x4x256xbf16, #tpu.memory_space<vmem>>, vector<1x1x4x256xbf16>
    %10 = vector.shape_cast %9 : vector<1x1x4x256xbf16> to vector<4x256xbf16>
    %11 = vector.shape_cast %2 : vector<4x256xbf16> to vector<1x1x4x256xbf16>
    tpu.vector_store %arg5[%c0_6, %c0_7, %c0_8, %c0_9], %11 {strides = array<i32>} : memref<1x3x4x256xbf16, #tpu.memory_space<vmem>>, vector<1x1x4x256xbf16>,
    %12 = vector.extract_strided_slice %8 {offsets = [0, 0], sizes = [4, 256], strides = [1, 1]} : vector<12x256xbf16> to vector<4x256xbf16>
    %c0_10 = arith.constant 0 : index
    %c1 = arith.constant 1 : index
    %c0_11 = arith.constant 0 : index
    %c0_12 = arith.constant 0 : index
    %13 = vector.load %arg5[%c0_10, %c1, %c0_11, %c0_12] : memref<1x3x4x256xbf16, #tpu.memory_space<vmem>>, vector<1x1x4x256xbf16>
    %14 = vector.shape_cast %13 : vector<1x1x4x256xbf16> to vector<4x256xbf16>
    %15 = vector.shape_cast %12 : vector<4x256xbf16> to vector<1x1x4x256xbf16>
    tpu.vector_store %arg5[%c0_10, %c1, %c0_11, %c0_12], %15 {strides = array<i32>} : memref<1x3x4x256xbf16, #tpu.memory_space<vmem>>, vector<1x1x4x256xbf16>,
    %16 = vector.extract_strided_slice %8 {offsets = [4, 0], sizes = [4, 256], strides = [1, 1]} : vector<12x256xbf16> to vector<4x256xbf16>
    %c0_13 = arith.constant 0 : index
    %c2 = arith.constant 2 : index
    %c0_14 = arith.constant 0 : index
    %c0_15 = arith.constant 0 : index
    %17 = vector.load %arg5[%c0_13, %c2, %c0_14, %c0_15] : memref<1x3x4x256xbf16, #tpu.memory_space<vmem>>, vector<1x1x4x256xbf16>
    %18 = vector.shape_cast %17 : vector<1x1x4x256xbf16> to vector<4x256xbf16>
    %19 = vector.shape_cast %16 : vector<4x256xbf16> to vector<1x1x4x256xbf16>
    tpu.vector_store %arg5[%c0_13, %c2, %c0_14, %c0_15], %19 {strides = array<i32>} : memref<1x3x4x256xbf16, #tpu.memory_space<vmem>>, vector<1x1x4x256xbf16>,
    %20 = vector.extract_strided_slice %8 {offsets = [8, 0], sizes = [4, 256], strides = [1, 1]} : vector<12x256xbf16> to vector<4x256xbf16>
    %c0_16 = arith.constant 0 : index
    %c0_17 = arith.constant 0 : index
    %c0_18 = arith.constant 0 : index
    %21 = vector.load %arg6[%c0_16, %c0_17, %c0_18] : memref<1x4x256xbf16, #tpu.memory_space<vmem>>, vector<1x4x256xbf16>
    %22 = vector.shape_cast %21 : vector<1x4x256xbf16> to vector<4x256xbf16>
    %23 = vector.shape_cast %20 : vector<4x256xbf16> to vector<1x4x256xbf16>
    tpu.vector_store %arg6[%c0_16, %c0_17, %c0_18], %23 {strides = array<i32>} : memref<1x4x256xbf16, #tpu.memory_space<vmem>>, vector<1x4x256xbf16>,
    return
  }
  func.func @transform_0(%arg0: i32, %arg1: i32) -> (i32, i32, i32) {
    %c0_i32 = arith.constant 0 : i32
    %c0_i32_0 = arith.constant 0 : i32
    return %arg0, %c0_i32, %arg1 : i32, i32, i32
  }
  func.func @transform_1(%arg0: i32, %arg1: i32) -> (i32, i32) {
    %c0_i32 = arith.constant 0 : i32
    %c0_i32_0 = arith.constant 0 : i32
    %c0_i32_1 = arith.constant 0 : i32
    return %c0_i32, %c0_i32_0 : i32, i32
  }
  func.func @transform_2(%arg0: i32, %arg1: i32) -> (i32, i32) {
    %c0_i32 = arith.constant 0 : i32
    %c0_i32_0 = arith.constant 0 : i32
    %c0_i32_1 = arith.constant 0 : i32
    return %c0_i32, %c0_i32_0 : i32, i32
  }
  func.func @transform_3(%arg0: i32, %arg1: i32) -> (i32, i32, i32, i32) {
    %c0_i32 = arith.constant 0 : i32
    %c0_i32_0 = arith.constant 0 : i32
    %c0_i32_1 = arith.constant 0 : i32
    return %arg0, %c0_i32, %c0_i32_0, %arg1 : i32, i32, i32, i32
  }
  func.func @transform_4(%arg0: i32, %arg1: i32) -> (i32, i32, i32) {
    %c0_i32 = arith.constant 0 : i32
    %c0_i32_0 = arith.constant 0 : i32
    return %arg0, %c0_i32, %arg1 : i32, i32, i32
  }
}

module attributes {stable_mosaic.version = 11 : i64} {
  func.func @_dual_attn_kernel(%arg0: i32, %arg1: i32, %arg2: i32, %arg3: memref<1x3x4x256xbf16, #tpu.memory_space<vmem>>, %arg4: memref<1x1x4x256xbf16, #tpu.memory_space<vmem>>, %arg5: memref<1x4x256xbf16, #tpu.memory_space<vmem>>, %arg6: memref<1x256x1xf32, #tpu.memory_space<vmem>>, %arg7: memref<3x4x4xbf16, #tpu.memory_space<vmem>>, %arg8: memref<4x1xf32, #tpu.memory_space<vmem>>, %arg9: memref<1x4x256xf32, #tpu.memory_space<vmem>>, %arg10: memref<1x256xf32, #tpu.memory_space<vmem>>, %arg11: memref<1x256xf32, #tpu.memory_space<vmem>>, %arg12: memref<4x256xf32, #tpu.memory_space<vmem>>, %arg13: memref<4x256xf32, #tpu.memory_space<vmem>>) attributes {dimension_semantics = [#tpu.dimension_semantics<parallel>, #tpu.dimension_semantics<parallel>, #tpu.dimension_semantics<arbitrary>], iteration_bounds = array<i64: 2, 1, 1>, scalar_prefetch = 0 : i64, scratch_operands = 4 : i64, tpu.core_type = #tpu.core_type<tc>, window_params = [{transform_indices = @transform_0, window_bounds = array<i64: 1, 3, 4, 256>}, {transform_indices = @transform_1, window_bounds = array<i64: 1, 1, 4, 256>}, {transform_indices = @transform_2, window_bounds = array<i64: 1, 4, 256>}, {transform_indices = @transform_3, window_bounds = array<i64: 1, 256, 1>}, {pipeline_mode = #tpu.pipeline_mode<synchronous>, transform_indices = @transform_4, window_bounds = array<i64: 3, 4, 4>}, {pipeline_mode = #tpu.pipeline_mode<synchronous>, transform_indices = @transform_5, window_bounds = array<i64: 4, 1>}, {transform_indices = @transform_6, window_bounds = array<i64: 1, 4, 256>}]} {
    %c0_i32 = arith.constant 0 : i32
    %0 = arith.cmpi eq, %arg2, %c0_i32 : i32
    %1 = arith.extui %0 : i1 to i32
    %c0_i32_0 = arith.constant 0 : i32
    %2 = arith.cmpi ne, %1, %c0_i32_0 : i32
    scf.if %2 {
      %cst_45 = arith.constant 0xFF800000 : f32
      %53 = vector.broadcast %cst_45 : f32 to vector<1x256xf32>
      %c0_46 = arith.constant 0 : index
      %c0_47 = arith.constant 0 : index
      %54 = vector.load %arg10[%c0_46, %c0_47] : memref<1x256xf32, #tpu.memory_space<vmem>>, vector<1x256xf32>
      tpu.vector_store %arg10[%c0_46, %c0_47], %53 {strides = array<i32>} : memref<1x256xf32, #tpu.memory_space<vmem>>, vector<1x256xf32>,
      %cst_48 = arith.constant 0.000000e+00 : f32
      %55 = vector.broadcast %cst_48 : f32 to vector<1x256xf32>
      %c0_49 = arith.constant 0 : index
      %c0_50 = arith.constant 0 : index
      %56 = vector.load %arg11[%c0_49, %c0_50] : memref<1x256xf32, #tpu.memory_space<vmem>>, vector<1x256xf32>
      tpu.vector_store %arg11[%c0_49, %c0_50], %55 {strides = array<i32>} : memref<1x256xf32, #tpu.memory_space<vmem>>, vector<1x256xf32>,
      %cst_51 = arith.constant 0.000000e+00 : f32
      %57 = vector.broadcast %cst_51 : f32 to vector<4x256xf32>
      %c0_52 = arith.constant 0 : index
      %c0_53 = arith.constant 0 : index
      %58 = vector.load %arg12[%c0_52, %c0_53] : memref<4x256xf32, #tpu.memory_space<vmem>>, vector<4x256xf32>
      tpu.vector_store %arg12[%c0_52, %c0_53], %57 {strides = array<i32>} : memref<4x256xf32, #tpu.memory_space<vmem>>, vector<4x256xf32>,
      %cst_54 = arith.constant 0.000000e+00 : f32
      %59 = vector.broadcast %cst_54 : f32 to vector<4x256xf32>
      %c0_55 = arith.constant 0 : index
      %c0_56 = arith.constant 0 : index
      %60 = vector.load %arg13[%c0_55, %c0_56] : memref<4x256xf32, #tpu.memory_space<vmem>>, vector<4x256xf32>
      tpu.vector_store %arg13[%c0_55, %c0_56], %59 {strides = array<i32>} : memref<4x256xf32, #tpu.memory_space<vmem>>, vector<4x256xf32>,
    } else {
    }
    %c0 = arith.constant 0 : index
    %c0_1 = arith.constant 0 : index
    %c0_2 = arith.constant 0 : index
    %c0_3 = arith.constant 0 : index
    %3 = vector.load %arg3[%c0, %c0_1, %c0_2, %c0_3] : memref<1x3x4x256xbf16, #tpu.memory_space<vmem>>, vector<1x1x4x256xbf16>
    %4 = vector.shape_cast %3 : vector<1x1x4x256xbf16> to vector<4x256xbf16>
    %c0_4 = arith.constant 0 : index
    %c1 = arith.constant 1 : index
    %c0_5 = arith.constant 0 : index
    %c0_6 = arith.constant 0 : index
    %5 = vector.load %arg3[%c0_4, %c1, %c0_5, %c0_6] : memref<1x3x4x256xbf16, #tpu.memory_space<vmem>>, vector<1x1x4x256xbf16>
    %6 = vector.shape_cast %5 : vector<1x1x4x256xbf16> to vector<4x256xbf16>
    %c0_7 = arith.constant 0 : index
    %c2 = arith.constant 2 : index
    %c0_8 = arith.constant 0 : index
    %c0_9 = arith.constant 0 : index
    %7 = vector.load %arg3[%c0_7, %c2, %c0_8, %c0_9] : memref<1x3x4x256xbf16, #tpu.memory_space<vmem>>, vector<1x1x4x256xbf16>
    %8 = vector.shape_cast %7 : vector<1x1x4x256xbf16> to vector<4x256xbf16>
    %c0_10 = arith.constant 0 : index
    %c0_11 = arith.constant 0 : index
    %c0_12 = arith.constant 0 : index
    %c0_13 = arith.constant 0 : index
    %9 = vector.load %arg4[%c0_10, %c0_11, %c0_12, %c0_13] : memref<1x1x4x256xbf16, #tpu.memory_space<vmem>>, vector<1x1x4x256xbf16>
    %10 = vector.shape_cast %9 : vector<1x1x4x256xbf16> to vector<4x256xbf16>
    %c0_14 = arith.constant 0 : index
    %c0_15 = arith.constant 0 : index
    %c0_16 = arith.constant 0 : index
    %11 = vector.load %arg5[%c0_14, %c0_15, %c0_16] : memref<1x4x256xbf16, #tpu.memory_space<vmem>>, vector<1x4x256xbf16>
    %12 = vector.shape_cast %11 : vector<1x4x256xbf16> to vector<4x256xbf16>
    %c0_17 = arith.constant 0 : index
    %c0_18 = arith.constant 0 : index
    %c0_19 = arith.constant 0 : index
    %13 = vector.load %arg6[%c0_17, %c0_18, %c0_19] : memref<1x256x1xf32, #tpu.memory_space<vmem>>, vector<1x256x1xf32>
    %14 = vector.shape_cast %13 : vector<1x256x1xf32> to vector<256x1xf32>
    %cst = arith.constant dense<0.000000e+00> : vector<256x256xf32>
    %15 = tpu.matmul %6, %12, %cst {dimension_numbers = #tpu.dot_dimension_numbers<[0], [0], [1], [1], [0, 1, 1, 1], [], []>} : vector<4x256xbf16>, vector<4x256xbf16>, vector<256x256xf32> -> vector<256x256xf32>
    %c0_20 = arith.constant 0 : index
    %c0_21 = arith.constant 0 : index
    %16 = vector.load %arg10[%c0_20, %c0_21] : memref<1x256xf32, #tpu.memory_space<vmem>>, vector<1x256xf32>
    %cst_22 = arith.constant dense<0xFF800000> : vector<256xf32>
    %17 = vector.multi_reduction <maximumf>, %15, %cst_22 [0] : vector<256x256xf32> to vector<256xf32>
    %18 = vector.shape_cast %17 : vector<256xf32> to vector<1x256xf32>
    %19 = arith.maximumf %16, %18 : vector<1x256xf32>
    %c0_23 = arith.constant 0 : index
    %c0_24 = arith.constant 0 : index
    %20 = vector.load %arg10[%c0_23, %c0_24] : memref<1x256xf32, #tpu.memory_space<vmem>>, vector<1x256xf32>
    %21 = arith.subf %20, %19 : vector<1x256xf32>
    %22 = math.exp %21 : vector<1x256xf32>
    %23 = vector.broadcast %19 : vector<1x256xf32> to vector<256x256xf32>
    %24 = arith.subf %15, %23 : vector<256x256xf32>
    %25 = arith.truncf %24 : vector<256x256xf32> to vector<256x256xbf16>
    %26 = math.exp %25 : vector<256x256xbf16>
    %c0_25 = arith.constant 0 : index
    %c0_26 = arith.constant 0 : index
    %27 = vector.load %arg11[%c0_25, %c0_26] : memref<1x256xf32, #tpu.memory_space<vmem>>, vector<1x256xf32>
    %28 = arith.mulf %22, %27 : vector<1x256xf32>
    %29 = arith.extf %26 : vector<256x256xbf16> to vector<256x256xf32>
    %cst_27 = arith.constant dense<0.000000e+00> : vector<256xf32>
    %30 = vector.multi_reduction <add>, %29, %cst_27 [0] : vector<256x256xf32> to vector<256xf32>
    %31 = vector.shape_cast %30 : vector<256xf32> to vector<1x256xf32>
    %32 = arith.addf %28, %31 : vector<1x256xf32>
    %c0_28 = arith.constant 0 : index
    %c0_29 = arith.constant 0 : index
    %33 = vector.load %arg11[%c0_28, %c0_29] : memref<1x256xf32, #tpu.memory_space<vmem>>, vector<1x256xf32>
    tpu.vector_store %arg11[%c0_28, %c0_29], %32 {strides = array<i32>} : memref<1x256xf32, #tpu.memory_space<vmem>>, vector<1x256xf32>,
    %c0_30 = arith.constant 0 : index
    %c0_31 = arith.constant 0 : index
    %34 = vector.load %arg12[%c0_30, %c0_31] : memref<4x256xf32, #tpu.memory_space<vmem>>, vector<4x256xf32>
    %35 = vector.broadcast %22 : vector<1x256xf32> to vector<4x256xf32>
    %36 = arith.mulf %35, %34 : vector<4x256xf32>
    %cst_32 = arith.constant dense<0.000000e+00> : vector<4x256xf32>
    %37 = tpu.matmul %8, %26, %cst_32 {dimension_numbers = #tpu.dot_dimension_numbers<[1], [0], [0], [1], [0, 0, 1, 1], [], []>} : vector<4x256xbf16>, vector<256x256xbf16>, vector<4x256xf32> -> vector<4x256xf32>
    %38 = arith.addf %36, %37 : vector<4x256xf32>
    %c0_33 = arith.constant 0 : index
    %c0_34 = arith.constant 0 : index
    %39 = vector.load %arg12[%c0_33, %c0_34] : memref<4x256xf32, #tpu.memory_space<vmem>>, vector<4x256xf32>
    tpu.vector_store %arg12[%c0_33, %c0_34], %38 {strides = array<i32>} : memref<4x256xf32, #tpu.memory_space<vmem>>, vector<4x256xf32>,
    %c0_35 = arith.constant 0 : index
    %c0_36 = arith.constant 0 : index
    %40 = vector.load %arg10[%c0_35, %c0_36] : memref<1x256xf32, #tpu.memory_space<vmem>>, vector<1x256xf32>
    tpu.vector_store %arg10[%c0_35, %c0_36], %19 {strides = array<i32>} : memref<1x256xf32, #tpu.memory_space<vmem>>, vector<1x256xf32>,
    %cst_37 = arith.constant dense<0.000000e+00> : vector<256x256xf32>
    %41 = tpu.matmul %4, %10, %cst_37 {dimension_numbers = #tpu.dot_dimension_numbers<[0], [0], [1], [1], [0, 1, 1, 1], [], []>} : vector<4x256xbf16>, vector<4x256xbf16>, vector<256x256xf32> -> vector<256x256xf32>
    %42 = vector.broadcast %14 : vector<256x1xf32> to vector<256x256xf32>
    %43 = arith.subf %41, %42 : vector<256x256xf32>
    %44 = arith.truncf %43 : vector<256x256xf32> to vector<256x256xbf16>
    %45 = math.exp %44 : vector<256x256xbf16>
    %c0_38 = arith.constant 0 : index
    %c0_39 = arith.constant 0 : index
    %46 = vector.load %arg13[%c0_38, %c0_39] : memref<4x256xf32, #tpu.memory_space<vmem>>, vector<4x256xf32>
    %cst_40 = arith.constant dense<0.000000e+00> : vector<4x256xf32>
    %47 = tpu.matmul %4, %45, %cst_40 {dimension_numbers = #tpu.dot_dimension_numbers<[1], [0], [0], [1], [0, 0, 1, 1], [], []>} : vector<4x256xbf16>, vector<256x256xbf16>, vector<4x256xf32> -> vector<4x256xf32>
    %48 = arith.addf %46, %47 : vector<4x256xf32>
    %c0_41 = arith.constant 0 : index
    %c0_42 = arith.constant 0 : index
    %49 = vector.load %arg13[%c0_41, %c0_42] : memref<4x256xf32, #tpu.memory_space<vmem>>, vector<4x256xf32>
    tpu.vector_store %arg13[%c0_41, %c0_42], %48 {strides = array<i32>} : memref<4x256xf32, #tpu.memory_space<vmem>>, vector<4x256xf32>,
    %c0_i32_43 = arith.constant 0 : i32
    %50 = arith.cmpi eq, %arg2, %c0_i32_43 : i32
    %51 = arith.extui %50 : i1 to i32
    %c0_i32_44 = arith.constant 0 : i32
    %52 = arith.cmpi ne, %51, %c0_i32_44 : i32
    scf.if %52 {
      %c0_45 = arith.constant 0 : index
      %c0_46 = arith.constant 0 : index
      %53 = vector.load %arg12[%c0_45, %c0_46] : memref<4x256xf32, #tpu.memory_space<vmem>>, vector<4x256xf32>
      %c0_47 = arith.constant 0 : index
      %c0_48 = arith.constant 0 : index
      %54 = vector.load %arg11[%c0_47, %c0_48] : memref<1x256xf32, #tpu.memory_space<vmem>>, vector<1x256xf32>
      %55 = tpu.reciprocal %54 : vector<1x256xf32> -> vector<1x256xf32>
      %56 = vector.broadcast %55 : vector<1x256xf32> to vector<4x256xf32>
      %57 = arith.mulf %53, %56 : vector<4x256xf32>
      %c0_49 = arith.constant 0 : index
      %c0_50 = arith.constant 0 : index
      %c0_51 = arith.constant 0 : index
      %58 = vector.load %arg7[%c0_49, %c0_50, %c0_51] : memref<3x4x4xbf16, #tpu.memory_space<vmem>>, vector<1x4x4xbf16>
      %59 = vector.shape_cast %58 : vector<1x4x4xbf16> to vector<4x4xbf16>
      %60 = arith.truncf %57 : vector<4x256xf32> to vector<4x256xbf16>
      %cst_52 = arith.constant dense<0.000000e+00> : vector<4x256xf32>
      %61 = tpu.matmul %59, %60, %cst_52 {dimension_numbers = #tpu.dot_dimension_numbers<[1], [0], [0], [1], [0, 0, 1, 1], [], []>} : vector<4x4xbf16>, vector<4x256xbf16>, vector<4x256xf32> -> vector<4x256xf32>
      %c1_53 = arith.constant 1 : index
      %c0_54 = arith.constant 0 : index
      %c0_55 = arith.constant 0 : index
      %62 = vector.load %arg7[%c1_53, %c0_54, %c0_55] : memref<3x4x4xbf16, #tpu.memory_space<vmem>>, vector<1x4x4xbf16>
      %63 = vector.shape_cast %62 : vector<1x4x4xbf16> to vector<4x4xbf16>
      %c0_56 = arith.constant 0 : index
      %c0_57 = arith.constant 0 : index
      %64 = vector.load %arg13[%c0_56, %c0_57] : memref<4x256xf32, #tpu.memory_space<vmem>>, vector<4x256xf32>
      %65 = arith.truncf %64 : vector<4x256xf32> to vector<4x256xbf16>
      %cst_58 = arith.constant dense<0.000000e+00> : vector<4x256xf32>
      %66 = tpu.matmul %63, %65, %cst_58 {dimension_numbers = #tpu.dot_dimension_numbers<[1], [0], [0], [1], [0, 0, 1, 1], [], []>} : vector<4x4xbf16>, vector<4x256xbf16>, vector<4x256xf32> -> vector<4x256xf32>
      %67 = arith.addf %61, %66 : vector<4x256xf32>
      %c2_59 = arith.constant 2 : index
      %c0_60 = arith.constant 0 : index
      %c0_61 = arith.constant 0 : index
      %68 = vector.load %arg7[%c2_59, %c0_60, %c0_61] : memref<3x4x4xbf16, #tpu.memory_space<vmem>>, vector<1x4x4xbf16>
      %69 = vector.shape_cast %68 : vector<1x4x4xbf16> to vector<4x4xbf16>
      %cst_62 = arith.constant dense<0.000000e+00> : vector<4x256xf32>
      %70 = tpu.matmul %69, %10, %cst_62 {dimension_numbers = #tpu.dot_dimension_numbers<[1], [0], [0], [1], [0, 0, 1, 1], [], []>} : vector<4x4xbf16>, vector<4x256xbf16>, vector<4x256xf32> -> vector<4x256xf32>
      %71 = arith.addf %67, %70 : vector<4x256xf32>
      %c0_63 = arith.constant 0 : index
      %c0_64 = arith.constant 0 : index
      %72 = vector.load %arg8[%c0_63, %c0_64] : memref<4x1xf32, #tpu.memory_space<vmem>>, vector<4x1xf32>
      %73 = vector.broadcast %72 : vector<4x1xf32> to vector<4x256xf32>
      %74 = arith.addf %71, %73 : vector<4x256xf32>
      %c0_65 = arith.constant 0 : index
      %c0_66 = arith.constant 0 : index
      %c0_67 = arith.constant 0 : index
      %75 = vector.load %arg9[%c0_65, %c0_66, %c0_67] : memref<1x4x256xf32, #tpu.memory_space<vmem>>, vector<1x4x256xf32>
      %76 = vector.shape_cast %75 : vector<1x4x256xf32> to vector<4x256xf32>
      %77 = vector.shape_cast %74 : vector<4x256xf32> to vector<1x4x256xf32>
      tpu.vector_store %arg9[%c0_65, %c0_66, %c0_67], %77 {strides = array<i32>} : memref<1x4x256xf32, #tpu.memory_space<vmem>>, vector<1x4x256xf32>,
    } else {
    }
    return
  }
  func.func @transform_0(%arg0: i32, %arg1: i32, %arg2: i32) -> (i32, i32, i32, i32) {
    %c0_i32 = arith.constant 0 : i32
    %c0_i32_0 = arith.constant 0 : i32
    %c0_i32_1 = arith.constant 0 : i32
    return %arg0, %c0_i32, %c0_i32_0, %arg2 : i32, i32, i32, i32
  }
  func.func @transform_1(%arg0: i32, %arg1: i32, %arg2: i32) -> (i32, i32, i32, i32) {
    %c0_i32 = arith.constant 0 : i32
    %c0_i32_0 = arith.constant 0 : i32
    %c0_i32_1 = arith.constant 0 : i32
    return %arg0, %c0_i32, %c0_i32_0, %arg1 : i32, i32, i32, i32
  }
  func.func @transform_2(%arg0: i32, %arg1: i32, %arg2: i32) -> (i32, i32, i32) {
    %c0_i32 = arith.constant 0 : i32
    %c0_i32_0 = arith.constant 0 : i32
    return %arg0, %c0_i32, %arg1 : i32, i32, i32
  }
  func.func @transform_3(%arg0: i32, %arg1: i32, %arg2: i32) -> (i32, i32, i32) {
    %c0_i32 = arith.constant 0 : i32
    %c0_i32_0 = arith.constant 0 : i32
    return %arg0, %arg2, %c0_i32 : i32, i32, i32
  }
  func.func @transform_4(%arg0: i32, %arg1: i32, %arg2: i32) -> (i32, i32, i32) {
    %c0_i32 = arith.constant 0 : i32
    %c0_i32_0 = arith.constant 0 : i32
    %c0_i32_1 = arith.constant 0 : i32
    %c0_i32_2 = arith.constant 0 : i32
    return %c0_i32, %c0_i32_0, %c0_i32_1 : i32, i32, i32
  }
  func.func @transform_5(%arg0: i32, %arg1: i32, %arg2: i32) -> (i32, i32) {
    %c0_i32 = arith.constant 0 : i32
    %c0_i32_0 = arith.constant 0 : i32
    %c0_i32_1 = arith.constant 0 : i32
    return %c0_i32, %c0_i32_0 : i32, i32
  }
  func.func @transform_6(%arg0: i32, %arg1: i32, %arg2: i32) -> (i32, i32, i32) {
    %c0_i32 = arith.constant 0 : i32
    %c0_i32_0 = arith.constant 0 : i32
    return %arg0, %c0_i32, %arg1 : i32, i32, i32
  }
}

module attributes {stable_mosaic.version = 11 : i64} {
  func.func @_chan_stats_kernel(%arg0: i32, %arg1: i32, %arg2: i32, %arg3: memref<1x1x4x256xbf16, #tpu.memory_space<vmem>>, %arg4: memref<1x1x4x256xbf16, #tpu.memory_space<vmem>>, %arg5: memref<1x256x1xf32, #tpu.memory_space<vmem>>, %arg6: memref<256x1xf32, #tpu.memory_space<vmem>>, %arg7: memref<256x1xf32, #tpu.memory_space<vmem>>) attributes {dimension_semantics = [#tpu.dimension_semantics<parallel>, #tpu.dimension_semantics<parallel>, #tpu.dimension_semantics<arbitrary>], iteration_bounds = array<i64: 2, 1, 1>, scalar_prefetch = 0 : i64, scratch_operands = 2 : i64, tpu.core_type = #tpu.core_type<tc>, window_params = [{transform_indices = @transform_0, window_bounds = array<i64: 1, 1, 4, 256>}, {transform_indices = @transform_1, window_bounds = array<i64: 1, 1, 4, 256>}, {transform_indices = @transform_2, window_bounds = array<i64: 1, 256, 1>}]} {
    %c0_i32 = arith.constant 0 : i32
    %0 = arith.cmpi eq, %arg2, %c0_i32 : i32
    %1 = arith.extui %0 : i1 to i32
    %c0_i32_0 = arith.constant 0 : i32
    %2 = arith.cmpi ne, %1, %c0_i32_0 : i32
    scf.if %2 {
      %cst_22 = arith.constant 0xFF800000 : f32
      %30 = vector.broadcast %cst_22 : f32 to vector<256x1xf32>
      %c0_23 = arith.constant 0 : index
      %c0_24 = arith.constant 0 : index
      %31 = vector.load %arg6[%c0_23, %c0_24] : memref<256x1xf32, #tpu.memory_space<vmem>>, vector<256x1xf32>
      tpu.vector_store %arg6[%c0_23, %c0_24], %30 {strides = array<i32>} : memref<256x1xf32, #tpu.memory_space<vmem>>, vector<256x1xf32>,
      %cst_25 = arith.constant 0.000000e+00 : f32
      %32 = vector.broadcast %cst_25 : f32 to vector<256x1xf32>
      %c0_26 = arith.constant 0 : index
      %c0_27 = arith.constant 0 : index
      %33 = vector.load %arg7[%c0_26, %c0_27] : memref<256x1xf32, #tpu.memory_space<vmem>>, vector<256x1xf32>
      tpu.vector_store %arg7[%c0_26, %c0_27], %32 {strides = array<i32>} : memref<256x1xf32, #tpu.memory_space<vmem>>, vector<256x1xf32>,
    } else {
    }
    %c0 = arith.constant 0 : index
    %c0_1 = arith.constant 0 : index
    %c0_2 = arith.constant 0 : index
    %c0_3 = arith.constant 0 : index
    %3 = vector.load %arg3[%c0, %c0_1, %c0_2, %c0_3] : memref<1x1x4x256xbf16, #tpu.memory_space<vmem>>, vector<1x1x4x256xbf16>
    %4 = vector.shape_cast %3 : vector<1x1x4x256xbf16> to vector<4x256xbf16>
    %c0_4 = arith.constant 0 : index
    %c0_5 = arith.constant 0 : index
    %c0_6 = arith.constant 0 : index
    %c0_7 = arith.constant 0 : index
    %5 = vector.load %arg4[%c0_4, %c0_5, %c0_6, %c0_7] : memref<1x1x4x256xbf16, #tpu.memory_space<vmem>>, vector<1x1x4x256xbf16>
    %6 = vector.shape_cast %5 : vector<1x1x4x256xbf16> to vector<4x256xbf16>
    %cst = arith.constant dense<0.000000e+00> : vector<256x256xf32>
    %7 = tpu.matmul %4, %6, %cst {dimension_numbers = #tpu.dot_dimension_numbers<[0], [0], [1], [1], [0, 1, 1, 1], [], []>} : vector<4x256xbf16>, vector<4x256xbf16>, vector<256x256xf32> -> vector<256x256xf32>
    %c0_8 = arith.constant 0 : index
    %c0_9 = arith.constant 0 : index
    %8 = vector.load %arg6[%c0_8, %c0_9] : memref<256x1xf32, #tpu.memory_space<vmem>>, vector<256x1xf32>
    %cst_10 = arith.constant dense<0xFF800000> : vector<256xf32>
    %9 = vector.multi_reduction <maximumf>, %7, %cst_10 [1] : vector<256x256xf32> to vector<256xf32>
    %10 = vector.shape_cast %9 : vector<256xf32> to vector<256x1xf32>
    %11 = arith.maximumf %8, %10 : vector<256x1xf32>
    %c0_11 = arith.constant 0 : index
    %c0_12 = arith.constant 0 : index
    %12 = vector.load %arg6[%c0_11, %c0_12] : memref<256x1xf32, #tpu.memory_space<vmem>>, vector<256x1xf32>
    %13 = arith.subf %12, %11 : vector<256x1xf32>
    %14 = math.exp %13 : vector<256x1xf32>
    %15 = vector.broadcast %11 : vector<256x1xf32> to vector<256x256xf32>
    %16 = arith.subf %7, %15 : vector<256x256xf32>
    %17 = arith.truncf %16 : vector<256x256xf32> to vector<256x256xbf16>
    %18 = math.exp %17 : vector<256x256xbf16>
    %c0_13 = arith.constant 0 : index
    %c0_14 = arith.constant 0 : index
    %19 = vector.load %arg7[%c0_13, %c0_14] : memref<256x1xf32, #tpu.memory_space<vmem>>, vector<256x1xf32>
    %20 = arith.mulf %14, %19 : vector<256x1xf32>
    %21 = arith.extf %18 : vector<256x256xbf16> to vector<256x256xf32>
    %cst_15 = arith.constant dense<0.000000e+00> : vector<256xf32>
    %22 = vector.multi_reduction <add>, %21, %cst_15 [1] : vector<256x256xf32> to vector<256xf32>
    %23 = vector.shape_cast %22 : vector<256xf32> to vector<256x1xf32>
    %24 = arith.addf %20, %23 : vector<256x1xf32>
    %c0_16 = arith.constant 0 : index
    %c0_17 = arith.constant 0 : index
    %25 = vector.load %arg7[%c0_16, %c0_17] : memref<256x1xf32, #tpu.memory_space<vmem>>, vector<256x1xf32>
    tpu.vector_store %arg7[%c0_16, %c0_17], %24 {strides = array<i32>} : memref<256x1xf32, #tpu.memory_space<vmem>>, vector<256x1xf32>,
    %c0_18 = arith.constant 0 : index
    %c0_19 = arith.constant 0 : index
    %26 = vector.load %arg6[%c0_18, %c0_19] : memref<256x1xf32, #tpu.memory_space<vmem>>, vector<256x1xf32>
    tpu.vector_store %arg6[%c0_18, %c0_19], %11 {strides = array<i32>} : memref<256x1xf32, #tpu.memory_space<vmem>>, vector<256x1xf32>,
    %c0_i32_20 = arith.constant 0 : i32
    %27 = arith.cmpi eq, %arg2, %c0_i32_20 : i32
    %28 = arith.extui %27 : i1 to i32
    %c0_i32_21 = arith.constant 0 : i32
    %29 = arith.cmpi ne, %28, %c0_i32_21 : i32
    scf.if %29 {
      %c0_22 = arith.constant 0 : index
      %c0_23 = arith.constant 0 : index
      %30 = vector.load %arg6[%c0_22, %c0_23] : memref<256x1xf32, #tpu.memory_space<vmem>>, vector<256x1xf32>
      %c0_24 = arith.constant 0 : index
      %c0_25 = arith.constant 0 : index
      %31 = vector.load %arg7[%c0_24, %c0_25] : memref<256x1xf32, #tpu.memory_space<vmem>>, vector<256x1xf32>
      %32 = math.log %31 : vector<256x1xf32>
      %33 = arith.addf %30, %32 : vector<256x1xf32>
      %c0_26 = arith.constant 0 : index
      %c0_27 = arith.constant 0 : index
      %c0_28 = arith.constant 0 : index
      %34 = vector.load %arg5[%c0_26, %c0_27, %c0_28] : memref<1x256x1xf32, #tpu.memory_space<vmem>>, vector<1x256x1xf32>
      %35 = vector.shape_cast %34 : vector<1x256x1xf32> to vector<256x1xf32>
      %36 = vector.shape_cast %33 : vector<256x1xf32> to vector<1x256x1xf32>
      tpu.vector_store %arg5[%c0_26, %c0_27, %c0_28], %36 {strides = array<i32>} : memref<1x256x1xf32, #tpu.memory_space<vmem>>, vector<1x256x1xf32>,
    } else {
    }
    return
  }
  func.func @transform_0(%arg0: i32, %arg1: i32, %arg2: i32) -> (i32, i32, i32, i32) {
    %c0_i32 = arith.constant 0 : i32
    %c0_i32_0 = arith.constant 0 : i32
    %c0_i32_1 = arith.constant 0 : i32
    return %arg0, %c0_i32, %c0_i32_0, %arg1 : i32, i32, i32, i32
  }
  func.func @transform_1(%arg0: i32, %arg1: i32, %arg2: i32) -> (i32, i32, i32, i32) {
    %c0_i32 = arith.constant 0 : i32
    %c0_i32_0 = arith.constant 0 : i32
    %c0_i32_1 = arith.constant 0 : i32
    return %arg0, %c0_i32, %c0_i32_0, %arg2 : i32, i32, i32, i32
  }
  func.func @transform_2(%arg0: i32, %arg1: i32, %arg2: i32) -> (i32, i32, i32) {
    %c0_i32 = arith.constant 0 : i32
    %c0_i32_0 = arith.constant 0 : i32
    return %arg0, %arg1, %c0_i32 : i32, i32, i32
  }
}

</mosaic_0001>

<llo_original>
// kernel: dual_attention.3
$region0: #{dual_attention.3}
  #allocation0 [shape = 'u32[]', space=smem, size = 0x4, offset = 0x4, fixed_abs, tag = 'smem constant byte address 0x4 - core index']
  #allocation1 [shape = 'u32[144,128]{1,0:T(1,128)}', space=vmem, size = 0x12000, scoped, tag = 'internal scratch']
  %s0 = inlined_call_operand.vmem [shape: f32[2,4,256], index: 0, kind: input, shape index: {}]
  %s1 = inlined_call_operand.vmem [shape: bf16[12,4], index: 1, kind: input, shape index: {}]
  %s2 = inlined_call_operand.vmem [shape: f32[12,1], index: 2, kind: input, shape index: {}]
  %s3 = inlined_call_operand.vmem [shape: bf16[2,3,4,256], index: 3, kind: output, shape index: {0}]
  %s4 = inlined_call_operand.vmem [shape: bf16[2,4,256], index: 4, kind: output, shape index: {1}]
  %5 = xla_tuple %s3, %s4
  %s6 = sld [smem:[#allocation0]]
  $region53: #{dual_attention.3} parent=0
    _
  %s8 = ssub.s32 1, %s6
  %s9 = scalar_select 0, %s8, %s6
  loop: start=0, step=1, limit=4
  $region2: #{dual_attention.3} parent=0 // loop_pre_header
    _
  $region3: #{dual_attention.3} parent=0 // loop_header
    %s11 = sphi 0, %s15
    %p12 = scmp.ge.s32.totalorder %s11, 4
    %s18 = sphi 0, %s30
    %s19 = sphi 0, %s26
    %s20 = sphi 0, %s18
    %s21 = sphi 0, %s19
    %s22 = sphi 0, %s20
    %s23 = sphi 0, %s21
    %s35 = sphi 0, %s37
    %s38 = sphi 0, %s35
    %s39 = sphi 0, %s38
    %s55 = sphi 0, %s39
    %s59 = sphi 0, %s59
    %s61 = sphi 0, %s59
    %s62 = sphi 0, %s61
    %s76 = sphi 0, %s62
    %s80 = sphi 0, %s80
    %s82 = sphi 0, %s80
    %s83 = sphi 0, %s82
    %s97 = sphi 0, %s83
    %s105 = sphi 0, %s107
    %s108 = sphi 0, %s105
    %s109 = sphi 0, %s108
    %s125 = sphi 0, %s109
    %s133 = sphi 0, %s135
    %s136 = sphi 0, %s133
    %s137 = sphi 0, %s136
    %s153 = sphi 0, %s137
  $region4: #{dual_attention.3} parent=0 // loop_header_branch
    %14 = sbr.rel (%p12) target = $region8
  $region5: #{dual_attention.3} parent=0 // loop_body
    %s16 = ssub.s32 %s11, 1
    %s17 = ssub.s32 %s11, 2
    %s24 = sadd.s32 1, %s19
    %p25 = scmp.ge.s32.totalorder %s24, 1
    %s26 = scalar_select %p25, 0, %s24
    %s27 = sadd.s32 1, %s18
    %s28 = scalar_select %p25, %s27, %s18
    %p29 = scmp.ge.s32.totalorder %s28, 2
    %s30 = scalar_select %p29, 0, %s28
    %s31 = ssub.s32 %s18, %s30
    %s32 = ssub.s32 %s19, %s26
    %s33 = sor.u32 %s31, %s32
    %p34 = scmp.eq.s32.totalorder %s33, 0
    %s36 = sadd.s32 %s35, 1
    %s37 = scalar_select %p34, %s35, %s36
    %p40 = pneg %p34
    %p41 = scmp.eq.s32.totalorder %s11, 1
    %p42 = por %p40, %p41
    %p43 = scmp.ne.s32.totalorder %s35, %s38
    %p44 = scmp.eq.s32.totalorder %s11, 0
    %p45 = por %p43, %p44
    %p46 = scmp.ne.s32.totalorder %s35, %s38
    %p47 = scmp.eq.s32.totalorder %s16, 1
    %p48 = por %p46, %p47
    %p49 = scmp.ne.s32.totalorder %s38, %s39
    %p50 = scmp.eq.s32.totalorder %s16, 0
    %p51 = por %p49, %p50
    %p52 = scmp.ne.s32.totalorder %s38, %s39
    %p53 = scmp.eq.s32.totalorder %s17, 1
    %p54 = por %p52, %p53
    %p56 = scmp.ne.s32.totalorder %s39, %s55
    %p57 = scmp.eq.s32.totalorder %s17, 0
    %p58 = por %p56, %p57
    %s60 = sadd.s32 %s59, 1
    %p63 = scmp.eq.s32.totalorder %s11, 1
    %p64 = scmp.ne.s32.totalorder %s59, %s61
    %p65 = scmp.eq.s32.totalorder %s11, 0
    %p66 = por %p64, %p65
    %p67 = scmp.ne.s32.totalorder %s59, %s61
    %p68 = scmp.eq.s32.totalorder %s16, 1
    %p69 = por %p67, %p68
    %p70 = scmp.ne.s32.totalorder %s61, %s62
    %p71 = scmp.eq.s32.totalorder %s16, 0
    %p72 = por %p70, %p71
    %p73 = scmp.ne.s32.totalorder %s61, %s62
    %p74 = scmp.eq.s32.totalorder %s17, 1
    %p75 = por %p73, %p74
    %p77 = scmp.ne.s32.totalorder %s62, %s76
    %p78 = scmp.eq.s32.totalorder %s17, 0
    %p79 = por %p77, %p78
    %s81 = sadd.s32 %s80, 1
    %p84 = scmp.eq.s32.totalorder %s11, 1
    %p85 = scmp.ne.s32.totalorder %s80, %s82
    %p86 = scmp.eq.s32.totalorder %s11, 0
    %p87 = por %p85, %p86
    %p88 = scmp.ne.s32.totalorder %s80, %s82
    %p89 = scmp.eq.s32.totalorder %s16, 1
    %p90 = por %p88, %p89
    %p91 = scmp.ne.s32.totalorder %s82, %s83
    %p92 = scmp.eq.s32.totalorder %s16, 0
    %p93 = por %p91, %p92
    %p94 = scmp.ne.s32.totalorder %s82, %s83
    %p95 = scmp.eq.s32.totalorder %s17, 1
    %p96 = por %p94, %p95
    %p98 = scmp.ne.s32.totalorder %s83, %s97
    %p99 = scmp.eq.s32.totalorder %s17, 0
    %p100 = por %p98, %p99
    %s101 = ssub.s32 %s18, %s30
    %s102 = ssub.s32 %s19, %s26
    %s103 = sor.u32 %s101, %s102
    %p104 = scmp.eq.s32.totalorder %s103, 0
    %s106 = sadd.s32 %s105, 1
    %s107 = scalar_select %p104, %s105, %s106
    %p110 = pneg %p104
    %p111 = scmp.eq.s32.totalorder %s11, 1
    %p112 = por %p110, %p111
    %p113 = scmp.ne.s32.totalorder %s105, %s108
    %p114 = scmp.eq.s32.totalorder %s11, 0
    %p115 = por %p113, %p114
    %p116 = scmp.ne.s32.totalorder %s105, %s108
    %p117 = scmp.eq.s32.totalorder %s16, 1
    %p118 = por %p116, %p117
    %p119 = scmp.ne.s32.totalorder %s108, %s109
    %p120 = scmp.eq.s32.totalorder %s16, 0
    %p121 = por %p119, %p120
    %p122 = scmp.ne.s32.totalorder %s108, %s109
    %p123 = scmp.eq.s32.totalorder %s17, 1
    %p124 = por %p122, %p123
    %p126 = scmp.ne.s32.totalorder %s109, %s125
    %p127 = scmp.eq.s32.totalorder %s17, 0
    %p128 = por %p126, %p127
    %s129 = ssub.s32 %s18, %s30
    %s130 = ssub.s32 %s19, %s26
    %s131 = sor.u32 %s129, %s130
    %p132 = scmp.eq.s32.totalorder %s131, 0
    %s134 = sadd.s32 %s133, 1
    %s135 = scalar_select %p132, %s133, %s134
    %p138 = pneg %p132
    %p139 = scmp.eq.s32.totalorder %s11, 1
    %p140 = por %p138, %p139
    %p141 = scmp.ne.s32.totalorder %s133, %s136
    %p142 = scmp.eq.s32.totalorder %s11, 0
    %p143 = por %p141, %p142
    %p144 = scmp.ne.s32.totalorder %s133, %s136
    %p145 = scmp.eq.s32.totalorder %s16, 1
    %p146 = por %p144, %p145
    %p147 = scmp.ne.s32.totalorder %s136, %s137
    %p148 = scmp.eq.s32.totalorder %s16, 0
    %p149 = por %p147, %p148
    %p150 = scmp.ne.s32.totalorder %s136, %s137
    %p151 = scmp.eq.s32.totalorder %s17, 1
    %p152 = por %p150, %p151
    %p154 = scmp.ne.s32.totalorder %s137, %s153
    %p155 = scmp.eq.s32.totalorder %s17, 0
    %p156 = por %p154, %p155
    %p157 = scmp.le.s32.totalorder 1, %s11
    %p158 = scmp.lt.s32.totalorder %s11, 3
    %p159 = pnand %p157, %p158
    %p160 = pneg %p159
    // Predicated region
    $region9: #{dual_attention.3} parent=5 // pred_check
      _
    $region10: #{dual_attention.3} parent=5 // pred_check_branch
      %162 = sbr.rel (%p159) target = $region12
    $region11: #{dual_attention.3} parent=5 // pred_region
      %s163 = ssub.s32 %s11, 1
      // Predicated region
      $region13: #{dual_attention.3} parent=11 // pred_check
        %p164 = pneg %p72
      $region14: #{dual_attention.3} parent=11 // pred_check_branch
        %166 = sbr.rel (%p164) target = $region16
      $region15: #{dual_attention.3} parent=11 // pred_region
        _
      $region16: #{dual_attention.3} parent=11 // pred_fallthru
        _
      // Predicated region
      $region17: #{dual_attention.3} parent=11 // pred_check
        %p167 = pneg %p93
      $region18: #{dual_attention.3} parent=11 // pred_check_branch
        %169 = sbr.rel (%p167) target = $region20
      $region19: #{dual_attention.3} parent=11 // pred_region
        _
      $region20: #{dual_attention.3} parent=11 // pred_fallthru
        _
    $region12: #{dual_attention.3} parent=5 // pred_fallthru
      _
    %p170 = scmp.lt.s32.totalorder %s11, 2
    // Predicated region
    $region21: #{dual_attention.3} parent=5 // pred_check
      %p171 = pneg %p170
    $region22: #{dual_attention.3} parent=5 // pred_check_branch
      %173 = sbr.rel (%p171) target = $region24
    $region23: #{dual_attention.3} parent=5 // pred_region
      // Predicated region
      $region25: #{dual_attention.3} parent=23 // pred_check
        %p174 = pneg %p45
      $region26: #{dual_attention.3} parent=23 // pred_check_branch
        %176 = sbr.rel (%p174) target = $region28
      $region27: #{dual_attention.3} parent=23 // pred_region
        %s177 = smul.u32 2, %s19
        %p178 = scmp.lt.s32.totalorder %s18, 1
        %s179 = scalar_select %p178, %s18, 1
        %p180 = scmp.lt.s32.totalorder %s177, 1
        %s181 = scalar_select %p180, %s177, 1
        %s182 = smul.addr %s179, 2
        %s183 = sadd.s32 %s181, %s182
        %s184 = smul.addr %s183, 4
        %s185 = scalar_lea.vmem %s0, %s184
        %s186 = smul.u32 2, %s19
      $region28: #{dual_attention.3} parent=23 // pred_fallthru
        _
    $region24: #{dual_attention.3} parent=5 // pred_fallthru
      _
    %p187 = scmp.le.s32.totalorder 1, %s11
    %p188 = scmp.lt.s32.totalorder %s11, 3
    %p189 = pnand %p187, %p188
    %p190 = pneg %p189
    // Predicated region
    $region29: #{dual_attention.3} parent=5 // pred_check
      _
    $region30: #{dual_attention.3} parent=5 // pred_check_branch
      %192 = sbr.rel (%p189) target = $region32
    $region31: #{dual_attention.3} parent=5 // pred_region
      %s193 = ssub.s32 %s11, 1
      %s194 = smul.u32 2, %s21
      %p195 = scmp.lt.s32.totalorder %s20, 1
      %s196 = scalar_select %p195, %s20, 1
      %p197 = scmp.lt.s32.totalorder %s194, 1
      %s198 = scalar_select %p197, %s194, 1
      %s199 = smul.addr %s196, 2
      %s200 = sadd.s32 %s198, %s199
      %s201 = smul.addr %s200, 4
      %s202 = scalar_lea.vmem %s0, %s201
      %p203 = pneg %p51
      %p204 = pneg %p48
      %p205 = pneg %p72
      %p206 = pneg %p69
      %p207 = pneg %p93
      %p208 = pneg %p90
      %p209 = pneg %p121
      %p210 = pneg %p118
      %s211 = smul.u32 2, %s21
      %p212 = scmp.lt.s32.totalorder %s20, 1
      %s213 = scalar_select %p212, %s20, 1
      %p214 = scmp.lt.s32.totalorder %s211, 1
      %s215 = scalar_select %p214, %s211, 1
      %s216 = smul.addr %s213, 6
      %s217 = sadd.s32 %s215, %s216
      %s218 = smul.addr %s217, 2
      %s219 = scalar_lea.vmem %s3, %s218
      %p220 = pneg %p149
      %p221 = pneg %p146
      %s222 = smul.u32 2, %s21
      %p223 = scmp.lt.s32.totalorder %s20, 1
      %s224 = scalar_select %p223, %s20, 1
      %p225 = scmp.lt.s32.totalorder %s222, 1
      %s226 = scalar_select %p225, %s222, 1
      %s227 = smul.addr %s224, 2
      %s228 = sadd.s32 %s226, %s227
      %s229 = smul.addr %s228, 2
      %s230 = scalar_lea.vmem %s4, %s229
      %s231 = smul.u32 2, %s21
      %p232 = scmp.lt.s32.totalorder %s20, 1
      %s233 = scalar_select %p232, %s20, 1
      %p234 = scmp.lt.s32.totalorder %s231, 1
      %s235 = scalar_select %p234, %s231, 1
      %s236 = smul.addr %s233, 2
      %s237 = sadd.s32 %s235, %s236
      %s238 = smul.addr %s237, 4
      %s239 = scalar_lea.vmem %s0, %s238
      %s240 = smul.u32 2, %s21
      %s241 = smul.u32 2, %s21
      %p242 = scmp.lt.s32.totalorder %s20, 1
      %s243 = scalar_select %p242, %s20, 1
      %p244 = scmp.lt.s32.totalorder %s241, 1
      %s245 = scalar_select %p244, %s241, 1
      %s246 = smul.addr %s243, 6
      %s247 = sadd.s32 %s245, %s246
      %s248 = smul.addr %s247, 2
      %s249 = scalar_lea.vmem %s3, %s248
      %s250 = smul.u32 2, %s21
      %s251 = smul.u32 2, %s21
      %p252 = scmp.lt.s32.totalorder %s20, 1
      %s253 = scalar_select %p252, %s20, 1
      %p254 = scmp.lt.s32.totalorder %s251, 1
      %s255 = scalar_select %p254, %s251, 1
      %s256 = smul.addr %s253, 2
      %s257 = sadd.s32 %s255, %s256
      %s258 = smul.addr %s257, 2
      %s259 = scalar_lea.vmem %s4, %s258
      %s260 = smul.u32 2, %s21
      %v262 = vld [vmem:[%s239] sm:$0xff]
      %v264 = vcombine.high %v262, %v262
      %v266 = vpack.c.bf16 %v262, %v262
      %v267 = vpack.c.bf16 %v264, %v264
      %v268 = vld [vmem:[%s1] sm:$0xf]
      %v269 = vld [vmem:[%s1 + $0x4] sm:$0x3]
      %v270 = vld [vmem:[%s2] sm:$0xff]
      %v271 = vld [vmem:[%s2 + $0x8] sm:$0xf]
      %273 = vset.pattern.permute.xlu0 0
      %274 = vperm.xlu0 %273, %v270
      %v275 = vpop.permute.xlu0 %274
      %278 = vset.pattern.permute.xlu0 0
      %279 = vperm.xlu0 %278, %v271
      %v280 = vpop.permute.xlu0 %279
      %v284 = vunpack.c.l.b16 %v268
      %v285 = vunpack.c.l.b16 %v269
      %v286 = vpack.c.b16 %v285, %v284
      %vm287 = vcmask 31744
      %v289 = vsel %vm287, %v286, 0
      %vm291 = vcmask 1041408
      %v293 = vsel %vm291, %v266, 0
      %v296 = vsel %vm291, %v267, 0
      %298 = vmatprep.subr.bf16.mxu0 %v296
      %299 = vmatpush1.bf16.msra.mxu0 %v293
      %300 = vmatprep.subr.bf16.mxu0 0
      %301 = vmatpush1.bf16.msra.mxu0 0
      %302 = vmatprep.subr.bf16.mxu0 0
      %303 = vmatpush1.bf16.msra.mxu0 0
      %304 = vmatprep.subr.bf16.mxu0 0
      %305 = vmatpush1.bf16.msra.mxu0 0
      %306 = vmatprep.subr.bf16.mxu0 0
      %307 = vmatpush1.bf16.msra.mxu0 0
      %308 = vmatprep.subr.bf16.mxu0 0
      %309 = vmatpush1.bf16.msra.mxu0 0
      %310 = vmatprep.subr.bf16.mxu0 0
      %311 = vmatpush1.bf16.msra.mxu0 0
      %312 = vmatprep.subr.bf16.mxu0 0
      %313 = vmatpush1.bf16.msra.mxu0 0
      %314 = vmatprep.subr.bf16.mxu0 0
      %315 = vmatpush1.bf16.msra.mxu0 0
      %316 = vmatprep.subr.bf16.mxu0 0
      %317 = vmatpush1.bf16.msra.mxu0 0
      %318 = vmatprep.subr.bf16.mxu0 0
      %319 = vmatpush1.bf16.msra.mxu0 0
      %320 = vmatprep.subr.bf16.mxu0 0
      %321 = vmatpush1.bf16.msra.mxu0 0
      %322 = vmatprep.subr.bf16.mxu0 0
      %323 = vmatpush1.bf16.msra.mxu0 0
      %324 = vmatprep.subr.bf16.mxu0 0
      %325 = vmatpush1.bf16.msra.mxu0 0
      %326 = vmatprep.subr.bf16.mxu0 0
      %327 = vmatpush1.bf16.msra.mxu0 0
      %328 = vmatprep.subr.bf16.mxu0 0
      %329 = vmatpush1.bf16.msra.mxu0 0
      %330 = vmatprep.mubr.bf16.mxu0 0
      %331 = vmatmul.mubr.bf16.gmra.mrb[0].mxu0 %v289
      %v332 = vpop.f32.mrb[0].mxu0
      %v333 = vadd.f32 %v275, %v332
      %v334 = vpop.f32.mrb[0].mxu0
      %v335 = vadd.f32 %v275, %v334
      %v336 = vpop.f32.mrb[0].mxu0
      %v337 = vadd.f32 %v280, %v336
      %v338 = vpop.f32.mrb[0].mxu0
      %v339 = vadd.f32 %v280, %v338
      %340 = vdwg.mxu0
      %v341 = vpack.c.bf16 %v337, %v333
      %v342 = vpack.c.bf16 %v339, %v335
      %v345 = vcombine.low %v266, %v267
      %v347 = vunpack.c.l.s4 1983009808
      %v348 = vunpack.c.0.s8 %v347
      %v349 = vlaneseq
      %v350 = vshrl.u32 %v349, 7
      %v351 = vsub.s32 %v348, %v350
      %v352 = vrot.slane %v345, %v351
      %354 = vst [vmem:[%s249] sm:$0xf] %v352
      %v357 = vcombine.low %v341, %v342
      %v359 = vunpack.c.l.s4 1983009808
      %v360 = vunpack.c.0.s8 %v359
      %v361 = vlaneseq
      %v362 = vshrl.u32 %v361, 7
      %v363 = vsub.s32 %v360, %v362
      %v364 = vrot.slane %v357, %v363
      %s366 = scalar_lea.vmem %s249, 4
      %367 = vst [vmem:[%s366] sm:$0xf] %v364
      %v368 = vcombine.high %v364, %v364
      %s370 = scalar_lea.vmem %s249, 8
      %371 = vst [vmem:[%s370] sm:$0xf] %v368
      %v372 = vcombine.high %v341, %v342
      %v374 = vunpack.c.l.s4 1983009808
      %v375 = vunpack.c.0.s8 %v374
      %v376 = vlaneseq
      %v377 = vshrl.u32 %v376, 7
      %v378 = vsub.s32 %v375, %v377
      %v379 = vrot.slane %v372, %v378
      %381 = vst [vmem:[%s259] sm:$0xf] %v379
      %s382 = smul.u32 2, %s21
      %p383 = scmp.lt.s32.totalorder %s20, 1
      %s384 = scalar_select %p383, %s20, 1
      %p385 = scmp.lt.s32.totalorder %s382, 1
      %s386 = scalar_select %p385, %s382, 1
      %s387 = smul.addr %s384, 6
      %s388 = sadd.s32 %s386, %s387
      %s389 = smul.addr %s388, 2
      %s390 = scalar_lea.vmem %s3, %s389
      %s391 = smul.u32 2, %s21
      %p392 = scmp.lt.s32.totalorder %s20, 1
      %s393 = scalar_select %p392, %s20, 1
      %p394 = scmp.lt.s32.totalorder %s391, 1
      %s395 = scalar_select %p394, %s391, 1
      %s396 = smul.addr %s393, 2
      %s397 = sadd.s32 %s395, %s396
      %s398 = smul.addr %s397, 2
      %s399 = scalar_lea.vmem %s4, %s398
      // Predicated region
      $region33: #{dual_attention.3} parent=31 // pred_check
        %p400 = pneg %p118
      $region34: #{dual_attention.3} parent=31 // pred_check_branch
        %402 = sbr.rel (%p400) target = $region36
      $region35: #{dual_attention.3} parent=31 // pred_region
        %s403 = smul.u32 2, %s21
      $region36: #{dual_attention.3} parent=31 // pred_fallthru
        _
      // Predicated region
      $region37: #{dual_attention.3} parent=31 // pred_check
        %p404 = pneg %p146
      $region38: #{dual_attention.3} parent=31 // pred_check_branch
        %406 = sbr.rel (%p404) target = $region40
      $region39: #{dual_attention.3} parent=31 // pred_region
        %s407 = smul.u32 2, %s21
      $region40: #{dual_attention.3} parent=31 // pred_fallthru
        _
    $region32: #{dual_attention.3} parent=5 // pred_fallthru
      _
    %p408 = scmp.le.s32.totalorder 2, %s11
    // Predicated region
    $region41: #{dual_attention.3} parent=5 // pred_check
      %p409 = pneg %p408
    $region42: #{dual_attention.3} parent=5 // pred_check_branch
      %411 = sbr.rel (%p409) target = $region44
    $region43: #{dual_attention.3} parent=5 // pred_region
      %s412 = ssub.s32 %s11, 2
      // Predicated region
      $region45: #{dual_attention.3} parent=43 // pred_check
        %p413 = pneg %p124
      $region46: #{dual_attention.3} parent=43 // pred_check_branch
        %415 = sbr.rel (%p413) target = $region48
      $region47: #{dual_attention.3} parent=43 // pred_region
        %s416 = smul.u32 2, %s23
        %p417 = scmp.lt.s32.totalorder %s22, 1
        %s418 = scalar_select %p417, %s22, 1
        %p419 = scmp.lt.s32.totalorder %s416, 1
        %s420 = scalar_select %p419, %s416, 1
        %s421 = smul.addr %s418, 6
        %s422 = sadd.s32 %s420, %s421
        %s423 = smul.addr %s422, 2
        %s424 = scalar_lea.vmem %s3, %s423
      $region48: #{dual_attention.3} parent=43 // pred_fallthru
        _
      // Predicated region
      $region49: #{dual_attention.3} parent=43 // pred_check
        %p425 = pneg %p152
      $region50: #{dual_attention.3} parent=43 // pred_check_branch
        %427 = sbr.rel (%p425) target = $region52
      $region51: #{dual_attention.3} parent=43 // pred_region
        %s428 = smul.u32 2, %s23
        %p429 = scmp.lt.s32.totalorder %s22, 1
        %s430 = scalar_select %p429, %s22, 1
        %p431 = scmp.lt.s32.totalorder %s428, 1
        %s432 = scalar_select %p431, %s428, 1
        %s433 = smul.addr %s430, 2
        %s434 = sadd.s32 %s432, %s433
        %s435 = smul.addr %s434, 2
        %s436 = scalar_lea.vmem %s4, %s435
      $region52: #{dual_attention.3} parent=43 // pred_fallthru
        _
    $region44: #{dual_attention.3} parent=5 // pred_fallthru
      _
  $region6: #{dual_attention.3} parent=0 // loop_footer
    %s15 = sadd.s32 1, %s11
  $region7: #{dual_attention.3} parent=0 // loop_footer_branch
    %10 = sbr.rel target = $region3
  $region8: #{dual_attention.3} parent=0 // loop_exit
    _

// kernel: dual_attention.4
$region0: #{dual_attention.4}
  #allocation0 [shape = 'u32[]', space=smem, size = 0x4, offset = 0x4, fixed_abs, tag = 'smem constant byte address 0x4 - core index']
  #allocation1 [shape = 'u32[144,128]{1,0:T(1,128)}', space=vmem, size = 0x12000, scoped, tag = 'internal scratch']
  #allocation2 [shape = 'f32[256,1]{1,0:T(8,128)}', space=vmem, size = 0x20000, scoped, tag = 'scratch operand']
  #allocation3 [shape = 'f32[256,1]{1,0:T(8,128)}', space=vmem, size = 0x20000, scoped, tag = 'scratch operand']
  %s0 = inlined_call_operand.vmem [shape: bf16[2,3,4,256], index: 0, kind: input, shape index: {}, may-alias: {0,1}]
  %s1 = inlined_call_operand.vmem [shape: bf16[2,3,4,256], index: 1, kind: input, shape index: {}, may-alias: {0,1}]
  %s2 = inlined_call_operand.vmem [shape: f32[2,256,1], index: 2, kind: output, shape index: {}]
  %s3 = sld [smem:[#allocation0]]
  $region49: #{dual_attention.4} parent=0
    _
  %s5 = ssub.s32 1, %s3
  %s6 = scalar_select 0, %s5, %s3
  loop: start=0, step=1, limit=4
  $region2: #{dual_attention.4} parent=0 // loop_pre_header
    _
  $region3: #{dual_attention.4} parent=0 // loop_header
    %s8 = sphi 0, %s12
    %p9 = scmp.ge.s32.totalorder %s8, 4
    %s15 = sphi 0, %s34
    %s16 = sphi 0, %s30
    %s17 = sphi 0, %s26
    %s18 = sphi 0, %s15
    %s19 = sphi 0, %s16
    %s20 = sphi 0, %s17
    %s21 = sphi 0, %s18
    %s22 = sphi 0, %s19
    %s23 = sphi 0, %s20
    %s39 = sphi 0, %s41
    %s42 = sphi 0, %s39
    %s43 = sphi 0, %s42
    %s59 = sphi 0, %s43
    %s67 = sphi 0, %s69
    %s70 = sphi 0, %s67
    %s71 = sphi 0, %s70
    %s87 = sphi 0, %s71
    %s95 = sphi 0, %s97
    %s98 = sphi 0, %s95
    %s99 = sphi 0, %s98
    %s115 = sphi 0, %s99
  $region4: #{dual_attention.4} parent=0 // loop_header_branch
    %11 = sbr.rel (%p9) target = $region8
  $region5: #{dual_attention.4} parent=0 // loop_body
    %s13 = ssub.s32 %s8, 1
    %s14 = ssub.s32 %s8, 2
    %s24 = sadd.s32 1, %s17
    %p25 = scmp.ge.s32.totalorder %s24, 1
    %s26 = scalar_select %p25, 0, %s24
    %s27 = sadd.s32 1, %s16
    %s28 = scalar_select %p25, %s27, %s16
    %p29 = scmp.ge.s32.totalorder %s28, 1
    %s30 = scalar_select %p29, 0, %s28
    %s31 = sadd.s32 1, %s15
    %s32 = scalar_select %p29, %s31, %s15
    %p33 = scmp.ge.s32.totalorder %s32, 2
    %s34 = scalar_select %p33, 0, %s32
    %s35 = ssub.s32 %s15, %s34
    %s36 = ssub.s32 %s16, %s30
    %s37 = sor.u32 %s35, %s36
    %p38 = scmp.eq.s32.totalorder %s37, 0
    %s40 = sadd.s32 %s39, 1
    %s41 = scalar_select %p38, %s39, %s40
    %p44 = pneg %p38
    %p45 = scmp.eq.s32.totalorder %s8, 1
    %p46 = por %p44, %p45
    %p47 = scmp.ne.s32.totalorder %s39, %s42
    %p48 = scmp.eq.s32.totalorder %s8, 0
    %p49 = por %p47, %p48
    %p50 = scmp.ne.s32.totalorder %s39, %s42
    %p51 = scmp.eq.s32.totalorder %s13, 1
    %p52 = por %p50, %p51
    %p53 = scmp.ne.s32.totalorder %s42, %s43
    %p54 = scmp.eq.s32.totalorder %s13, 0
    %p55 = por %p53, %p54
    %p56 = scmp.ne.s32.totalorder %s42, %s43
    %p57 = scmp.eq.s32.totalorder %s14, 1
    %p58 = por %p56, %p57
    %p60 = scmp.ne.s32.totalorder %s43, %s59
    %p61 = scmp.eq.s32.totalorder %s14, 0
    %p62 = por %p60, %p61
    %s63 = ssub.s32 %s15, %s34
    %s64 = ssub.s32 %s17, %s26
    %s65 = sor.u32 %s63, %s64
    %p66 = scmp.eq.s32.totalorder %s65, 0
    %s68 = sadd.s32 %s67, 1
    %s69 = scalar_select %p66, %s67, %s68
    %p72 = pneg %p66
    %p73 = scmp.eq.s32.totalorder %s8, 1
    %p74 = por %p72, %p73
    %p75 = scmp.ne.s32.totalorder %s67, %s70
    %p76 = scmp.eq.s32.totalorder %s8, 0
    %p77 = por %p75, %p76
    %p78 = scmp.ne.s32.totalorder %s67, %s70
    %p79 = scmp.eq.s32.totalorder %s13, 1
    %p80 = por %p78, %p79
    %p81 = scmp.ne.s32.totalorder %s70, %s71
    %p82 = scmp.eq.s32.totalorder %s13, 0
    %p83 = por %p81, %p82
    %p84 = scmp.ne.s32.totalorder %s70, %s71
    %p85 = scmp.eq.s32.totalorder %s14, 1
    %p86 = por %p84, %p85
    %p88 = scmp.ne.s32.totalorder %s71, %s87
    %p89 = scmp.eq.s32.totalorder %s14, 0
    %p90 = por %p88, %p89
    %s91 = ssub.s32 %s15, %s34
    %s92 = ssub.s32 %s16, %s30
    %s93 = sor.u32 %s91, %s92
    %p94 = scmp.eq.s32.totalorder %s93, 0
    %s96 = sadd.s32 %s95, 1
    %s97 = scalar_select %p94, %s95, %s96
    %p100 = pneg %p94
    %p101 = scmp.eq.s32.totalorder %s8, 1
    %p102 = por %p100, %p101
    %p103 = scmp.ne.s32.totalorder %s95, %s98
    %p104 = scmp.eq.s32.totalorder %s8, 0
    %p105 = por %p103, %p104
    %p106 = scmp.ne.s32.totalorder %s95, %s98
    %p107 = scmp.eq.s32.totalorder %s13, 1
    %p108 = por %p106, %p107
    %p109 = scmp.ne.s32.totalorder %s98, %s99
    %p110 = scmp.eq.s32.totalorder %s13, 0
    %p111 = por %p109, %p110
    %p112 = scmp.ne.s32.totalorder %s98, %s99
    %p113 = scmp.eq.s32.totalorder %s14, 1
    %p114 = por %p112, %p113
    %p116 = scmp.ne.s32.totalorder %s99, %s115
    %p117 = scmp.eq.s32.totalorder %s14, 0
    %p118 = por %p116, %p117
    %p119 = scmp.le.s32.totalorder 1, %s8
    %p120 = scmp.lt.s32.totalorder %s8, 3
    %p121 = pnand %p119, %p120
    %p122 = pneg %p121
    // Predicated region
    $region9: #{dual_attention.4} parent=5 // pred_check
      _
    $region10: #{dual_attention.4} parent=5 // pred_check_branch
      %124 = sbr.rel (%p121) target = $region12
    $region11: #{dual_attention.4} parent=5 // pred_region
      %s125 = ssub.s32 %s8, 1
    $region12: #{dual_attention.4} parent=5 // pred_fallthru
      _
    %p126 = scmp.lt.s32.totalorder %s8, 2
    // Predicated region
    $region13: #{dual_attention.4} parent=5 // pred_check
      %p127 = pneg %p126
    $region14: #{dual_attention.4} parent=5 // pred_check_branch
      %129 = sbr.rel (%p127) target = $region16
    $region15: #{dual_attention.4} parent=5 // pred_region
      // Predicated region
      $region17: #{dual_attention.4} parent=15 // pred_check
        %p130 = pneg %p49
      $region18: #{dual_attention.4} parent=15 // pred_check_branch
        %132 = sbr.rel (%p130) target = $region20
      $region19: #{dual_attention.4} parent=15 // pred_region
        %s133 = smul.u32 2, %s16
        %p134 = scmp.lt.s32.totalorder %s15, 1
        %s135 = scalar_select %p134, %s15, 1
        %p136 = scmp.lt.s32.totalorder %s133, 1
        %s137 = scalar_select %p136, %s133, 1
        %s138 = smul.addr %s135, 6
        %s139 = sadd.s32 %s137, %s138
        %s140 = smul.addr %s139, 2
        %s141 = scalar_lea.vmem %s0, %s140
        %s142 = smul.u32 2, %s16
      $region20: #{dual_attention.4} parent=15 // pred_fallthru
        _
      // Predicated region
      $region21: #{dual_attention.4} parent=15 // pred_check
        %p143 = pneg %p77
      $region22: #{dual_attention.4} parent=15 // pred_check_branch
        %145 = sbr.rel (%p143) target = $region24
      $region23: #{dual_attention.4} parent=15 // pred_region
        %s146 = smul.u32 2, %s17
        %p147 = scmp.lt.s32.totalorder %s15, 1
        %s148 = scalar_select %p147, %s15, 1
        %p149 = scmp.lt.s32.totalorder %s146, 1
        %s150 = scalar_select %p149, %s146, 1
        %s151 = smul.addr %s148, 6
        %s152 = sadd.s32 %s150, %s151
        %s153 = smul.addr %s152, 2
        %s154 = scalar_lea.vmem %s1, %s153
        %s155 = smul.u32 2, %s17
      $region24: #{dual_attention.4} parent=15 // pred_fallthru
        _
    $region16: #{dual_attention.4} parent=5 // pred_fallthru
      _
    %p156 = scmp.le.s32.totalorder 1, %s8
    %p157 = scmp.lt.s32.totalorder %s8, 3
    %p158 = pnand %p156, %p157
    %p159 = pneg %p158
    // Predicated region
    $region25: #{dual_attention.4} parent=5 // pred_check
      _
    $region26: #{dual_attention.4} parent=5 // pred_check_branch
      %161 = sbr.rel (%p158) target = $region28
    $region27: #{dual_attention.4} parent=5 // pred_region
      %s162 = ssub.s32 %s8, 1
      %s163 = smul.u32 2, %s19
      %p164 = scmp.lt.s32.totalorder %s18, 1
      %s165 = scalar_select %p164, %s18, 1
      %p166 = scmp.lt.s32.totalorder %s163, 1
      %s167 = scalar_select %p166, %s163, 1
      %s168 = smul.addr %s165, 6
      %s169 = sadd.s32 %s167, %s168
      %s170 = smul.addr %s169, 2
      %s171 = scalar_lea.vmem %s0, %s170
      %p172 = pneg %p55
      %p173 = pneg %p52
      %s174 = smul.u32 2, %s20
      %p175 = scmp.lt.s32.totalorder %s18, 1
      %s176 = scalar_select %p175, %s18, 1
      %p177 = scmp.lt.s32.totalorder %s174, 1
      %s178 = scalar_select %p177, %s174, 1
      %s179 = smul.addr %s176, 6
      %s180 = sadd.s32 %s178, %s179
      %s181 = smul.addr %s180, 2
      %s182 = scalar_lea.vmem %s1, %s181
      %p183 = pneg %p83
      %p184 = pneg %p80
      %p185 = pneg %p111
      %p186 = pneg %p108
      %s187 = smul.u32 32, %s19
      %p188 = scmp.lt.s32.totalorder %s18, 1
      %s189 = scalar_select %p188, %s18, 1
      %p190 = scmp.lt.s32.totalorder %s187, 31
      %s191 = scalar_select %p190, %s187, 31
      %s192 = smul.addr %s189, 32
      %s193 = sadd.s32 %s191, %s192
      %s194 = smul.addr %s193, 8
      %s195 = scalar_lea.vmem %s2, %s194
      %s196 = smul.u32 2, %s19
      %p197 = scmp.lt.s32.totalorder %s18, 1
      %s198 = scalar_select %p197, %s18, 1
      %p199 = scmp.lt.s32.totalorder %s196, 1
      %s200 = scalar_select %p199, %s196, 1
      %s201 = smul.addr %s198, 6
      %s202 = sadd.s32 %s200, %s201
      %s203 = smul.addr %s202, 2
      %s204 = scalar_lea.vmem %s0, %s203
      %s205 = smul.u32 2, %s19
      %s206 = smul.u32 2, %s20
      %p207 = scmp.lt.s32.totalorder %s18, 1
      %s208 = scalar_select %p207, %s18, 1
      %p209 = scmp.lt.s32.totalorder %s206, 1
      %s210 = scalar_select %p209, %s206, 1
      %s211 = smul.addr %s208, 6
      %s212 = sadd.s32 %s210, %s211
      %s213 = smul.addr %s212, 2
      %s214 = scalar_lea.vmem %s1, %s213
      %s215 = smul.u32 2, %s20
      %s216 = smul.u32 32, %s19
      %p217 = scmp.lt.s32.totalorder %s18, 1
      %s218 = scalar_select %p217, %s18, 1
      %p219 = scmp.lt.s32.totalorder %s216, 31
      %s220 = scalar_select %p219, %s216, 31
      %s221 = smul.addr %s218, 32
      %s222 = sadd.s32 %s220, %s221
      %s223 = smul.addr %s222, 8
      %s224 = scalar_lea.vmem %s2, %s223
      %s225 = smul.u32 32, %s19
      %p227 = scmp.eq.s32.totalorder %s20, 0
      // Predicated region
      $region29: #{dual_attention.4} parent=27 // pred_check
        %p228 = pneg %p227
      $region30: #{dual_attention.4} parent=27 // pred_check_branch
        %230 = sbr.rel (%p228) target = $region32
      $region31: #{dual_attention.4} parent=27 // pred_region
        %vm231 = vcmask 7168
        %232 = vst.msk [vmem:[#allocation2] sm:$0xff] %vm231, -inf
        %233 = vst.msk [vmem:[#allocation2 + $0x8] sm:$0xff] %vm231, -inf
        %234 = vst.msk [vmem:[#allocation2 + $0x10] sm:$0xff] %vm231, -inf
        %235 = vst.msk [vmem:[#allocation2 + $0x18] sm:$0xff] %vm231, -inf
        %236 = vst.msk [vmem:[#allocation2 + $0x20] sm:$0xff] %vm231, -inf
        %237 = vst.msk [vmem:[#allocation2 + $0x28] sm:$0xff] %vm231, -inf
        %238 = vst.msk [vmem:[#allocation2 + $0x30] sm:$0xff] %vm231, -inf
        %239 = vst.msk [vmem:[#allocation2 + $0x38] sm:$0xff] %vm231, -inf
        %240 = vst.msk [vmem:[#allocation2 + $0x40] sm:$0xff] %vm231, -inf
        %241 = vst.msk [vmem:[#allocation2 + $0x48] sm:$0xff] %vm231, -inf
        %242 = vst.msk [vmem:[#allocation2 + $0x50] sm:$0xff] %vm231, -inf
        %243 = vst.msk [vmem:[#allocation2 + $0x58] sm:$0xff] %vm231, -inf
        %244 = vst.msk [vmem:[#allocation2 + $0x60] sm:$0xff] %vm231, -inf
        %245 = vst.msk [vmem:[#allocation2 + $0x68] sm:$0xff] %vm231, -inf
        %246 = vst.msk [vmem:[#allocation2 + $0x70] sm:$0xff] %vm231, -inf
        %247 = vst.msk [vmem:[#allocation2 + $0x78] sm:$0xff] %vm231, -inf
        %248 = vst.msk [vmem:[#allocation2 + $0x80] sm:$0xff] %vm231, -inf
        %249 = vst.msk [vmem:[#allocation2 + $0x88] sm:$0xff] %vm231, -inf
        %250 = vst.msk [vmem:[#allocation2 + $0x90] sm:$0xff] %vm231, -inf
        %251 = vst.msk [vmem:[#allocation2 + $0x98] sm:$0xff] %vm231, -inf
        %252 = vst.msk [vmem:[#allocation2 + $0xa0] sm:$0xff] %vm231, -inf
        %253 = vst.msk [vmem:[#allocation2 + $0xa8] sm:$0xff] %vm231, -inf
        %254 = vst.msk [vmem:[#allocation2 + $0xb0] sm:$0xff] %vm231, -inf
        %255 = vst.msk [vmem:[#allocation2 + $0xb8] sm:$0xff] %vm231, -inf
        %256 = vst.msk [vmem:[#allocation2 + $0xc0] sm:$0xff] %vm231, -inf
        %257 = vst.msk [vmem:[#allocation2 + $0xc8] sm:$0xff] %vm231, -inf
        %258 = vst.msk [vmem:[#allocation2 + $0xd0] sm:$0xff] %vm231, -inf
        %259 = vst.msk [vmem:[#allocation2 + $0xd8] sm:$0xff] %vm231, -inf
        %260 = vst.msk [vmem:[#allocation2 + $0xe0] sm:$0xff] %vm231, -inf
        %261 = vst.msk [vmem:[#allocation2 + $0xe8] sm:$0xff] %vm231, -inf
        %262 = vst.msk [vmem:[#allocation2 + $0xf0] sm:$0xff] %vm231, -inf
        %263 = vst.msk [vmem:[#allocation2 + $0xf8] sm:$0xff] %vm231, -inf
        %264 = vst.msk [vmem:[#allocation3] sm:$0xff] %vm231, 0.0
        %265 = vst.msk [vmem:[#allocation3 + $0x8] sm:$0xff] %vm231, 0.0
        %266 = vst.msk [vmem:[#allocation3 + $0x10] sm:$0xff] %vm231, 0.0
        %267 = vst.msk [vmem:[#allocation3 + $0x18] sm:$0xff] %vm231, 0.0
        %268 = vst.msk [vmem:[#allocation3 + $0x20] sm:$0xff] %vm231, 0.0
        %269 = vst.msk [vmem:[#allocation3 + $0x28] sm:$0xff] %vm231, 0.0
        %270 = vst.msk [vmem:[#allocation3 + $0x30] sm:$0xff] %vm231, 0.0
        %271 = vst.msk [vmem:[#allocation3 + $0x38] sm:$0xff] %vm231, 0.0
        %272 = vst.msk [vmem:[#allocation3 + $0x40] sm:$0xff] %vm231, 0.0
        %273 = vst.msk [vmem:[#allocation3 + $0x48] sm:$0xff] %vm231, 0.0
        %274 = vst.msk [vmem:[#allocation3 + $0x50] sm:$0xff] %vm231, 0.0
        %275 = vst.msk [vmem:[#allocation3 + $0x58] sm:$0xff] %vm231, 0.0
        %276 = vst.msk [vmem:[#allocation3 + $0x60] sm:$0xff] %vm231, 0.0
        %277 = vst.msk [vmem:[#allocation3 + $0x68] sm:$0xff] %vm231, 0.0
        %278 = vst.msk [vmem:[#allocation3 + $0x70] sm:$0xff] %vm231, 0.0
        %279 = vst.msk [vmem:[#allocation3 + $0x78] sm:$0xff] %vm231, 0.0
        %280 = vst.msk [vmem:[#allocation3 + $0x80] sm:$0xff] %vm231, 0.0
        %281 = vst.msk [vmem:[#allocation3 + $0x88] sm:$0xff] %vm231, 0.0
        %282 = vst.msk [vmem:[#allocation3 + $0x90] sm:$0xff] %vm231, 0.0
        %283 = vst.msk [vmem:[#allocation3 + $0x98] sm:$0xff] %vm231, 0.0
        %284 = vst.msk [vmem:[#allocation3 + $0xa0] sm:$0xff] %vm231, 0.0
        %285 = vst.msk [vmem:[#allocation3 + $0xa8] sm:$0xff] %vm231, 0.0
        %286 = vst.msk [vmem:[#allocation3 + $0xb0] sm:$0xff] %vm231, 0.0
        %287 = vst.msk [vmem:[#allocation3 + $0xb8] sm:$0xff] %vm231, 0.0
        %288 = vst.msk [vmem:[#allocation3 + $0xc0] sm:$0xff] %vm231, 0.0
        %289 = vst.msk [vmem:[#allocation3 + $0xc8] sm:$0xff] %vm231, 0.0
        %290 = vst.msk [vmem:[#allocation3 + $0xd0] sm:$0xff] %vm231, 0.0
        %291 = vst.msk [vmem:[#allocation3 + $0xd8] sm:$0xff] %vm231, 0.0
        %292 = vst.msk [vmem:[#allocation3 + $0xe0] sm:$0xff] %vm231, 0.0
        %293 = vst.msk [vmem:[#allocation3 + $0xe8] sm:$0xff] %vm231, 0.0
        %294 = vst.msk [vmem:[#allocation3 + $0xf0] sm:$0xff] %vm231, 0.0
        %295 = vst.msk [vmem:[#allocation3 + $0xf8] sm:$0xff] %vm231, 0.0
      $region32: #{dual_attention.4} parent=27 // pred_fallthru
        _
      %v296 = vld [vmem:[%s204] sm:$0xf]
      %v297 = vld [vmem:[%s214] sm:$0xf]
      %v300 = vunpack.c.l.s4 1983009808
      %v301 = vunpack.c.0.s8 %v300
      %v302 = vlaneseq
      %v303 = vshrl.u32 %v302, 7
      %v304 = vsub.s32 %v301, %v303
      %v305 = vrot.slane %v296, %v304
      %v306 = vcombine.high %v305, %v305
      %309 = vxpose.xlu0.c.b16.start [1/8] %v305, 128
      %310 = vxpose.xlu0.c.b16.cont [2/8] 0, 128
      %311 = vxpose.xlu0.c.b16.cont [3/8] 0, 128
      %312 = vxpose.xlu0.c.b16.cont [4/8] 0, 128
      %313 = vxpose.xlu0.c.b16.cont [5/8] 0, 128
      %314 = vxpose.xlu0.c.b16.cont [6/8] 0, 128
      %315 = vxpose.xlu0.c.b16.cont [7/8] 0, 128
      %316 = vxpose.xlu0.c.b16.end [8/8] 0, 128
      %v317 = vpop.trf.xlu0
      %v318 = vpop.trf.xlu0
      %v319 = vpop.trf.xlu0
      %v320 = vpop.trf.xlu0
      %v321 = vpop.trf.xlu0
      %v322 = vpop.trf.xlu0
      %v323 = vpop.trf.xlu0
      %v324 = vpop.trf.xlu0
      %325 = vxpose.xlu0.c.b16.start [1/8] %v306, 128
      %326 = vxpose.xlu0.c.b16.cont [2/8] 0, 128
      %327 = vxpose.xlu0.c.b16.cont [3/8] 0, 128
      %328 = vxpose.xlu0.c.b16.cont [4/8] 0, 128
      %329 = vxpose.xlu0.c.b16.cont [5/8] 0, 128
      %330 = vxpose.xlu0.c.b16.cont [6/8] 0, 128
      %331 = vxpose.xlu0.c.b16.cont [7/8] 0, 128
      %332 = vxpose.xlu0.c.b16.end [8/8] 0, 128
      %v333 = vpop.trf.xlu0
      %v334 = vpop.trf.xlu0
      %v335 = vpop.trf.xlu0
      %v336 = vpop.trf.xlu0
      %v337 = vpop.trf.xlu0
      %v338 = vpop.trf.xlu0
      %v339 = vpop.trf.xlu0
      %v340 = vpop.trf.xlu0
      %v343 = vunpack.c.l.s4 1983009808
      %v344 = vunpack.c.0.s8 %v343
      %v345 = vlaneseq
      %v346 = vshrl.u32 %v345, 7
      %v347 = vsub.s32 %v344, %v346
      %v348 = vrot.slane %v297, %v347
      %v349 = vcombine.high %v348, %v348
      %vm350 = vcmask 31744
      %v352 = vsel %vm350, %v317, 0
      %v355 = vsel %vm350, %v318, 0
      %v358 = vsel %vm350, %v319, 0
      %v361 = vsel %vm350, %v320, 0
      %v364 = vsel %vm350, %v321, 0
      %v367 = vsel %vm350, %v322, 0
      %v370 = vsel %vm350, %v323, 0
      %v373 = vsel %vm350, %v324, 0
      %v376 = vsel %vm350, %v333, 0
      %v379 = vsel %vm350, %v334, 0
      %v382 = vsel %vm350, %v335, 0
      %v385 = vsel %vm350, %v336, 0
      %v388 = vsel %vm350, %v337, 0
      %v391 = vsel %vm350, %v338, 0
      %v394 = vsel %vm350, %v339, 0
      %v397 = vsel %vm350, %v340, 0
      %vm399 = vcmask 1041408
      %v401 = vsel %vm399, %v348, 0
      %v404 = vsel %vm399, %v349, 0
      %406 = vmatprep.subr.bf16.mxu0 %v404
      %407 = vmatpush1.bf16.msra.mxu0 %v401
      %408 = vmatprep.subr.bf16.mxu0 0
      %409 = vmatpush1.bf16.msra.mxu0 0
      %410 = vmatprep.subr.bf16.mxu0 0
      %411 = vmatpush1.bf16.msra.mxu0 0
      %412 = vmatprep.subr.bf16.mxu0 0
      %413 = vmatpush1.bf16.msra.mxu0 0
      %414 = vmatprep.subr.bf16.mxu0 0
      %415 = vmatpush1.bf16.msra.mxu0 0
      %416 = vmatprep.subr.bf16.mxu0 0
      %417 = vmatpush1.bf16.msra.mxu0 0
      %418 = vmatprep.subr.bf16.mxu0 0
      %419 = vmatpush1.bf16.msra.mxu0 0
      %420 = vmatprep.subr.bf16.mxu0 0
      %421 = vmatpush1.bf16.msra.mxu0 0
      %422 = vmatprep.subr.bf16.mxu0 0
      %423 = vmatpush1.bf16.msra.mxu0 0
      %424 = vmatprep.subr.bf16.mxu0 0
      %425 = vmatpush1.bf16.msra.mxu0 0
      %426 = vmatprep.subr.bf16.mxu0 0
      %427 = vmatpush1.bf16.msra.mxu0 0
      %428 = vmatprep.subr.bf16.mxu0 0
      %429 = vmatpush1.bf16.msra.mxu0 0
      %430 = vmatprep.subr.bf16.mxu0 0
      %431 = vmatpush1.bf16.msra.mxu0 0
      %432 = vmatprep.subr.bf16.mxu0 0
      %433 = vmatpush1.bf16.msra.mxu0 0
      %434 = vmatprep.subr.bf16.mxu0 0
      %435 = vmatpush1.bf16.msra.mxu0 0
      %436 = vmatprep.subr.bf16.mxu0 0
      %437 = vmatpush1.bf16.msra.mxu0 0
      %438 = vmatprep.mubr.bf16.mxu0 0
      %439 = vmatmul.mubr.bf16.gmra.mrb[0].mxu0 %v352
      %v440 = vpop.f32.mrb[0].mxu0
      %v441 = vadd.f32 0.0, %v440
      %v442 = vpop.f32.mrb[0].mxu0
      %v443 = vadd.f32 0.0, %v442
      %v444 = vpop.f32.mrb[0].mxu0
      %v445 = vadd.f32 0.0, %v444
      %v446 = vpop.f32.mrb[0].mxu0
      %v447 = vadd.f32 0.0, %v446
      %448 = vmatprep.mubr.bf16.mxu0 0
      %449 = vmatmul.mubr.bf16.gmra.mrb[0].mxu0 %v355
      %v450 = vpop.f32.mrb[0].mxu0
      %v451 = vadd.f32 0.0, %v450
      %v452 = vpop.f32.mrb[0].mxu0
      %v453 = vadd.f32 0.0, %v452
      %v454 = vpop.f32.mrb[0].mxu0
      %v455 = vadd.f32 0.0, %v454
      %v456 = vpop.f32.mrb[0].mxu0
      %v457 = vadd.f32 0.0, %v456
      %458 = vmatprep.mubr.bf16.mxu0 0
      %459 = vmatmul.mubr.bf16.gmra.mrb[0].mxu0 %v358
      %v460 = vpop.f32.mrb[0].mxu0
      %v461 = vadd.f32 0.0, %v460
      %v462 = vpop.f32.mrb[0].mxu0
      %v463 = vadd.f32 0.0, %v462
      %v464 = vpop.f32.mrb[0].mxu0
      %v465 = vadd.f32 0.0, %v464
      %v466 = vpop.f32.mrb[0].mxu0
      %v467 = vadd.f32 0.0, %v466
      %468 = vmatprep.mubr.bf16.mxu0 0
      %469 = vmatmul.mubr.bf16.gmra.mrb[0].mxu0 %v361
      %v470 = vpop.f32.mrb[0].mxu0
      %v471 = vadd.f32 0.0, %v470
      %v472 = vpop.f32.mrb[0].mxu0
      %v473 = vadd.f32 0.0, %v472
      %v474 = vpop.f32.mrb[0].mxu0
      %v475 = vadd.f32 0.0, %v474
      %v476 = vpop.f32.mrb[0].mxu0
      %v477 = vadd.f32 0.0, %v476
      %478 = vmatprep.mubr.bf16.mxu0 0
      %479 = vmatmul.mubr.bf16.gmra.mrb[0].mxu0 %v364
      %v480 = vpop.f32.mrb[0].mxu0
      %v481 = vadd.f32 0.0, %v480
      %v482 = vpop.f32.mrb[0].mxu0
      %v483 = vadd.f32 0.0, %v482
      %v484 = vpop.f32.mrb[0].mxu0
      %v485 = vadd.f32 0.0, %v484
      %v486 = vpop.f32.mrb[0].mxu0
      %v487 = vadd.f32 0.0, %v486
      %488 = vmatprep.mubr.bf16.mxu0 0
      %489 = vmatmul.mubr.bf16.gmra.mrb[0].mxu0 %v367
      %v490 = vpop.f32.mrb[0].mxu0
      %v491 = vadd.f32 0.0, %v490
      %v492 = vpop.f32.mrb[0].mxu0
      %v493 = vadd.f32 0.0, %v492
      %v494 = vpop.f32.mrb[0].mxu0
      %v495 = vadd.f32 0.0, %v494
      %v496 = vpop.f32.mrb[0].mxu0
      %v497 = vadd.f32 0.0, %v496
      %498 = vmatprep.mubr.bf16.mxu0 0
      %499 = vmatmul.mubr.bf16.gmra.mrb[0].mxu0 %v370
      %v500 = vpop.f32.mrb[0].mxu0
      %v501 = vadd.f32 0.0, %v500
      %v502 = vpop.f32.mrb[0].mxu0
      %v503 = vadd.f32 0.0, %v502
      %v504 = vpop.f32.mrb[0].mxu0
      %v505 = vadd.f32 0.0, %v504
      %v506 = vpop.f32.mrb[0].mxu0
      %v507 = vadd.f32 0.0, %v506
      %508 = vmatprep.mubr.bf16.mxu0 0
      %509 = vmatmul.mubr.bf16.gmra.mrb[0].mxu0 %v373
      %v510 = vpop.f32.mrb[0].mxu0
      %v511 = vadd.f32 0.0, %v510
      %v512 = vpop.f32.mrb[0].mxu0
      %v513 = vadd.f32 0.0, %v512
      %v514 = vpop.f32.mrb[0].mxu0
      %v515 = vadd.f32 0.0, %v514
      %v516 = vpop.f32.mrb[0].mxu0
      %v517 = vadd.f32 0.0, %v516
      %518 = vmatprep.mubr.bf16.mxu0 0
      %519 = vmatmul.mubr.bf16.gmra.mrb[0].mxu0 %v376
      %v520 = vpop.f32.mrb[0].mxu0
      %v521 = vadd.f32 0.0, %v520
      %v522 = vpop.f32.mrb[0].mxu0
      %v523 = vadd.f32 0.0, %v522
      %v524 = vpop.f32.mrb[0].mxu0
      %v525 = vadd.f32 0.0, %v524
      %v526 = vpop.f32.mrb[0].mxu0
      %v527 = vadd.f32 0.0, %v526
      %528 = vmatprep.mubr.bf16.mxu0 0
      %529 = vmatmul.mubr.bf16.gmra.mrb[0].mxu0 %v379
      %v530 = vpop.f32.mrb[0].mxu0
      %v531 = vadd.f32 0.0, %v530
      %v532 = vpop.f32.mrb[0].mxu0
      %v533 = vadd.f32 0.0, %v532
      %v534 = vpop.f32.mrb[0].mxu0
      %v535 = vadd.f32 0.0, %v534
      %v536 = vpop.f32.mrb[0].mxu0
      %v537 = vadd.f32 0.0, %v536
      %538 = vmatprep.mubr.bf16.mxu0 0
      %539 = vmatmul.mubr.bf16.gmra.mrb[0].mxu0 %v382
      %v540 = vpop.f32.mrb[0].mxu0
      %v541 = vadd.f32 0.0, %v540
      %v542 = vpop.f32.mrb[0].mxu0
      %v543 = vadd.f32 0.0, %v542
      %v544 = vpop.f32.mrb[0].mxu0
      %v545 = vadd.f32 0.0, %v544
      %v546 = vpop.f32.mrb[0].mxu0
      %v547 = vadd.f32 0.0, %v546
      %548 = vmatprep.mubr.bf16.mxu0 0
      %549 = vmatmul.mubr.bf16.gmra.mrb[0].mxu0 %v385
      %v550 = vpop.f32.mrb[0].mxu0
      %v551 = vadd.f32 0.0, %v550
      %v552 = vpop.f32.mrb[0].mxu0
      %v553 = vadd.f32 0.0, %v552
      %v554 = vpop.f32.mrb[0].mxu0
      %v555 = vadd.f32 0.0, %v554
      %v556 = vpop.f32.mrb[0].mxu0
      %v557 = vadd.f32 0.0, %v556
      %558 = vmatprep.mubr.bf16.mxu0 0
      %559 = vmatmul.mubr.bf16.gmra.mrb[0].mxu0 %v388
      %v560 = vpop.f32.mrb[0].mxu0
      %v561 = vadd.f32 0.0, %v560
      %v562 = vpop.f32.mrb[0].mxu0
      %v563 = vadd.f32 0.0, %v562
      %v564 = vpop.f32.mrb[0].mxu0
      %v565 = vadd.f32 0.0, %v564
      %v566 = vpop.f32.mrb[0].mxu0
      %v567 = vadd.f32 0.0, %v566
      %568 = vmatprep.mubr.bf16.mxu0 0
      %569 = vmatmul.mubr.bf16.gmra.mrb[0].mxu0 %v391
      %v570 = vpop.f32.mrb[0].mxu0
      %v571 = vadd.f32 0.0, %v570
      %v572 = vpop.f32.mrb[0].mxu0
      %v573 = vadd.f32 0.0, %v572
      %v574 = vpop.f32.mrb[0].mxu0
      %v575 = vadd.f32 0.0, %v574
      %v576 = vpop.f32.mrb[0].mxu0
      %v577 = vadd.f32 0.0, %v576
      %578 = vmatprep.mubr.bf16.mxu0 0
      %579 = vmatmul.mubr.bf16.gmra.mrb[0].mxu0 %v394
      %v580 = vpop.f32.mrb[0].mxu0
      %v581 = vadd.f32 0.0, %v580
      %v582 = vpop.f32.mrb[0].mxu0
      %v583 = vadd.f32 0.0, %v582
      %v584 = vpop.f32.mrb[0].mxu0
      %v585 = vadd.f32 0.0, %v584
      %v586 = vpop.f32.mrb[0].mxu0
      %v587 = vadd.f32 0.0, %v586
      %588 = vmatprep.mubr.bf16.mxu0 0
      %589 = vmatmul.mubr.bf16.gmra.mrb[0].mxu0 %v397
      %v590 = vpop.f32.mrb[0].mxu0
      %v591 = vadd.f32 0.0, %v590
      %v592 = vpop.f32.mrb[0].mxu0
      %v593 = vadd.f32 0.0, %v592
      %v594 = vpop.f32.mrb[0].mxu0
      %v595 = vadd.f32 0.0, %v594
      %v596 = vpop.f32.mrb[0].mxu0
      %v597 = vadd.f32 0.0, %v596
      %598 = vdwg.mxu0
      %v599 = vld [vmem:[#allocation2] sm:$0xff]
      %v600 = vld [vmem:[#allocation2 + $0x8] sm:$0xff]
      %v601 = vld [vmem:[#allocation2 + $0x10] sm:$0xff]
      %v602 = vld [vmem:[#allocation2 + $0x18] sm:$0xff]
      %v603 = vld [vmem:[#allocation2 + $0x20] sm:$0xff]
      %v604 = vld [vmem:[#allocation2 + $0x28] sm:$0xff]
      %v605 = vld [vmem:[#allocation2 + $0x30] sm:$0xff]
      %v606 = vld [vmem:[#allocation2 + $0x38] sm:$0xff]
      %v607 = vld [vmem:[#allocation2 + $0x40] sm:$0xff]
      %v608 = vld [vmem:[#allocation2 + $0x48] sm:$0xff]
      %v609 = vld [vmem:[#allocation2 + $0x50] sm:$0xff]
      %v610 = vld [vmem:[#allocation2 + $0x58] sm:$0xff]
      %v611 = vld [vmem:[#allocation2 + $0x60] sm:$0xff]
      %v612 = vld [vmem:[#allocation2 + $0x68] sm:$0xff]
      %v613 = vld [vmem:[#allocation2 + $0x70] sm:$0xff]
      %v614 = vld [vmem:[#allocation2 + $0x78] sm:$0xff]
      %v615 = vld [vmem:[#allocation2 + $0x80] sm:$0xff]
      %v616 = vld [vmem:[#allocation2 + $0x88] sm:$0xff]
      %v617 = vld [vmem:[#allocation2 + $0x90] sm:$0xff]
      %v618 = vld [vmem:[#allocation2 + $0x98] sm:$0xff]
      %v619 = vld [vmem:[#allocation2 + $0xa0] sm:$0xff]
      %v620 = vld [vmem:[#allocation2 + $0xa8] sm:$0xff]
      %v621 = vld [vmem:[#allocation2 + $0xb0] sm:$0xff]
      %v622 = vld [vmem:[#allocation2 + $0xb8] sm:$0xff]
      %v623 = vld [vmem:[#allocation2 + $0xc0] sm:$0xff]
      %v624 = vld [vmem:[#allocation2 + $0xc8] sm:$0xff]
      %v625 = vld [vmem:[#allocation2 + $0xd0] sm:$0xff]
      %v626 = vld [vmem:[#allocation2 + $0xd8] sm:$0xff]
      %v627 = vld [vmem:[#allocation2 + $0xe0] sm:$0xff]
      %v628 = vld [vmem:[#allocation2 + $0xe8] sm:$0xff]
      %v629 = vld [vmem:[#allocation2 + $0xf0] sm:$0xff]
      %v630 = vld [vmem:[#allocation2 + $0xf8] sm:$0xff]
      %v631 = vmax.f32 %v441, %v443
      %632 = vmax.xlane.f32.xlu0 %v631
      %v633 = vpop.xlane.xlu0 %632
      %v634 = vmax.f32 %v445, %v447
      %635 = vmax.xlane.f32.xlu0 %v634
      %v636 = vpop.xlane.xlu0 %635
      %v637 = vmax.f32 %v451, %v453
      %638 = vmax.xlane.f32.xlu0 %v637
      %v639 = vpop.xlane.xlu0 %638
      %v640 = vmax.f32 %v455, %v457
      %641 = vmax.xlane.f32.xlu0 %v640
      %v642 = vpop.xlane.xlu0 %641
      %v643 = vmax.f32 %v461, %v463
      %644 = vmax.xlane.f32.xlu0 %v643
      %v645 = vpop.xlane.xlu0 %644
      %v646 = vmax.f32 %v465, %v467
      %647 = vmax.xlane.f32.xlu0 %v646
      %v648 = vpop.xlane.xlu0 %647
      %v649 = vmax.f32 %v471, %v473
      %650 = vmax.xlane.f32.xlu0 %v649
      %v651 = vpop.xlane.xlu0 %650
      %v652 = vmax.f32 %v475, %v477
      %653 = vmax.xlane.f32.xlu0 %v652
      %v654 = vpop.xlane.xlu0 %653
      %v655 = vmax.f32 %v481, %v483
      %656 = vmax.xlane.f32.xlu0 %v655
      %v657 = vpop.xlane.xlu0 %656
      %v658 = vmax.f32 %v485, %v487
      %659 = vmax.xlane.f32.xlu0 %v658
      %v660 = vpop.xlane.xlu0 %659
      %v661 = vmax.f32 %v491, %v493
      %662 = vmax.xlane.f32.xlu0 %v661
      %v663 = vpop.xlane.xlu0 %662
      %v664 = vmax.f32 %v495, %v497
      %665 = vmax.xlane.f32.xlu0 %v664
      %v666 = vpop.xlane.xlu0 %665
      %v667 = vmax.f32 %v501, %v503
      %668 = vmax.xlane.f32.xlu0 %v667
      %v669 = vpop.xlane.xlu0 %668
      %v670 = vmax.f32 %v505, %v507
      %671 = vmax.xlane.f32.xlu0 %v670
      %v672 = vpop.xlane.xlu0 %671
      %v673 = vmax.f32 %v511, %v513
      %674 = vmax.xlane.f32.xlu0 %v673
      %v675 = vpop.xlane.xlu0 %674
      %v676 = vmax.f32 %v515, %v517
      %677 = vmax.xlane.f32.xlu0 %v676
      %v678 = vpop.xlane.xlu0 %677
      %v679 = vmax.f32 %v521, %v523
      %680 = vmax.xlane.f32.xlu0 %v679
      %v681 = vpop.xlane.xlu0 %680
      %v682 = vmax.f32 %v525, %v527
      %683 = vmax.xlane.f32.xlu0 %v682
      %v684 = vpop.xlane.xlu0 %683
      %v685 = vmax.f32 %v531, %v533
      %686 = vmax.xlane.f32.xlu0 %v685
      %v687 = vpop.xlane.xlu0 %686
      %v688 = vmax.f32 %v535, %v537
      %689 = vmax.xlane.f32.xlu0 %v688
      %v690 = vpop.xlane.xlu0 %689
      %v691 = vmax.f32 %v541, %v543
      %692 = vmax.xlane.f32.xlu0 %v691
      %v693 = vpop.xlane.xlu0 %692
      %v694 = vmax.f32 %v545, %v547
      %695 = vmax.xlane.f32.xlu0 %v694
      %v696 = vpop.xlane.xlu0 %695
      %v697 = vmax.f32 %v551, %v553
      %698 = vmax.xlane.f32.xlu0 %v697
      %v699 = vpop.xlane.xlu0 %698
      %v700 = vmax.f32 %v555, %v557
      %701 = vmax.xlane.f32.xlu0 %v700
      %v702 = vpop.xlane.xlu0 %701
      %v703 = vmax.f32 %v561, %v563
      %704 = vmax.xlane.f32.xlu0 %v703
      %v705 = vpop.xlane.xlu0 %704
      %v706 = vmax.f32 %v565, %v567
      %707 = vmax.xlane.f32.xlu0 %v706
      %v708 = vpop.xlane.xlu0 %707
      %v709 = vmax.f32 %v571, %v573
      %710 = vmax.xlane.f32.xlu0 %v709
      %v711 = vpop.xlane.xlu0 %710
      %v712 = vmax.f32 %v575, %v577
      %713 = vmax.xlane.f32.xlu0 %v712
      %v714 = vpop.xlane.xlu0 %713
      %v715 = vmax.f32 %v581, %v583
      %716 = vmax.xlane.f32.xlu0 %v715
      %v717 = vpop.xlane.xlu0 %716
      %v718 = vmax.f32 %v585, %v587
      %719 = vmax.xlane.f32.xlu0 %v718
      %v720 = vpop.xlane.xlu0 %719
      %v721 = vmax.f32 %v591, %v593
      %722 = vmax.xlane.f32.xlu0 %v721
      %v723 = vpop.xlane.xlu0 %722
      %v724 = vmax.f32 %v595, %v597
      %725 = vmax.xlane.f32.xlu0 %v724
      %v726 = vpop.xlane.xlu0 %725
      %v727 = vmax.f32 %v599, %v633
      %v728 = vmax.f32 %v600, %v636
      %v729 = vmax.f32 %v601, %v639
      %v730 = vmax.f32 %v602, %v642
      %v731 = vmax.f32 %v603, %v645
      %v732 = vmax.f32 %v604, %v648
      %v733 = vmax.f32 %v605, %v651
      %v734 = vmax.f32 %v606, %v654
      %v735 = vmax.f32 %v607, %v657
      %v736 = vmax.f32 %v608, %v660
      %v737 = vmax.f32 %v609, %v663
      %v738 = vmax.f32 %v610, %v666
      %v739 = vmax.f32 %v611, %v669
      %v740 = vmax.f32 %v612, %v672
      %v741 = vmax.f32 %v613, %v675
      %v742 = vmax.f32 %v614, %v678
      %v743 = vmax.f32 %v615, %v681
      %v744 = vmax.f32 %v616, %v684
      %v745 = vmax.f32 %v617, %v687
      %v746 = vmax.f32 %v618, %v690
      %v747 = vmax.f32 %v619, %v693
      %v748 = vmax.f32 %v620, %v696
      %v749 = vmax.f32 %v621, %v699
      %v750 = vmax.f32 %v622, %v702
      %v751 = vmax.f32 %v623, %v705
      %v752 = vmax.f32 %v624, %v708
      %v753 = vmax.f32 %v625, %v711
      %v754 = vmax.f32 %v626, %v714
      %v755 = vmax.f32 %v627, %v717
      %v756 = vmax.f32 %v628, %v720
      %v757 = vmax.f32 %v629, %v723
      %v758 = vmax.f32 %v630, %v726
      %v759 = vsub.f32 %v599, %v727
      %v760 = vsub.f32 %v600, %v728
      %v761 = vsub.f32 %v601, %v729
      %v762 = vsub.f32 %v602, %v730
      %v763 = vsub.f32 %v603, %v731
      %v764 = vsub.f32 %v604, %v732
      %v765 = vsub.f32 %v605, %v733
      %v766 = vsub.f32 %v606, %v734
      %v767 = vsub.f32 %v607, %v735
      %v768 = vsub.f32 %v608, %v736
      %v769 = vsub.f32 %v609, %v737
      %v770 = vsub.f32 %v610, %v738
      %v771 = vsub.f32 %v611, %v739
      %v772 = vsub.f32 %v612, %v740
      %v773 = vsub.f32 %v613, %v741
      %v774 = vsub.f32 %v614, %v742
      %v775 = vsub.f32 %v615, %v743
      %v776 = vsub.f32 %v616, %v744
      %v777 = vsub.f32 %v617, %v745
      %v778 = vsub.f32 %v618, %v746
      %v779 = vsub.f32 %v619, %v747
      %v780 = vsub.f32 %v620, %v748
      %v781 = vsub.f32 %v621, %v749
      %v782 = vsub.f32 %v622, %v750
      %v783 = vsub.f32 %v623, %v751
      %v784 = vsub.f32 %v624, %v752
      %v785 = vsub.f32 %v625, %v753
      %v786 = vsub.f32 %v626, %v754
      %v787 = vsub.f32 %v627, %v755
      %v788 = vsub.f32 %v628, %v756
      %v789 = vsub.f32 %v629, %v757
      %v790 = vsub.f32 %v630, %v758
      %v791 = vmul.f32 %v759, 1.442695
      %v792 = vpow.pop %v791
      %v793 = vmul.f32 %v760, 1.442695
      %v794 = vpow.pop %v793
      %v795 = vmul.f32 %v761, 1.442695
      %v796 = vpow.pop %v795
      %v797 = vmul.f32 %v762, 1.442695
      %v798 = vpow.pop %v797
      %v799 = vmul.f32 %v763, 1.442695
      %v800 = vpow.pop %v799
      %v801 = vmul.f32 %v764, 1.442695
      %v802 = vpow.pop %v801
      %v803 = vmul.f32 %v765, 1.442695
      %v804 = vpow.pop %v803
      %v805 = vmul.f32 %v766, 1.442695
      %v806 = vpow.pop %v805
      %v807 = vmul.f32 %v767, 1.442695
      %v808 = vpow.pop %v807
      %v809 = vmul.f32 %v768, 1.442695
      %v810 = vpow.pop %v809
      %v811 = vmul.f32 %v769, 1.442695
      %v812 = vpow.pop %v811
      %v813 = vmul.f32 %v770, 1.442695
      %v814 = vpow.pop %v813
      %v815 = vmul.f32 %v771, 1.442695
      %v816 = vpow.pop %v815
      %v817 = vmul.f32 %v772, 1.442695
      %v818 = vpow.pop %v817
      %v819 = vmul.f32 %v773, 1.442695
      %v820 = vpow.pop %v819
      %v821 = vmul.f32 %v774, 1.442695
      %v822 = vpow.pop %v821
      %v823 = vmul.f32 %v775, 1.442695
      %v824 = vpow.pop %v823
      %v825 = vmul.f32 %v776, 1.442695
      %v826 = vpow.pop %v825
      %v827 = vmul.f32 %v777, 1.442695
      %v828 = vpow.pop %v827
      %v829 = vmul.f32 %v778, 1.442695
      %v830 = vpow.pop %v829
      %v831 = vmul.f32 %v779, 1.442695
      %v832 = vpow.pop %v831
      %v833 = vmul.f32 %v780, 1.442695
      %v834 = vpow.pop %v833
      %v835 = vmul.f32 %v781, 1.442695
      %v836 = vpow.pop %v835
      %v837 = vmul.f32 %v782, 1.442695
      %v838 = vpow.pop %v837
      %v839 = vmul.f32 %v783, 1.442695
      %v840 = vpow.pop %v839
      %v841 = vmul.f32 %v784, 1.442695
      %v842 = vpow.pop %v841
      %v843 = vmul.f32 %v785, 1.442695
      %v844 = vpow.pop %v843
      %v845 = vmul.f32 %v786, 1.442695
      %v846 = vpow.pop %v845
      %v847 = vmul.f32 %v787, 1.442695
      %v848 = vpow.pop %v847
      %v849 = vmul.f32 %v788, 1.442695
      %v850 = vpow.pop %v849
      %v851 = vmul.f32 %v789, 1.442695
      %v852 = vpow.pop %v851
      %v853 = vmul.f32 %v790, 1.442695
      %v854 = vpow.pop %v853
      %856 = vset.pattern.permute.xlu0 0
      %857 = vperm.xlu0 %856, %v727
      %v858 = vpop.permute.xlu0 %857
      %861 = vset.pattern.permute.xlu0 0
      %862 = vperm.xlu0 %861, %v728
      %v863 = vpop.permute.xlu0 %862
      %866 = vset.pattern.permute.xlu0 0
      %867 = vperm.xlu0 %866, %v729
      %v868 = vpop.permute.xlu0 %867
      %871 = vset.pattern.permute.xlu0 0
      %872 = vperm.xlu0 %871, %v730
      %v873 = vpop.permute.xlu0 %872
      %876 = vset.pattern.permute.xlu0 0
      %877 = vperm.xlu0 %876, %v731
      %v878 = vpop.permute.xlu0 %877
      %881 = vset.pattern.permute.xlu0 0
      %882 = vperm.xlu0 %881, %v732
      %v883 = vpop.permute.xlu0 %882
      %886 = vset.pattern.permute.xlu0 0
      %887 = vperm.xlu0 %886, %v733
      %v888 = vpop.permute.xlu0 %887
      %891 = vset.pattern.permute.xlu0 0
      %892 = vperm.xlu0 %891, %v734
      %v893 = vpop.permute.xlu0 %892
      %896 = vset.pattern.permute.xlu0 0
      %897 = vperm.xlu0 %896, %v735
      %v898 = vpop.permute.xlu0 %897
      %901 = vset.pattern.permute.xlu0 0
      %902 = vperm.xlu0 %901, %v736
      %v903 = vpop.permute.xlu0 %902
      %906 = vset.pattern.permute.xlu0 0
      %907 = vperm.xlu0 %906, %v737
      %v908 = vpop.permute.xlu0 %907
      %911 = vset.pattern.permute.xlu0 0
      %912 = vperm.xlu0 %911, %v738
      %v913 = vpop.permute.xlu0 %912
      %916 = vset.pattern.permute.xlu0 0
      %917 = vperm.xlu0 %916, %v739
      %v918 = vpop.permute.xlu0 %917
      %921 = vset.pattern.permute.xlu0 0
      %922 = vperm.xlu0 %921, %v740
      %v923 = vpop.permute.xlu0 %922
      %926 = vset.pattern.permute.xlu0 0
      %927 = vperm.xlu0 %926, %v741
      %v928 = vpop.permute.xlu0 %927
      %931 = vset.pattern.permute.xlu0 0
      %932 = vperm.xlu0 %931, %v742
      %v933 = vpop.permute.xlu0 %932
      %936 = vset.pattern.permute.xlu0 0
      %937 = vperm.xlu0 %936, %v743
      %v938 = vpop.permute.xlu0 %937
      %941 = vset.pattern.permute.xlu0 0
      %942 = vperm.xlu0 %941, %v744
      %v943 = vpop.permute.xlu0 %942
      %946 = vset.pattern.permute.xlu0 0
      %947 = vperm.xlu0 %946, %v745
      %v948 = vpop.permute.xlu0 %947
      %951 = vset.pattern.permute.xlu0 0
      %952 = vperm.xlu0 %951, %v746
      %v953 = vpop.permute.xlu0 %952
      %956 = vset.pattern.permute.xlu0 0
      %957 = vperm.xlu0 %956, %v747
      %v958 = vpop.permute.xlu0 %957
      %961 = vset.pattern.permute.xlu0 0
      %962 = vperm.xlu0 %961, %v748
      %v963 = vpop.permute.xlu0 %962
      %966 = vset.pattern.permute.xlu0 0
      %967 = vperm.xlu0 %966, %v749
      %v968 = vpop.permute.xlu0 %967
      %971 = vset.pattern.permute.xlu0 0
      %972 = vperm.xlu0 %971, %v750
      %v973 = vpop.permute.xlu0 %972
      %976 = vset.pattern.permute.xlu0 0
      %977 = vperm.xlu0 %976, %v751
      %v978 = vpop.permute.xlu0 %977
      %981 = vset.pattern.permute.xlu0 0
      %982 = vperm.xlu0 %981, %v752
      %v983 = vpop.permute.xlu0 %982
      %986 = vset.pattern.permute.xlu0 0
      %987 = vperm.xlu0 %986, %v753
      %v988 = vpop.permute.xlu0 %987
      %991 = vset.pattern.permute.xlu0 0
      %992 = vperm.xlu0 %991, %v754
      %v993 = vpop.permute.xlu0 %992
      %996 = vset.pattern.permute.xlu0 0
      %997 = vperm.xlu0 %996, %v755
      %v998 = vpop.permute.xlu0 %997
      %1001 = vset.pattern.permute.xlu0 0
      %1002 = vperm.xlu0 %1001, %v756
      %v1003 = vpop.permute.xlu0 %1002
      %1006 = vset.pattern.permute.xlu0 0
      %1007 = vperm.xlu0 %1006, %v757
      %v1008 = vpop.permute.xlu0 %1007
      %1011 = vset.pattern.permute.xlu0 0
      %1012 = vperm.xlu0 %1011, %v758
      %v1013 = vpop.permute.xlu0 %1012
      %v1015 = vsub.f32 %v441, %v858
      %v1016 = vsub.f32 %v443, %v858
      %v1017 = vsub.f32 %v445, %v863
      %v1018 = vsub.f32 %v447, %v863
      %v1019 = vsub.f32 %v451, %v868
      %v1020 = vsub.f32 %v453, %v868
      %v1021 = vsub.f32 %v455, %v873
      %v1022 = vsub.f32 %v457, %v873
      %v1023 = vsub.f32 %v461, %v878
      %v1024 = vsub.f32 %v463, %v878
      %v1025 = vsub.f32 %v465, %v883
      %v1026 = vsub.f32 %v467, %v883
      %v1027 = vsub.f32 %v471, %v888
      %v1028 = vsub.f32 %v473, %v888
      %v1029 = vsub.f32 %v475, %v893
      %v1030 = vsub.f32 %v477, %v893
      %v1031 = vsub.f32 %v481, %v898
      %v1032 = vsub.f32 %v483, %v898
      %v1033 = vsub.f32 %v485, %v903
      %v1034 = vsub.f32 %v487, %v903
      %v1035 = vsub.f32 %v491, %v908
      %v1036 = vsub.f32 %v493, %v908
      %v1037 = vsub.f32 %v495, %v913
      %v1038 = vsub.f32 %v497, %v913
      %v1039 = vsub.f32 %v501, %v918
      %v1040 = vsub.f32 %v503, %v918
      %v1041 = vsub.f32 %v505, %v923
      %v1042 = vsub.f32 %v507, %v923
      %v1043 = vsub.f32 %v511, %v928
      %v1044 = vsub.f32 %v513, %v928
      %v1045 = vsub.f32 %v515, %v933
      %v1046 = vsub.f32 %v517, %v933
      %v1047 = vsub.f32 %v521, %v938
      %v1048 = vsub.f32 %v523, %v938
      %v1049 = vsub.f32 %v525, %v943
      %v1050 = vsub.f32 %v527, %v943
      %v1051 = vsub.f32 %v531, %v948
      %v1052 = vsub.f32 %v533, %v948
      %v1053 = vsub.f32 %v535, %v953
      %v1054 = vsub.f32 %v537, %v953
      %v1055 = vsub.f32 %v541, %v958
      %v1056 = vsub.f32 %v543, %v958
      %v1057 = vsub.f32 %v545, %v963
      %v1058 = vsub.f32 %v547, %v963
      %v1059 = vsub.f32 %v551, %v968
      %v1060 = vsub.f32 %v553, %v968
      %v1061 = vsub.f32 %v555, %v973
      %v1062 = vsub.f32 %v557, %v973
      %v1063 = vsub.f32 %v561, %v978
      %v1064 = vsub.f32 %v563, %v978
      %v1065 = vsub.f32 %v565, %v983
      %v1066 = vsub.f32 %v567, %v983
      %v1067 = vsub.f32 %v571, %v988
      %v1068 = vsub.f32 %v573, %v988
      %v1069 = vsub.f32 %v575, %v993
      %v1070 = vsub.f32 %v577, %v993
      %v1071 = vsub.f32 %v581, %v998
      %v1072 = vsub.f32 %v583, %v998
      %v1073 = vsub.f32 %v585, %v1003
      %v1074 = vsub.f32 %v587, %v1003
      %v1075 = vsub.f32 %v591, %v1008
      %v1076 = vsub.f32 %v593, %v1008
      %v1077 = vsub.f32 %v595, %v1013
      %v1078 = vsub.f32 %v597, %v1013
      %v1079 = vpack.c.bf16 %v1017, %v1015
      %v1080 = vpack.c.bf16 %v1018, %v1016
      %v1081 = vpack.c.bf16 %v1021, %v1019
      %v1082 = vpack.c.bf16 %v1022, %v1020
      %v1083 = vpack.c.bf16 %v1025, %v1023
      %v1084 = vpack.c.bf16 %v1026, %v1024
      %v1085 = vpack.c.bf16 %v1029, %v1027
      %v1086 = vpack.c.bf16 %v1030, %v1028
      %v1087 = vpack.c.bf16 %v1033, %v1031
      %v1088 = vpack.c.bf16 %v1034, %v1032
      %v1089 = vpack.c.bf16 %v1037, %v1035
      %v1090 = vpack.c.bf16 %v1038, %v1036
      %v1091 = vpack.c.bf16 %v1041, %v1039
      %v1092 = vpack.c.bf16 %v1042, %v1040
      %v1093 = vpack.c.bf16 %v1045, %v1043
      %v1094 = vpack.c.bf16 %v1046, %v1044
      %v1095 = vpack.c.bf16 %v1049, %v1047
      %v1096 = vpack.c.bf16 %v1050, %v1048
      %v1097 = vpack.c.bf16 %v1053, %v1051
      %v1098 = vpack.c.bf16 %v1054, %v1052
      %v1099 = vpack.c.bf16 %v1057, %v1055
      %v1100 = vpack.c.bf16 %v1058, %v1056
      %v1101 = vpack.c.bf16 %v1061, %v1059
      %v1102 = vpack.c.bf16 %v1062, %v1060
      %v1103 = vpack.c.bf16 %v1065, %v1063
      %v1104 = vpack.c.bf16 %v1066, %v1064
      %v1105 = vpack.c.bf16 %v1069, %v1067
      %v1106 = vpack.c.bf16 %v1070, %v1068
      %v1107 = vpack.c.bf16 %v1073, %v1071
      %v1108 = vpack.c.bf16 %v1074, %v1072
      %v1109 = vpack.c.bf16 %v1077, %v1075
      %v1110 = vpack.c.bf16 %v1078, %v1076
      %v1112 = vmul.bf16 %v1079, 1069105081
      %v1113 = vpow.bf16.pop %v1112
      %v1115 = vmul.bf16 %v1080, 1069105081
      %v1116 = vpow.bf16.pop %v1115
      %v1118 = vmul.bf16 %v1081, 1069105081
      %v1119 = vpow.bf16.pop %v1118
      %v1121 = vmul.bf16 %v1082, 1069105081
      %v1122 = vpow.bf16.pop %v1121
      %v1124 = vmul.bf16 %v1083, 1069105081
      %v1125 = vpow.bf16.pop %v1124
      %v1127 = vmul.bf16 %v1084, 1069105081
      %v1128 = vpow.bf16.pop %v1127
      %v1130 = vmul.bf16 %v1085, 1069105081
      %v1131 = vpow.bf16.pop %v1130
      %v1133 = vmul.bf16 %v1086, 1069105081
      %v1134 = vpow.bf16.pop %v1133
      %v1136 = vmul.bf16 %v1087, 1069105081
      %v1137 = vpow.bf16.pop %v1136
      %v1139 = vmul.bf16 %v1088, 1069105081
      %v1140 = vpow.bf16.pop %v1139
      %v1142 = vmul.bf16 %v1089, 1069105081
      %v1143 = vpow.bf16.pop %v1142
      %v1145 = vmul.bf16 %v1090, 1069105081
      %v1146 = vpow.bf16.pop %v1145
      %v1148 = vmul.bf16 %v1091, 1069105081
      %v1149 = vpow.bf16.pop %v1148
      %v1151 = vmul.bf16 %v1092, 1069105081
      %v1152 = vpow.bf16.pop %v1151
      %v1154 = vmul.bf16 %v1093, 1069105081
      %v1155 = vpow.bf16.pop %v1154
      %v1157 = vmul.bf16 %v1094, 1069105081
      %v1158 = vpow.bf16.pop %v1157
      %v1160 = vmul.bf16 %v1095, 1069105081
      %v1161 = vpow.bf16.pop %v1160
      %v1163 = vmul.bf16 %v1096, 1069105081
      %v1164 = vpow.bf16.pop %v1163
      %v1166 = vmul.bf16 %v1097, 1069105081
      %v1167 = vpow.bf16.pop %v1166
      %v1169 = vmul.bf16 %v1098, 1069105081
      %v1170 = vpow.bf16.pop %v1169
      %v1172 = vmul.bf16 %v1099, 1069105081
      %v1173 = vpow.bf16.pop %v1172
      %v1175 = vmul.bf16 %v1100, 1069105081
      %v1176 = vpow.bf16.pop %v1175
      %v1178 = vmul.bf16 %v1101, 1069105081
      %v1179 = vpow.bf16.pop %v1178
      %v1181 = vmul.bf16 %v1102, 1069105081
      %v1182 = vpow.bf16.pop %v1181
      %v1184 = vmul.bf16 %v1103, 1069105081
      %v1185 = vpow.bf16.pop %v1184
      %v1187 = vmul.bf16 %v1104, 1069105081
      %v1188 = vpow.bf16.pop %v1187
      %v1190 = vmul.bf16 %v1105, 1069105081
      %v1191 = vpow.bf16.pop %v1190
      %v1193 = vmul.bf16 %v1106, 1069105081
      %v1194 = vpow.bf16.pop %v1193
      %v1196 = vmul.bf16 %v1107, 1069105081
      %v1197 = vpow.bf16.pop %v1196
      %v1199 = vmul.bf16 %v1108, 1069105081
      %v1200 = vpow.bf16.pop %v1199
      %v1202 = vmul.bf16 %v1109, 1069105081
      %v1203 = vpow.bf16.pop %v1202
      %v1205 = vmul.bf16 %v1110, 1069105081
      %v1206 = vpow.bf16.pop %v1205
      %v1207 = vld [vmem:[#allocation3] sm:$0xff]
      %v1208 = vld [vmem:[#allocation3 + $0x8] sm:$0xff]
      %v1209 = vld [vmem:[#allocation3 + $0x10] sm:$0xff]
      %v1210 = vld [vmem:[#allocation3 + $0x18] sm:$0xff]
      %v1211 = vld [vmem:[#allocation3 + $0x20] sm:$0xff]
      %v1212 = vld [vmem:[#allocation3 + $0x28] sm:$0xff]
      %v1213 = vld [vmem:[#allocation3 + $0x30] sm:$0xff]
      %v1214 = vld [vmem:[#allocation3 + $0x38] sm:$0xff]
      %v1215 = vld [vmem:[#allocation3 + $0x40] sm:$0xff]
      %v1216 = vld [vmem:[#allocation3 + $0x48] sm:$0xff]
      %v1217 = vld [vmem:[#allocation3 + $0x50] sm:$0xff]
      %v1218 = vld [vmem:[#allocation3 + $0x58] sm:$0xff]
      %v1219 = vld [vmem:[#allocation3 + $0x60] sm:$0xff]
      %v1220 = vld [vmem:[#allocation3 + $0x68] sm:$0xff]
      %v1221 = vld [vmem:[#allocation3 + $0x70] sm:$0xff]
      %v1222 = vld [vmem:[#allocation3 + $0x78] sm:$0xff]
      %v1223 = vld [vmem:[#allocation3 + $0x80] sm:$0xff]
      %v1224 = vld [vmem:[#allocation3 + $0x88] sm:$0xff]
      %v1225 = vld [vmem:[#allocation3 + $0x90] sm:$0xff]
      %v1226 = vld [vmem:[#allocation3 + $0x98] sm:$0xff]
      %v1227 = vld [vmem:[#allocation3 + $0xa0] sm:$0xff]
      %v1228 = vld [vmem:[#allocation3 + $0xa8] sm:$0xff]
      %v1229 = vld [vmem:[#allocation3 + $0xb0] sm:$0xff]
      %v1230 = vld [vmem:[#allocation3 + $0xb8] sm:$0xff]
      %v1231 = vld [vmem:[#allocation3 + $0xc0] sm:$0xff]
      %v1232 = vld [vmem:[#allocation3 + $0xc8] sm:$0xff]
      %v1233 = vld [vmem:[#allocation3 + $0xd0] sm:$0xff]
      %v1234 = vld [vmem:[#allocation3 + $0xd8] sm:$0xff]
      %v1235 = vld [vmem:[#allocation3 + $0xe0] sm:$0xff]
      %v1236 = vld [vmem:[#allocation3 + $0xe8] sm:$0xff]
      %v1237 = vld [vmem:[#allocation3 + $0xf0] sm:$0xff]
      %v1238 = vld [vmem:[#allocation3 + $0xf8] sm:$0xff]
      %v1239 = vmul.f32 %v792, %v1207
      %v1240 = vmul.f32 %v794, %v1208
      %v1241 = vmul.f32 %v796, %v1209
      %v1242 = vmul.f32 %v798, %v1210
      %v1243 = vmul.f32 %v800, %v1211
      %v1244 = vmul.f32 %v802, %v1212
      %v1245 = vmul.f32 %v804, %v1213
      %v1246 = vmul.f32 %v806, %v1214
      %v1247 = vmul.f32 %v808, %v1215
      %v1248 = vmul.f32 %v810, %v1216
      %v1249 = vmul.f32 %v812, %v1217
      %v1250 = vmul.f32 %v814, %v1218
      %v1251 = vmul.f32 %v816, %v1219
      %v1252 = vmul.f32 %v818, %v1220
      %v1253 = vmul.f32 %v820, %v1221
      %v1254 = vmul.f32 %v822, %v1222
      %v1255 = vmul.f32 %v824, %v1223
      %v1256 = vmul.f32 %v826, %v1224
      %v1257 = vmul.f32 %v828, %v1225
      %v1258 = vmul.f32 %v830, %v1226
      %v1259 = vmul.f32 %v832, %v1227
      %v1260 = vmul.f32 %v834, %v1228
      %v1261 = vmul.f32 %v836, %v1229
      %v1262 = vmul.f32 %v838, %v1230
      %v1263 = vmul.f32 %v840, %v1231
      %v1264 = vmul.f32 %v842, %v1232
      %v1265 = vmul.f32 %v844, %v1233
      %v1266 = vmul.f32 %v846, %v1234
      %v1267 = vmul.f32 %v848, %v1235
      %v1268 = vmul.f32 %v850, %v1236
      %v1269 = vmul.f32 %v852, %v1237
      %v1270 = vmul.f32 %v854, %v1238
      %v1271 = vunpack.c.l.bf16 %v1113
      %v1272 = vunpack.c.l.bf16 %v1116
      %v1273 = vunpack.c.h.bf16 %v1113
      %v1274 = vunpack.c.h.bf16 %v1116
      %v1275 = vunpack.c.l.bf16 %v1119
      %v1276 = vunpack.c.l.bf16 %v1122
      %v1277 = vunpack.c.h.bf16 %v1119
      %v1278 = vunpack.c.h.bf16 %v1122
      %v1279 = vunpack.c.l.bf16 %v1125
      %v1280 = vunpack.c.l.bf16 %v1128
      %v1281 = vunpack.c.h.bf16 %v1125
      %v1282 = vunpack.c.h.bf16 %v1128
      %v1283 = vunpack.c.l.bf16 %v1131
      %v1284 = vunpack.c.l.bf16 %v1134
      %v1285 = vunpack.c.h.bf16 %v1131
      %v1286 = vunpack.c.h.bf16 %v1134
      %v1287 = vunpack.c.l.bf16 %v1137
      %v1288 = vunpack.c.l.bf16 %v1140
      %v1289 = vunpack.c.h.bf16 %v1137
      %v1290 = vunpack.c.h.bf16 %v1140
      %v1291 = vunpack.c.l.bf16 %v1143
      %v1292 = vunpack.c.l.bf16 %v1146
      %v1293 = vunpack.c.h.bf16 %v1143
      %v1294 = vunpack.c.h.bf16 %v1146
      %v1295 = vunpack.c.l.bf16 %v1149
      %v1296 = vunpack.c.l.bf16 %v1152
      %v1297 = vunpack.c.h.bf16 %v1149
      %v1298 = vunpack.c.h.bf16 %v1152
      %v1299 = vunpack.c.l.bf16 %v1155
      %v1300 = vunpack.c.l.bf16 %v1158
      %v1301 = vunpack.c.h.bf16 %v1155
      %v1302 = vunpack.c.h.bf16 %v1158
      %v1303 = vunpack.c.l.bf16 %v1161
      %v1304 = vunpack.c.l.bf16 %v1164
      %v1305 = vunpack.c.h.bf16 %v1161
      %v1306 = vunpack.c.h.bf16 %v1164
      %v1307 = vunpack.c.l.bf16 %v1167
      %v1308 = vunpack.c.l.bf16 %v1170
      %v1309 = vunpack.c.h.bf16 %v1167
      %v1310 = vunpack.c.h.bf16 %v1170
      %v1311 = vunpack.c.l.bf16 %v1173
      %v1312 = vunpack.c.l.bf16 %v1176
      %v1313 = vunpack.c.h.bf16 %v1173
      %v1314 = vunpack.c.h.bf16 %v1176
      %v1315 = vunpack.c.l.bf16 %v1179
      %v1316 = vunpack.c.l.bf16 %v1182
      %v1317 = vunpack.c.h.bf16 %v1179
      %v1318 = vunpack.c.h.bf16 %v1182
      %v1319 = vunpack.c.l.bf16 %v1185
      %v1320 = vunpack.c.l.bf16 %v1188
      %v1321 = vunpack.c.h.bf16 %v1185
      %v1322 = vunpack.c.h.bf16 %v1188
      %v1323 = vunpack.c.l.bf16 %v1191
      %v1324 = vunpack.c.l.bf16 %v1194
      %v1325 = vunpack.c.h.bf16 %v1191
      %v1326 = vunpack.c.h.bf16 %v1194
      %v1327 = vunpack.c.l.bf16 %v1197
      %v1328 = vunpack.c.l.bf16 %v1200
      %v1329 = vunpack.c.h.bf16 %v1197
      %v1330 = vunpack.c.h.bf16 %v1200
      %v1331 = vunpack.c.l.bf16 %v1203
      %v1332 = vunpack.c.l.bf16 %v1206
      %v1333 = vunpack.c.h.bf16 %v1203
      %v1334 = vunpack.c.h.bf16 %v1206
      %v1335 = vadd.f32 %v1271, %v1272
      %1336 = vadd.xlane.f32.xlu0 %v1335
      %v1337 = vpop.xlane.xlu0 %1336
      %v1338 = vadd.f32 %v1273, %v1274
      %1339 = vadd.xlane.f32.xlu0 %v1338
      %v1340 = vpop.xlane.xlu0 %1339
      %v1341 = vadd.f32 %v1275, %v1276
      %1342 = vadd.xlane.f32.xlu0 %v1341
      %v1343 = vpop.xlane.xlu0 %1342
      %v1344 = vadd.f32 %v1277, %v1278
      %1345 = vadd.xlane.f32.xlu0 %v1344
      %v1346 = vpop.xlane.xlu0 %1345
      %v1347 = vadd.f32 %v1279, %v1280
      %1348 = vadd.xlane.f32.xlu0 %v1347
      %v1349 = vpop.xlane.xlu0 %1348
      %v1350 = vadd.f32 %v1281, %v1282
      %1351 = vadd.xlane.f32.xlu0 %v1350
      %v1352 = vpop.xlane.xlu0 %1351
      %v1353 = vadd.f32 %v1283, %v1284
      %1354 = vadd.xlane.f32.xlu0 %v1353
      %v1355 = vpop.xlane.xlu0 %1354
      %v1356 = vadd.f32 %v1285, %v1286
      %1357 = vadd.xlane.f32.xlu0 %v1356
      %v1358 = vpop.xlane.xlu0 %1357
      %v1359 = vadd.f32 %v1287, %v1288
      %1360 = vadd.xlane.f32.xlu0 %v1359
      %v1361 = vpop.xlane.xlu0 %1360
      %v1362 = vadd.f32 %v1289, %v1290
      %1363 = vadd.xlane.f32.xlu0 %v1362
      %v1364 = vpop.xlane.xlu0 %1363
      %v1365 = vadd.f32 %v1291, %v1292
      %1366 = vadd.xlane.f32.xlu0 %v1365
      %v1367 = vpop.xlane.xlu0 %1366
      %v1368 = vadd.f32 %v1293, %v1294
      %1369 = vadd.xlane.f32.xlu0 %v1368
      %v1370 = vpop.xlane.xlu0 %1369
      %v1371 = vadd.f32 %v1295, %v1296
      %1372 = vadd.xlane.f32.xlu0 %v1371
      %v1373 = vpop.xlane.xlu0 %1372
      %v1374 = vadd.f32 %v1297, %v1298
      %1375 = vadd.xlane.f32.xlu0 %v1374
      %v1376 = vpop.xlane.xlu0 %1375
      %v1377 = vadd.f32 %v1299, %v1300
      %1378 = vadd.xlane.f32.xlu0 %v1377
      %v1379 = vpop.xlane.xlu0 %1378
      %v1380 = vadd.f32 %v1301, %v1302
      %1381 = vadd.xlane.f32.xlu0 %v1380
      %v1382 = vpop.xlane.xlu0 %1381
      %v1383 = vadd.f32 %v1303, %v1304
      %1384 = vadd.xlane.f32.xlu0 %v1383
      %v1385 = vpop.xlane.xlu0 %1384
      %v1386 = vadd.f32 %v1305, %v1306
      %1387 = vadd.xlane.f32.xlu0 %v1386
      %v1388 = vpop.xlane.xlu0 %1387
      %v1389 = vadd.f32 %v1307, %v1308
      %1390 = vadd.xlane.f32.xlu0 %v1389
      %v1391 = vpop.xlane.xlu0 %1390
      %v1392 = vadd.f32 %v1309, %v1310
      %1393 = vadd.xlane.f32.xlu0 %v1392
      %v1394 = vpop.xlane.xlu0 %1393
      %v1395 = vadd.f32 %v1311, %v1312
      %1396 = vadd.xlane.f32.xlu0 %v1395
      %v1397 = vpop.xlane.xlu0 %1396
      %v1398 = vadd.f32 %v1313, %v1314
      %1399 = vadd.xlane.f32.xlu0 %v1398
      %v1400 = vpop.xlane.xlu0 %1399
      %v1401 = vadd.f32 %v1315, %v1316
      %1402 = vadd.xlane.f32.xlu0 %v1401
      %v1403 = vpop.xlane.xlu0 %1402
      %v1404 = vadd.f32 %v1317, %v1318
      %1405 = vadd.xlane.f32.xlu0 %v1404
      %v1406 = vpop.xlane.xlu0 %1405
      %v1407 = vadd.f32 %v1319, %v1320
      %1408 = vadd.xlane.f32.xlu0 %v1407
      %v1409 = vpop.xlane.xlu0 %1408
      %v1410 = vadd.f32 %v1321, %v1322
      %1411 = vadd.xlane.f32.xlu0 %v1410
      %v1412 = vpop.xlane.xlu0 %1411
      %v1413 = vadd.f32 %v1323, %v1324
      %1414 = vadd.xlane.f32.xlu0 %v1413
      %v1415 = vpop.xlane.xlu0 %1414
      %v1416 = vadd.f32 %v1325, %v1326
      %1417 = vadd.xlane.f32.xlu0 %v1416
      %v1418 = vpop.xlane.xlu0 %1417
      %v1419 = vadd.f32 %v1327, %v1328
      %1420 = vadd.xlane.f32.xlu0 %v1419
      %v1421 = vpop.xlane.xlu0 %1420
      %v1422 = vadd.f32 %v1329, %v1330
      %1423 = vadd.xlane.f32.xlu0 %v1422
      %v1424 = vpop.xlane.xlu0 %1423
      %v1425 = vadd.f32 %v1331, %v1332
      %1426 = vadd.xlane.f32.xlu0 %v1425
      %v1427 = vpop.xlane.xlu0 %1426
      %v1428 = vadd.f32 %v1333, %v1334
      %1429 = vadd.xlane.f32.xlu0 %v1428
      %v1430 = vpop.xlane.xlu0 %1429
      %v1431 = vadd.f32 %v1239, %v1337
      %v1432 = vadd.f32 %v1240, %v1340
      %v1433 = vadd.f32 %v1241, %v1343
      %v1434 = vadd.f32 %v1242, %v1346
      %v1435 = vadd.f32 %v1243, %v1349
      %v1436 = vadd.f32 %v1244, %v1352
      %v1437 = vadd.f32 %v1245, %v1355
      %v1438 = vadd.f32 %v1246, %v1358
      %v1439 = vadd.f32 %v1247, %v1361
      %v1440 = vadd.f32 %v1248, %v1364
      %v1441 = vadd.f32 %v1249, %v1367
      %v1442 = vadd.f32 %v1250, %v1370
      %v1443 = vadd.f32 %v1251, %v1373
      %v1444 = vadd.f32 %v1252, %v1376
      %v1445 = vadd.f32 %v1253, %v1379
      %v1446 = vadd.f32 %v1254, %v1382
      %v1447 = vadd.f32 %v1255, %v1385
      %v1448 = vadd.f32 %v1256, %v1388
      %v1449 = vadd.f32 %v1257, %v1391
      %v1450 = vadd.f32 %v1258, %v1394
      %v1451 = vadd.f32 %v1259, %v1397
      %v1452 = vadd.f32 %v1260, %v1400
      %v1453 = vadd.f32 %v1261, %v1403
      %v1454 = vadd.f32 %v1262, %v1406
      %v1455 = vadd.f32 %v1263, %v1409
      %v1456 = vadd.f32 %v1264, %v1412
      %v1457 = vadd.f32 %v1265, %v1415
      %v1458 = vadd.f32 %v1266, %v1418
      %v1459 = vadd.f32 %v1267, %v1421
      %v1460 = vadd.f32 %v1268, %v1424
      %v1461 = vadd.f32 %v1269, %v1427
      %v1462 = vadd.f32 %v1270, %v1430
      %vm1463 = vcmask 7168
      %1464 = vst.msk [vmem:[#allocation3] sm:$0xff] %vm1463, %v1431
      %1465 = vst.msk [vmem:[#allocation3 + $0x8] sm:$0xff] %vm1463, %v1432
      %1466 = vst.msk [vmem:[#allocation3 + $0x10] sm:$0xff] %vm1463, %v1433
      %1467 = vst.msk [vmem:[#allocation3 + $0x18] sm:$0xff] %vm1463, %v1434
      %1468 = vst.msk [vmem:[#allocation3 + $0x20] sm:$0xff] %vm1463, %v1435
      %1469 = vst.msk [vmem:[#allocation3 + $0x28] sm:$0xff] %vm1463, %v1436
      %1470 = vst.msk [vmem:[#allocation3 + $0x30] sm:$0xff] %vm1463, %v1437
      %1471 = vst.msk [vmem:[#allocation3 + $0x38] sm:$0xff] %vm1463, %v1438
      %1472 = vst.msk [vmem:[#allocation3 + $0x40] sm:$0xff] %vm1463, %v1439
      %1473 = vst.msk [vmem:[#allocation3 + $0x48] sm:$0xff] %vm1463, %v1440
      %1474 = vst.msk [vmem:[#allocation3 + $0x50] sm:$0xff] %vm1463, %v1441
      %1475 = vst.msk [vmem:[#allocation3 + $0x58] sm:$0xff] %vm1463, %v1442
      %1476 = vst.msk [vmem:[#allocation3 + $0x60] sm:$0xff] %vm1463, %v1443
      %1477 = vst.msk [vmem:[#allocation3 + $0x68] sm:$0xff] %vm1463, %v1444
      %1478 = vst.msk [vmem:[#allocation3 + $0x70] sm:$0xff] %vm1463, %v1445
      %1479 = vst.msk [vmem:[#allocation3 + $0x78] sm:$0xff] %vm1463, %v1446
      %1480 = vst.msk [vmem:[#allocation3 + $0x80] sm:$0xff] %vm1463, %v1447
      %1481 = vst.msk [vmem:[#allocation3 + $0x88] sm:$0xff] %vm1463, %v1448
      %1482 = vst.msk [vmem:[#allocation3 + $0x90] sm:$0xff] %vm1463, %v1449
      %1483 = vst.msk [vmem:[#allocation3 + $0x98] sm:$0xff] %vm1463, %v1450
      %1484 = vst.msk [vmem:[#allocation3 + $0xa0] sm:$0xff] %vm1463, %v1451
      %1485 = vst.msk [vmem:[#allocation3 + $0xa8] sm:$0xff] %vm1463, %v1452
      %1486 = vst.msk [vmem:[#allocation3 + $0xb0] sm:$0xff] %vm1463, %v1453
      %1487 = vst.msk [vmem:[#allocation3 + $0xb8] sm:$0xff] %vm1463, %v1454
      %1488 = vst.msk [vmem:[#allocation3 + $0xc0] sm:$0xff] %vm1463, %v1455
      %1489 = vst.msk [vmem:[#allocation3 + $0xc8] sm:$0xff] %vm1463, %v1456
      %1490 = vst.msk [vmem:[#allocation3 + $0xd0] sm:$0xff] %vm1463, %v1457
      %1491 = vst.msk [vmem:[#allocation3 + $0xd8] sm:$0xff] %vm1463, %v1458
      %1492 = vst.msk [vmem:[#allocation3 + $0xe0] sm:$0xff] %vm1463, %v1459
      %1493 = vst.msk [vmem:[#allocation3 + $0xe8] sm:$0xff] %vm1463, %v1460
      %1494 = vst.msk [vmem:[#allocation3 + $0xf0] sm:$0xff] %vm1463, %v1461
      %1495 = vst.msk [vmem:[#allocation3 + $0xf8] sm:$0xff] %vm1463, %v1462
      %1496 = vst.msk [vmem:[#allocation2] sm:$0xff] %vm1463, %v727
      %1497 = vst.msk [vmem:[#allocation2 + $0x8] sm:$0xff] %vm1463, %v728
      %1498 = vst.msk [vmem:[#allocation2 + $0x10] sm:$0xff] %vm1463, %v729
      %1499 = vst.msk [vmem:[#allocation2 + $0x18] sm:$0xff] %vm1463, %v730
      %1500 = vst.msk [vmem:[#allocation2 + $0x20] sm:$0xff] %vm1463, %v731
      %1501 = vst.msk [vmem:[#allocation2 + $0x28] sm:$0xff] %vm1463, %v732
      %1502 = vst.msk [vmem:[#allocation2 + $0x30] sm:$0xff] %vm1463, %v733
      %1503 = vst.msk [vmem:[#allocation2 + $0x38] sm:$0xff] %vm1463, %v734
      %1504 = vst.msk [vmem:[#allocation2 + $0x40] sm:$0xff] %vm1463, %v735
      %1505 = vst.msk [vmem:[#allocation2 + $0x48] sm:$0xff] %vm1463, %v736
      %1506 = vst.msk [vmem:[#allocation2 + $0x50] sm:$0xff] %vm1463, %v737
      %1507 = vst.msk [vmem:[#allocation2 + $0x58] sm:$0xff] %vm1463, %v738
      %1508 = vst.msk [vmem:[#allocation2 + $0x60] sm:$0xff] %vm1463, %v739
      %1509 = vst.msk [vmem:[#allocation2 + $0x68] sm:$0xff] %vm1463, %v740
      %1510 = vst.msk [vmem:[#allocation2 + $0x70] sm:$0xff] %vm1463, %v741
      %1511 = vst.msk [vmem:[#allocation2 + $0x78] sm:$0xff] %vm1463, %v742
      %1512 = vst.msk [vmem:[#allocation2 + $0x80] sm:$0xff] %vm1463, %v743
      %1513 = vst.msk [vmem:[#allocation2 + $0x88] sm:$0xff] %vm1463, %v744
      %1514 = vst.msk [vmem:[#allocation2 + $0x90] sm:$0xff] %vm1463, %v745
      %1515 = vst.msk [vmem:[#allocation2 + $0x98] sm:$0xff] %vm1463, %v746
      %1516 = vst.msk [vmem:[#allocation2 + $0xa0] sm:$0xff] %vm1463, %v747
      %1517 = vst.msk [vmem:[#allocation2 + $0xa8] sm:$0xff] %vm1463, %v748
      %1518 = vst.msk [vmem:[#allocation2 + $0xb0] sm:$0xff] %vm1463, %v749
      %1519 = vst.msk [vmem:[#allocation2 + $0xb8] sm:$0xff] %vm1463, %v750
      %1520 = vst.msk [vmem:[#allocation2 + $0xc0] sm:$0xff] %vm1463, %v751
      %1521 = vst.msk [vmem:[#allocation2 + $0xc8] sm:$0xff] %vm1463, %v752
      %1522 = vst.msk [vmem:[#allocation2 + $0xd0] sm:$0xff] %vm1463, %v753
      %1523 = vst.msk [vmem:[#allocation2 + $0xd8] sm:$0xff] %vm1463, %v754
      %1524 = vst.msk [vmem:[#allocation2 + $0xe0] sm:$0xff] %vm1463, %v755
      %1525 = vst.msk [vmem:[#allocation2 + $0xe8] sm:$0xff] %vm1463, %v756
      %1526 = vst.msk [vmem:[#allocation2 + $0xf0] sm:$0xff] %vm1463, %v757
      %1527 = vst.msk [vmem:[#allocation2 + $0xf8] sm:$0xff] %vm1463, %v758
      // Predicated region
      $region33: #{dual_attention.4} parent=27 // pred_check
        %p1528 = pneg %p227
      $region34: #{dual_attention.4} parent=27 // pred_check_branch
        %1530 = sbr.rel (%p1528) target = $region36
      $region35: #{dual_attention.4} parent=27 // pred_region
        %v1531 = vld [vmem:[#allocation2] sm:$0xff]
        %v1532 = vld [vmem:[#allocation2 + $0x8] sm:$0xff]
        %v1533 = vld [vmem:[#allocation2 + $0x10] sm:$0xff]
        %v1534 = vld [vmem:[#allocation2 + $0x18] sm:$0xff]
        %v1535 = vld [vmem:[#allocation2 + $0x20] sm:$0xff]
        %v1536 = vld [vmem:[#allocation2 + $0x28] sm:$0xff]
        %v1537 = vld [vmem:[#allocation2 + $0x30] sm:$0xff]
        %v1538 = vld [vmem:[#allocation2 + $0x38] sm:$0xff]
        %v1539 = vld [vmem:[#allocation2 + $0x40] sm:$0xff]
        %v1540 = vld [vmem:[#allocation2 + $0x48] sm:$0xff]
        %v1541 = vld [vmem:[#allocation2 + $0x50] sm:$0xff]
        %v1542 = vld [vmem:[#allocation2 + $0x58] sm:$0xff]
        %v1543 = vld [vmem:[#allocation2 + $0x60] sm:$0xff]
        %v1544 = vld [vmem:[#allocation2 + $0x68] sm:$0xff]
        %v1545 = vld [vmem:[#allocation2 + $0x70] sm:$0xff]
        %v1546 = vld [vmem:[#allocation2 + $0x78] sm:$0xff]
        %v1547 = vld [vmem:[#allocation2 + $0x80] sm:$0xff]
        %v1548 = vld [vmem:[#allocation2 + $0x88] sm:$0xff]
        %v1549 = vld [vmem:[#allocation2 + $0x90] sm:$0xff]
        %v1550 = vld [vmem:[#allocation2 + $0x98] sm:$0xff]
        %v1551 = vld [vmem:[#allocation2 + $0xa0] sm:$0xff]
        %v1552 = vld [vmem:[#allocation2 + $0xa8] sm:$0xff]
        %v1553 = vld [vmem:[#allocation2 + $0xb0] sm:$0xff]
        %v1554 = vld [vmem:[#allocation2 + $0xb8] sm:$0xff]
        %v1555 = vld [vmem:[#allocation2 + $0xc0] sm:$0xff]
        %v1556 = vld [vmem:[#allocation2 + $0xc8] sm:$0xff]
        %v1557 = vld [vmem:[#allocation2 + $0xd0] sm:$0xff]
        %v1558 = vld [vmem:[#allocation2 + $0xd8] sm:$0xff]
        %v1559 = vld [vmem:[#allocation2 + $0xe0] sm:$0xff]
        %v1560 = vld [vmem:[#allocation2 + $0xe8] sm:$0xff]
        %v1561 = vld [vmem:[#allocation2 + $0xf0] sm:$0xff]
        %v1562 = vld [vmem:[#allocation2 + $0xf8] sm:$0xff]
        %v1563 = vld [vmem:[#allocation3] sm:$0xff]
        %v1564 = vld [vmem:[#allocation3 + $0x8] sm:$0xff]
        %v1565 = vld [vmem:[#allocation3 + $0x10] sm:$0xff]
        %v1566 = vld [vmem:[#allocation3 + $0x18] sm:$0xff]
        %v1567 = vld [vmem:[#allocation3 + $0x20] sm:$0xff]
        %v1568 = vld [vmem:[#allocation3 + $0x28] sm:$0xff]
        %v1569 = vld [vmem:[#allocation3 + $0x30] sm:$0xff]
        %v1570 = vld [vmem:[#allocation3 + $0x38] sm:$0xff]
        %v1571 = vld [vmem:[#allocation3 + $0x40] sm:$0xff]
        %v1572 = vld [vmem:[#allocation3 + $0x48] sm:$0xff]
        %v1573 = vld [vmem:[#allocation3 + $0x50] sm:$0xff]
        %v1574 = vld [vmem:[#allocation3 + $0x58] sm:$0xff]
        %v1575 = vld [vmem:[#allocation3 + $0x60] sm:$0xff]
        %v1576 = vld [vmem:[#allocation3 + $0x68] sm:$0xff]
        %v1577 = vld [vmem:[#allocation3 + $0x70] sm:$0xff]
        %v1578 = vld [vmem:[#allocation3 + $0x78] sm:$0xff]
        %v1579 = vld [vmem:[#allocation3 + $0x80] sm:$0xff]
        %v1580 = vld [vmem:[#allocation3 + $0x88] sm:$0xff]
        %v1581 = vld [vmem:[#allocation3 + $0x90] sm:$0xff]
        %v1582 = vld [vmem:[#allocation3 + $0x98] sm:$0xff]
        %v1583 = vld [vmem:[#allocation3 + $0xa0] sm:$0xff]
        %v1584 = vld [vmem:[#allocation3 + $0xa8] sm:$0xff]
        %v1585 = vld [vmem:[#allocation3 + $0xb0] sm:$0xff]
        %v1586 = vld [vmem:[#allocation3 + $0xb8] sm:$0xff]
        %v1587 = vld [vmem:[#allocation3 + $0xc0] sm:$0xff]
        %v1588 = vld [vmem:[#allocation3 + $0xc8] sm:$0xff]
        %v1589 = vld [vmem:[#allocation3 + $0xd0] sm:$0xff]
        %v1590 = vld [vmem:[#allocation3 + $0xd8] sm:$0xff]
        %v1591 = vld [vmem:[#allocation3 + $0xe0] sm:$0xff]
        %v1592 = vld [vmem:[#allocation3 + $0xe8] sm:$0xff]
        %v1593 = vld [vmem:[#allocation3 + $0xf0] sm:$0xff]
        %v1594 = vld [vmem:[#allocation3 + $0xf8] sm:$0xff]
        %v1595 = vlog2.pop %v1563
        %v1596 = vmul.f32 %v1595, 0.6931472
        %v1597 = vlog2.pop %v1564
        %v1598 = vmul.f32 %v1597, 0.6931472
        %v1599 = vlog2.pop %v1565
        %v1600 = vmul.f32 %v1599, 0.6931472
        %v1601 = vlog2.pop %v1566
        %v1602 = vmul.f32 %v1601, 0.6931472
        %v1603 = vlog2.pop %v1567
        %v1604 = vmul.f32 %v1603, 0.6931472
        %v1605 = vlog2.pop %v1568
        %v1606 = vmul.f32 %v1605, 0.6931472
        %v1607 = vlog2.pop %v1569
        %v1608 = vmul.f32 %v1607, 0.6931472
        %v1609 = vlog2.pop %v1570
        %v1610 = vmul.f32 %v1609, 0.6931472
        %v1611 = vlog2.pop %v1571
        %v1612 = vmul.f32 %v1611, 0.6931472
        %v1613 = vlog2.pop %v1572
        %v1614 = vmul.f32 %v1613, 0.6931472
        %v1615 = vlog2.pop %v1573
        %v1616 = vmul.f32 %v1615, 0.6931472
        %v1617 = vlog2.pop %v1574
        %v1618 = vmul.f32 %v1617, 0.6931472
        %v1619 = vlog2.pop %v1575
        %v1620 = vmul.f32 %v1619, 0.6931472
        %v1621 = vlog2.pop %v1576
        %v1622 = vmul.f32 %v1621, 0.6931472
        %v1623 = vlog2.pop %v1577
        %v1624 = vmul.f32 %v1623, 0.6931472
        %v1625 = vlog2.pop %v1578
        %v1626 = vmul.f32 %v1625, 0.6931472
        %v1627 = vlog2.pop %v1579
        %v1628 = vmul.f32 %v1627, 0.6931472
        %v1629 = vlog2.pop %v1580
        %v1630 = vmul.f32 %v1629, 0.6931472
        %v1631 = vlog2.pop %v1581
        %v1632 = vmul.f32 %v1631, 0.6931472
        %v1633 = vlog2.pop %v1582
        %v1634 = vmul.f32 %v1633, 0.6931472
        %v1635 = vlog2.pop %v1583
        %v1636 = vmul.f32 %v1635, 0.6931472
        %v1637 = vlog2.pop %v1584
        %v1638 = vmul.f32 %v1637, 0.6931472
        %v1639 = vlog2.pop %v1585
        %v1640 = vmul.f32 %v1639, 0.6931472
        %v1641 = vlog2.pop %v1586
        %v1642 = vmul.f32 %v1641, 0.6931472
        %v1643 = vlog2.pop %v1587
        %v1644 = vmul.f32 %v1643, 0.6931472
        %v1645 = vlog2.pop %v1588
        %v1646 = vmul.f32 %v1645, 0.6931472
        %v1647 = vlog2.pop %v1589
        %v1648 = vmul.f32 %v1647, 0.6931472
        %v1649 = vlog2.pop %v1590
        %v1650 = vmul.f32 %v1649, 0.6931472
        %v1651 = vlog2.pop %v1591
        %v1652 = vmul.f32 %v1651, 0.6931472
        %v1653 = vlog2.pop %v1592
        %v1654 = vmul.f32 %v1653, 0.6931472
        %v1655 = vlog2.pop %v1593
        %v1656 = vmul.f32 %v1655, 0.6931472
        %v1657 = vlog2.pop %v1594
        %v1658 = vmul.f32 %v1657, 0.6931472
        %v1659 = vadd.f32 %v1531, %v1596
        %v1660 = vadd.f32 %v1532, %v1598
        %v1661 = vadd.f32 %v1533, %v1600
        %v1662 = vadd.f32 %v1534, %v1602
        %v1663 = vadd.f32 %v1535, %v1604
        %v1664 = vadd.f32 %v1536, %v1606
        %v1665 = vadd.f32 %v1537, %v1608
        %v1666 = vadd.f32 %v1538, %v1610
        %v1667 = vadd.f32 %v1539, %v1612
        %v1668 = vadd.f32 %v1540, %v1614
        %v1669 = vadd.f32 %v1541, %v1616
        %v1670 = vadd.f32 %v1542, %v1618
        %v1671 = vadd.f32 %v1543, %v1620
        %v1672 = vadd.f32 %v1544, %v1622
        %v1673 = vadd.f32 %v1545, %v1624
        %v1674 = vadd.f32 %v1546, %v1626
        %v1675 = vadd.f32 %v1547, %v1628
        %v1676 = vadd.f32 %v1548, %v1630
        %v1677 = vadd.f32 %v1549, %v1632
        %v1678 = vadd.f32 %v1550, %v1634
        %v1679 = vadd.f32 %v1551, %v1636
        %v1680 = vadd.f32 %v1552, %v1638
        %v1681 = vadd.f32 %v1553, %v1640
        %v1682 = vadd.f32 %v1554, %v1642
        %v1683 = vadd.f32 %v1555, %v1644
        %v1684 = vadd.f32 %v1556, %v1646
        %v1685 = vadd.f32 %v1557, %v1648
        %v1686 = vadd.f32 %v1558, %v1650
        %v1687 = vadd.f32 %v1559, %v1652
        %v1688 = vadd.f32 %v1560, %v1654
        %v1689 = vadd.f32 %v1561, %v1656
        %v1690 = vadd.f32 %v1562, %v1658
        %1691 = vst.msk [vmem:[%s224] sm:$0xff] %vm1463, %v1659
        %1692 = vst.msk [vmem:[%s224 + $0x8] sm:$0xff] %vm1463, %v1660
        %1693 = vst.msk [vmem:[%s224 + $0x10] sm:$0xff] %vm1463, %v1661
        %1694 = vst.msk [vmem:[%s224 + $0x18] sm:$0xff] %vm1463, %v1662
        %1695 = vst.msk [vmem:[%s224 + $0x20] sm:$0xff] %vm1463, %v1663
        %1696 = vst.msk [vmem:[%s224 + $0x28] sm:$0xff] %vm1463, %v1664
        %1697 = vst.msk [vmem:[%s224 + $0x30] sm:$0xff] %vm1463, %v1665
        %1698 = vst.msk [vmem:[%s224 + $0x38] sm:$0xff] %vm1463, %v1666
        %1699 = vst.msk [vmem:[%s224 + $0x40] sm:$0xff] %vm1463, %v1667
        %1700 = vst.msk [vmem:[%s224 + $0x48] sm:$0xff] %vm1463, %v1668
        %1701 = vst.msk [vmem:[%s224 + $0x50] sm:$0xff] %vm1463, %v1669
        %1702 = vst.msk [vmem:[%s224 + $0x58] sm:$0xff] %vm1463, %v1670
        %1703 = vst.msk [vmem:[%s224 + $0x60] sm:$0xff] %vm1463, %v1671
        %1704 = vst.msk [vmem:[%s224 + $0x68] sm:$0xff] %vm1463, %v1672
        %1705 = vst.msk [vmem:[%s224 + $0x70] sm:$0xff] %vm1463, %v1673
        %1706 = vst.msk [vmem:[%s224 + $0x78] sm:$0xff] %vm1463, %v1674
        %1707 = vst.msk [vmem:[%s224 + $0x80] sm:$0xff] %vm1463, %v1675
        %1708 = vst.msk [vmem:[%s224 + $0x88] sm:$0xff] %vm1463, %v1676
        %1709 = vst.msk [vmem:[%s224 + $0x90] sm:$0xff] %vm1463, %v1677
        %1710 = vst.msk [vmem:[%s224 + $0x98] sm:$0xff] %vm1463, %v1678
        %1711 = vst.msk [vmem:[%s224 + $0xa0] sm:$0xff] %vm1463, %v1679
        %1712 = vst.msk [vmem:[%s224 + $0xa8] sm:$0xff] %vm1463, %v1680
        %1713 = vst.msk [vmem:[%s224 + $0xb0] sm:$0xff] %vm1463, %v1681
        %1714 = vst.msk [vmem:[%s224 + $0xb8] sm:$0xff] %vm1463, %v1682
        %1715 = vst.msk [vmem:[%s224 + $0xc0] sm:$0xff] %vm1463, %v1683
        %1716 = vst.msk [vmem:[%s224 + $0xc8] sm:$0xff] %vm1463, %v1684
        %1717 = vst.msk [vmem:[%s224 + $0xd0] sm:$0xff] %vm1463, %v1685
        %1718 = vst.msk [vmem:[%s224 + $0xd8] sm:$0xff] %vm1463, %v1686
        %1719 = vst.msk [vmem:[%s224 + $0xe0] sm:$0xff] %vm1463, %v1687
        %1720 = vst.msk [vmem:[%s224 + $0xe8] sm:$0xff] %vm1463, %v1688
        %1721 = vst.msk [vmem:[%s224 + $0xf0] sm:$0xff] %vm1463, %v1689
        %1722 = vst.msk [vmem:[%s224 + $0xf8] sm:$0xff] %vm1463, %v1690
      $region36: #{dual_attention.4} parent=27 // pred_fallthru
        _
      %s1723 = smul.u32 32, %s19
      %p1724 = scmp.lt.s32.totalorder %s18, 1
      %s1725 = scalar_select %p1724, %s18, 1
      %p1726 = scmp.lt.s32.totalorder %s1723, 31
      %s1727 = scalar_select %p1726, %s1723, 31
      %s1728 = smul.addr %s1725, 32
      %s1729 = sadd.s32 %s1727, %s1728
      %s1730 = smul.addr %s1729, 8
      %s1731 = scalar_lea.vmem %s2, %s1730
      // Predicated region
      $region37: #{dual_attention.4} parent=27 // pred_check
        %p1732 = pneg %p108
      $region38: #{dual_attention.4} parent=27 // pred_check_branch
        %1734 = sbr.rel (%p1732) target = $region40
      $region39: #{dual_attention.4} parent=27 // pred_region
        %s1735 = smul.u32 32, %s19
      $region40: #{dual_attention.4} parent=27 // pred_fallthru
        _
    $region28: #{dual_attention.4} parent=5 // pred_fallthru
      _
    %p1736 = scmp.le.s32.totalorder 2, %s8
    // Predicated region
    $region41: #{dual_attention.4} parent=5 // pred_check
      %p1737 = pneg %p1736
    $region42: #{dual_attention.4} parent=5 // pred_check_branch
      %1739 = sbr.rel (%p1737) target = $region44
    $region43: #{dual_attention.4} parent=5 // pred_region
      %s1740 = ssub.s32 %s8, 2
      // Predicated region
      $region45: #{dual_attention.4} parent=43 // pred_check
        %p1741 = pneg %p114
      $region46: #{dual_attention.4} parent=43 // pred_check_branch
        %1743 = sbr.rel (%p1741) target = $region48
      $region47: #{dual_attention.4} parent=43 // pred_region
        %s1744 = smul.u32 32, %s22
        %p1745 = scmp.lt.s32.totalorder %s21, 1
        %s1746 = scalar_select %p1745, %s21, 1
        %p1747 = scmp.lt.s32.totalorder %s1744, 31
        %s1748 = scalar_select %p1747, %s1744, 31
        %s1749 = smul.addr %s1746, 32
        %s1750 = sadd.s32 %s1748, %s1749
        %s1751 = smul.addr %s1750, 8
        %s1752 = scalar_lea.vmem %s2, %s1751
      $region48: #{dual_attention.4} parent=43 // pred_fallthru
        _
    $region44: #{dual_attention.4} parent=5 // pred_fallthru
      _
  $region6: #{dual_attention.4} parent=0 // loop_footer
    %s12 = sadd.s32 1, %s8
  $region7: #{dual_attention.4} parent=0 // loop_footer_branch
    %7 = sbr.rel target = $region3
  $region8: #{dual_attention.4} parent=0 // loop_exit
    _

// kernel: dual_attention.5
$region0: #{dual_attention.5}
  #allocation0 [shape = 'u32[]', space=smem, size = 0x4, offset = 0x4, fixed_abs, tag = 'smem constant byte address 0x4 - core index']
  #allocation1 [shape = 'u32[144,128]{1,0:T(1,128)}', space=vmem, size = 0x12000, scoped, tag = 'internal scratch']
  #allocation2 [shape = 'f32[1,256]{1,0:T(1,128)}', space=vmem, size = 0x400, scoped, tag = 'scratch operand']
  #allocation3 [shape = 'f32[1,256]{1,0:T(1,128)}', space=vmem, size = 0x400, scoped, tag = 'scratch operand']
  #allocation4 [shape = 'f32[4,256]{1,0:T(4,128)}', space=vmem, size = 0x1000, scoped, tag = 'scratch operand']
  #allocation5 [shape = 'f32[4,256]{1,0:T(4,128)}', space=vmem, size = 0x1000, scoped, tag = 'scratch operand']
  %s0 = inlined_call_operand.vmem [shape: bf16[2,3,4,256], index: 0, kind: input, shape index: {}, may-alias: {0,1}]
  %s1 = inlined_call_operand.vmem [shape: bf16[2,3,4,256], index: 1, kind: input, shape index: {}, may-alias: {0,1}]
  %s2 = inlined_call_operand.vmem [shape: bf16[2,4,256], index: 2, kind: input, shape index: {}]
  %s3 = inlined_call_operand.vmem [shape: f32[2,256,1], index: 3, kind: input, shape index: {}]
  %s4 = inlined_call_operand.vmem [shape: bf16[3,4,4], index: 4, kind: input, shape index: {}]
  %s5 = inlined_call_operand.vmem [shape: f32[4,1], index: 5, kind: input, shape index: {}]
  %s6 = inlined_call_operand.vmem [shape: f32[2,4,256], index: 6, kind: output, shape index: {}]
  %s7 = sld [smem:[#allocation0]]
  $region65: #{dual_attention.5} parent=0
    _
  %s9 = ssub.s32 1, %s7
  %s10 = scalar_select 0, %s9, %s7
  loop: start=0, step=1, limit=4
  $region2: #{dual_attention.5} parent=0 // loop_pre_header
    _
  $region3: #{dual_attention.5} parent=0 // loop_header
    %s12 = sphi 0, %s16
    %p13 = scmp.ge.s32.totalorder %s12, 4
    %s19 = sphi 0, %s38
    %s20 = sphi 0, %s34
    %s21 = sphi 0, %s30
    %s22 = sphi 0, %s19
    %s23 = sphi 0, %s20
    %s24 = sphi 0, %s21
    %s25 = sphi 0, %s22
    %s26 = sphi 0, %s23
    %s27 = sphi 0, %s24
    %s43 = sphi 0, %s45
    %s46 = sphi 0, %s43
    %s47 = sphi 0, %s46
    %s63 = sphi 0, %s47
    %s71 = sphi 0, %s73
    %s74 = sphi 0, %s71
    %s75 = sphi 0, %s74
    %s91 = sphi 0, %s75
    %s99 = sphi 0, %s101
    %s102 = sphi 0, %s99
    %s103 = sphi 0, %s102
    %s119 = sphi 0, %s103
    %s127 = sphi 0, %s129
    %s130 = sphi 0, %s127
    %s131 = sphi 0, %s130
    %s147 = sphi 0, %s131
    %s151 = sphi 0, %s151
    %s153 = sphi 0, %s151
    %s154 = sphi 0, %s153
    %s168 = sphi 0, %s154
    %s172 = sphi 0, %s172
    %s174 = sphi 0, %s172
    %s175 = sphi 0, %s174
    %s189 = sphi 0, %s175
    %s197 = sphi 0, %s199
    %s200 = sphi 0, %s197
    %s201 = sphi 0, %s200
    %s217 = sphi 0, %s201
  $region4: #{dual_attention.5} parent=0 // loop_header_branch
    %15 = sbr.rel (%p13) target = $region8
  $region5: #{dual_attention.5} parent=0 // loop_body
    %s17 = ssub.s32 %s12, 1
    %s18 = ssub.s32 %s12, 2
    %s28 = sadd.s32 1, %s21
    %p29 = scmp.ge.s32.totalorder %s28, 1
    %s30 = scalar_select %p29, 0, %s28
    %s31 = sadd.s32 1, %s20
    %s32 = scalar_select %p29, %s31, %s20
    %p33 = scmp.ge.s32.totalorder %s32, 1
    %s34 = scalar_select %p33, 0, %s32
    %s35 = sadd.s32 1, %s19
    %s36 = scalar_select %p33, %s35, %s19
    %p37 = scmp.ge.s32.totalorder %s36, 2
    %s38 = scalar_select %p37, 0, %s36
    %s39 = ssub.s32 %s19, %s38
    %s40 = ssub.s32 %s21, %s30
    %s41 = sor.u32 %s39, %s40
    %p42 = scmp.eq.s32.totalorder %s41, 0
    %s44 = sadd.s32 %s43, 1
    %s45 = scalar_select %p42, %s43, %s44
    %p48 = pneg %p42
    %p49 = scmp.eq.s32.totalorder %s12, 1
    %p50 = por %p48, %p49
    %p51 = scmp.ne.s32.totalorder %s43, %s46
    %p52 = scmp.eq.s32.totalorder %s12, 0
    %p53 = por %p51, %p52
    %p54 = scmp.ne.s32.totalorder %s43, %s46
    %p55 = scmp.eq.s32.totalorder %s17, 1
    %p56 = por %p54, %p55
    %p57 = scmp.ne.s32.totalorder %s46, %s47
    %p58 = scmp.eq.s32.totalorder %s17, 0
    %p59 = por %p57, %p58
    %p60 = scmp.ne.s32.totalorder %s46, %s47
    %p61 = scmp.eq.s32.totalorder %s18, 1
    %p62 = por %p60, %p61
    %p64 = scmp.ne.s32.totalorder %s47, %s63
    %p65 = scmp.eq.s32.totalorder %s18, 0
    %p66 = por %p64, %p65
    %s67 = ssub.s32 %s19, %s38
    %s68 = ssub.s32 %s20, %s34
    %s69 = sor.u32 %s67, %s68
    %p70 = scmp.eq.s32.totalorder %s69, 0
    %s72 = sadd.s32 %s71, 1
    %s73 = scalar_select %p70, %s71, %s72
    %p76 = pneg %p70
    %p77 = scmp.eq.s32.totalorder %s12, 1
    %p78 = por %p76, %p77
    %p79 = scmp.ne.s32.totalorder %s71, %s74
    %p80 = scmp.eq.s32.totalorder %s12, 0
    %p81 = por %p79, %p80
    %p82 = scmp.ne.s32.totalorder %s71, %s74
    %p83 = scmp.eq.s32.totalorder %s17, 1
    %p84 = por %p82, %p83
    %p85 = scmp.ne.s32.totalorder %s74, %s75
    %p86 = scmp.eq.s32.totalorder %s17, 0
    %p87 = por %p85, %p86
    %p88 = scmp.ne.s32.totalorder %s74, %s75
    %p89 = scmp.eq.s32.totalorder %s18, 1
    %p90 = por %p88, %p89
    %p92 = scmp.ne.s32.totalorder %s75, %s91
    %p93 = scmp.eq.s32.totalorder %s18, 0
    %p94 = por %p92, %p93
    %s95 = ssub.s32 %s19, %s38
    %s96 = ssub.s32 %s20, %s34
    %s97 = sor.u32 %s95, %s96
    %p98 = scmp.eq.s32.totalorder %s97, 0
    %s100 = sadd.s32 %s99, 1
    %s101 = scalar_select %p98, %s99, %s100
    %p104 = pneg %p98
    %p105 = scmp.eq.s32.totalorder %s12, 1
    %p106 = por %p104, %p105
    %p107 = scmp.ne.s32.totalorder %s99, %s102
    %p108 = scmp.eq.s32.totalorder %s12, 0
    %p109 = por %p107, %p108
    %p110 = scmp.ne.s32.totalorder %s99, %s102
    %p111 = scmp.eq.s32.totalorder %s17, 1
    %p112 = por %p110, %p111
    %p113 = scmp.ne.s32.totalorder %s102, %s103
    %p114 = scmp.eq.s32.totalorder %s17, 0
    %p115 = por %p113, %p114
    %p116 = scmp.ne.s32.totalorder %s102, %s103
    %p117 = scmp.eq.s32.totalorder %s18, 1
    %p118 = por %p116, %p117
    %p120 = scmp.ne.s32.totalorder %s103, %s119
    %p121 = scmp.eq.s32.totalorder %s18, 0
    %p122 = por %p120, %p121
    %s123 = ssub.s32 %s19, %s38
    %s124 = ssub.s32 %s21, %s30
    %s125 = sor.u32 %s123, %s124
    %p126 = scmp.eq.s32.totalorder %s125, 0
    %s128 = sadd.s32 %s127, 1
    %s129 = scalar_select %p126, %s127, %s128
    %p132 = pneg %p126
    %p133 = scmp.eq.s32.totalorder %s12, 1
    %p134 = por %p132, %p133
    %p135 = scmp.ne.s32.totalorder %s127, %s130
    %p136 = scmp.eq.s32.totalorder %s12, 0
    %p137 = por %p135, %p136
    %p138 = scmp.ne.s32.totalorder %s127, %s130
    %p139 = scmp.eq.s32.totalorder %s17, 1
    %p140 = por %p138, %p139
    %p141 = scmp.ne.s32.totalorder %s130, %s131
    %p142 = scmp.eq.s32.totalorder %s17, 0
    %p143 = por %p141, %p142
    %p144 = scmp.ne.s32.totalorder %s130, %s131
    %p145 = scmp.eq.s32.totalorder %s18, 1
    %p146 = por %p144, %p145
    %p148 = scmp.ne.s32.totalorder %s131, %s147
    %p149 = scmp.eq.s32.totalorder %s18, 0
    %p150 = por %p148, %p149
    %s152 = sadd.s32 %s151, 1
    %p155 = scmp.eq.s32.totalorder %s12, 1
    %p156 = scmp.ne.s32.totalorder %s151, %s153
    %p157 = scmp.eq.s32.totalorder %s12, 0
    %p158 = por %p156, %p157
    %p159 = scmp.ne.s32.totalorder %s151, %s153
    %p160 = scmp.eq.s32.totalorder %s17, 1
    %p161 = por %p159, %p160
    %p162 = scmp.ne.s32.totalorder %s153, %s154
    %p163 = scmp.eq.s32.totalorder %s17, 0
    %p164 = por %p162, %p163
    %p165 = scmp.ne.s32.totalorder %s153, %s154
    %p166 = scmp.eq.s32.totalorder %s18, 1
    %p167 = por %p165, %p166
    %p169 = scmp.ne.s32.totalorder %s154, %s168
    %p170 = scmp.eq.s32.totalorder %s18, 0
    %p171 = por %p169, %p170
    %s173 = sadd.s32 %s172, 1
    %p176 = scmp.eq.s32.totalorder %s12, 1
    %p177 = scmp.ne.s32.totalorder %s172, %s174
    %p178 = scmp.eq.s32.totalorder %s12, 0
    %p179 = por %p177, %p178
    %p180 = scmp.ne.s32.totalorder %s172, %s174
    %p181 = scmp.eq.s32.totalorder %s17, 1
    %p182 = por %p180, %p181
    %p183 = scmp.ne.s32.totalorder %s174, %s175
    %p184 = scmp.eq.s32.totalorder %s17, 0
    %p185 = por %p183, %p184
    %p186 = scmp.ne.s32.totalorder %s174, %s175
    %p187 = scmp.eq.s32.totalorder %s18, 1
    %p188 = por %p186, %p187
    %p190 = scmp.ne.s32.totalorder %s175, %s189
    %p191 = scmp.eq.s32.totalorder %s18, 0
    %p192 = por %p190, %p191
    %s193 = ssub.s32 %s19, %s38
    %s194 = ssub.s32 %s20, %s34
    %s195 = sor.u32 %s193, %s194
    %p196 = scmp.eq.s32.totalorder %s195, 0
    %s198 = sadd.s32 %s197, 1
    %s199 = scalar_select %p196, %s197, %s198
    %p202 = pneg %p196
    %p203 = scmp.eq.s32.totalorder %s12, 1
    %p204 = por %p202, %p203
    %p205 = scmp.ne.s32.totalorder %s197, %s200
    %p206 = scmp.eq.s32.totalorder %s12, 0
    %p207 = por %p205, %p206
    %p208 = scmp.ne.s32.totalorder %s197, %s200
    %p209 = scmp.eq.s32.totalorder %s17, 1
    %p210 = por %p208, %p209
    %p211 = scmp.ne.s32.totalorder %s200, %s201
    %p212 = scmp.eq.s32.totalorder %s17, 0
    %p213 = por %p211, %p212
    %p214 = scmp.ne.s32.totalorder %s200, %s201
    %p215 = scmp.eq.s32.totalorder %s18, 1
    %p216 = por %p214, %p215
    %p218 = scmp.ne.s32.totalorder %s201, %s217
    %p219 = scmp.eq.s32.totalorder %s18, 0
    %p220 = por %p218, %p219
    %p221 = scmp.le.s32.totalorder 1, %s12
    %p222 = scmp.lt.s32.totalorder %s12, 3
    %p223 = pnand %p221, %p222
    %p224 = pneg %p223
    // Predicated region
    $region9: #{dual_attention.5} parent=5 // pred_check
      _
    $region10: #{dual_attention.5} parent=5 // pred_check_branch
      %226 = sbr.rel (%p223) target = $region12
    $region11: #{dual_attention.5} parent=5 // pred_region
      %s227 = ssub.s32 %s12, 1
      // Predicated region
      $region13: #{dual_attention.5} parent=11 // pred_check
        %p228 = pneg %p164
      $region14: #{dual_attention.5} parent=11 // pred_check_branch
        %230 = sbr.rel (%p228) target = $region16
      $region15: #{dual_attention.5} parent=11 // pred_region
        _
      $region16: #{dual_attention.5} parent=11 // pred_fallthru
        _
      // Predicated region
      $region17: #{dual_attention.5} parent=11 // pred_check
        %p231 = pneg %p185
      $region18: #{dual_attention.5} parent=11 // pred_check_branch
        %233 = sbr.rel (%p231) target = $region20
      $region19: #{dual_attention.5} parent=11 // pred_region
        _
      $region20: #{dual_attention.5} parent=11 // pred_fallthru
        _
    $region12: #{dual_attention.5} parent=5 // pred_fallthru
      _
    %p234 = scmp.lt.s32.totalorder %s12, 2
    // Predicated region
    $region21: #{dual_attention.5} parent=5 // pred_check
      %p235 = pneg %p234
    $region22: #{dual_attention.5} parent=5 // pred_check_branch
      %237 = sbr.rel (%p235) target = $region24
    $region23: #{dual_attention.5} parent=5 // pred_region
      // Predicated region
      $region25: #{dual_attention.5} parent=23 // pred_check
        %p238 = pneg %p53
      $region26: #{dual_attention.5} parent=23 // pred_check_branch
        %240 = sbr.rel (%p238) target = $region28
      $region27: #{dual_attention.5} parent=23 // pred_region
        %s241 = smul.u32 2, %s21
        %p242 = scmp.lt.s32.totalorder %s19, 1
        %s243 = scalar_select %p242, %s19, 1
        %p244 = scmp.lt.s32.totalorder %s241, 1
        %s245 = scalar_select %p244, %s241, 1
        %s246 = smul.addr %s243, 6
        %s247 = sadd.s32 %s245, %s246
        %s248 = smul.addr %s247, 2
        %s249 = scalar_lea.vmem %s0, %s248
        %s250 = smul.u32 2, %s21
      $region28: #{dual_attention.5} parent=23 // pred_fallthru
        _
      // Predicated region
      $region29: #{dual_attention.5} parent=23 // pred_check
        %p251 = pneg %p81
      $region30: #{dual_attention.5} parent=23 // pred_check_branch
        %253 = sbr.rel (%p251) target = $region32
      $region31: #{dual_attention.5} parent=23 // pred_region
        %s254 = smul.u32 2, %s20
        %p255 = scmp.lt.s32.totalorder %s19, 1
        %s256 = scalar_select %p255, %s19, 1
        %p257 = scmp.lt.s32.totalorder %s254, 1
        %s258 = scalar_select %p257, %s254, 1
        %s259 = smul.addr %s256, 6
        %s260 = sadd.s32 %s258, %s259
        %s261 = smul.addr %s260, 2
        %s262 = scalar_lea.vmem %s1, %s261
        %s263 = smul.u32 2, %s20
      $region32: #{dual_attention.5} parent=23 // pred_fallthru
        _
      // Predicated region
      $region33: #{dual_attention.5} parent=23 // pred_check
        %p264 = pneg %p109
      $region34: #{dual_attention.5} parent=23 // pred_check_branch
        %266 = sbr.rel (%p264) target = $region36
      $region35: #{dual_attention.5} parent=23 // pred_region
        %s267 = smul.u32 2, %s20
        %p268 = scmp.lt.s32.totalorder %s19, 1
        %s269 = scalar_select %p268, %s19, 1
        %p270 = scmp.lt.s32.totalorder %s267, 1
        %s271 = scalar_select %p270, %s267, 1
        %s272 = smul.addr %s269, 2
        %s273 = sadd.s32 %s271, %s272
        %s274 = smul.addr %s273, 2
        %s275 = scalar_lea.vmem %s2, %s274
        %s276 = smul.u32 2, %s20
      $region36: #{dual_attention.5} parent=23 // pred_fallthru
        _
      // Predicated region
      $region37: #{dual_attention.5} parent=23 // pred_check
        %p277 = pneg %p137
      $region38: #{dual_attention.5} parent=23 // pred_check_branch
        %279 = sbr.rel (%p277) target = $region40
      $region39: #{dual_attention.5} parent=23 // pred_region
        %s280 = smul.u32 32, %s21
        %p281 = scmp.lt.s32.totalorder %s19, 1
        %s282 = scalar_select %p281, %s19, 1
        %p283 = scmp.lt.s32.totalorder %s280, 31
        %s284 = scalar_select %p283, %s280, 31
        %s285 = smul.addr %s282, 32
        %s286 = sadd.s32 %s284, %s285
        %s287 = smul.addr %s286, 8
        %s288 = scalar_lea.vmem %s3, %s287
        %s289 = smul.u32 32, %s21
      $region40: #{dual_attention.5} parent=23 // pred_fallthru
        _
    $region24: #{dual_attention.5} parent=5 // pred_fallthru
      _
    %p290 = scmp.le.s32.totalorder 1, %s12
    %p291 = scmp.lt.s32.totalorder %s12, 3
    %p292 = pnand %p290, %p291
    %p293 = pneg %p292
    // Predicated region
    $region41: #{dual_attention.5} parent=5 // pred_check
      _
    $region42: #{dual_attention.5} parent=5 // pred_check_branch
      %295 = sbr.rel (%p292) target = $region44
    $region43: #{dual_attention.5} parent=5 // pred_region
      %s296 = ssub.s32 %s12, 1
      %s297 = smul.u32 2, %s24
      %p298 = scmp.lt.s32.totalorder %s22, 1
      %s299 = scalar_select %p298, %s22, 1
      %p300 = scmp.lt.s32.totalorder %s297, 1
      %s301 = scalar_select %p300, %s297, 1
      %s302 = smul.addr %s299, 6
      %s303 = sadd.s32 %s301, %s302
      %s304 = smul.addr %s303, 2
      %s305 = scalar_lea.vmem %s0, %s304
      %p306 = pneg %p59
      %p307 = pneg %p56
      %s308 = smul.u32 2, %s23
      %p309 = scmp.lt.s32.totalorder %s22, 1
      %s310 = scalar_select %p309, %s22, 1
      %p311 = scmp.lt.s32.totalorder %s308, 1
      %s312 = scalar_select %p311, %s308, 1
      %s313 = smul.addr %s310, 6
      %s314 = sadd.s32 %s312, %s313
      %s315 = smul.addr %s314, 2
      %s316 = scalar_lea.vmem %s1, %s315
      %p317 = pneg %p87
      %p318 = pneg %p84
      %s319 = smul.u32 2, %s23
      %p320 = scmp.lt.s32.totalorder %s22, 1
      %s321 = scalar_select %p320, %s22, 1
      %p322 = scmp.lt.s32.totalorder %s319, 1
      %s323 = scalar_select %p322, %s319, 1
      %s324 = smul.addr %s321, 2
      %s325 = sadd.s32 %s323, %s324
      %s326 = smul.addr %s325, 2
      %s327 = scalar_lea.vmem %s2, %s326
      %p328 = pneg %p115
      %p329 = pneg %p112
      %s330 = smul.u32 32, %s24
      %p331 = scmp.lt.s32.totalorder %s22, 1
      %s332 = scalar_select %p331, %s22, 1
      %p333 = scmp.lt.s32.totalorder %s330, 31
      %s334 = scalar_select %p333, %s330, 31
      %s335 = smul.addr %s332, 32
      %s336 = sadd.s32 %s334, %s335
      %s337 = smul.addr %s336, 8
      %s338 = scalar_lea.vmem %s3, %s337
      %p339 = pneg %p143
      %p340 = pneg %p140
      %p341 = pneg %p164
      %p342 = pneg %p161
      %p343 = pneg %p185
      %p344 = pneg %p182
      %p345 = pneg %p213
      %p346 = pneg %p210
      %s347 = smul.u32 2, %s23
      %p348 = scmp.lt.s32.totalorder %s22, 1
      %s349 = scalar_select %p348, %s22, 1
      %p350 = scmp.lt.s32.totalorder %s347, 1
      %s351 = scalar_select %p350, %s347, 1
      %s352 = smul.addr %s349, 2
      %s353 = sadd.s32 %s351, %s352
      %s354 = smul.addr %s353, 4
      %s355 = scalar_lea.vmem %s6, %s354
      %s356 = smul.u32 2, %s24
      %p357 = scmp.lt.s32.totalorder %s22, 1
      %s358 = scalar_select %p357, %s22, 1
      %p359 = scmp.lt.s32.totalorder %s356, 1
      %s360 = scalar_select %p359, %s356, 1
      %s361 = smul.addr %s358, 6
      %s362 = sadd.s32 %s360, %s361
      %s363 = smul.addr %s362, 2
      %s364 = scalar_lea.vmem %s0, %s363
      %s365 = smul.u32 2, %s24
      %s366 = smul.u32 2, %s23
      %p367 = scmp.lt.s32.totalorder %s22, 1
      %s368 = scalar_select %p367, %s22, 1
      %p369 = scmp.lt.s32.totalorder %s366, 1
      %s370 = scalar_select %p369, %s366, 1
      %s371 = smul.addr %s368, 6
      %s372 = sadd.s32 %s370, %s371
      %s373 = smul.addr %s372, 2
      %s374 = scalar_lea.vmem %s1, %s373
      %s375 = smul.u32 2, %s23
      %s376 = smul.u32 2, %s23
      %p377 = scmp.lt.s32.totalorder %s22, 1
      %s378 = scalar_select %p377, %s22, 1
      %p379 = scmp.lt.s32.totalorder %s376, 1
      %s380 = scalar_select %p379, %s376, 1
      %s381 = smul.addr %s378, 2
      %s382 = sadd.s32 %s380, %s381
      %s383 = smul.addr %s382, 2
      %s384 = scalar_lea.vmem %s2, %s383
      %s385 = smul.u32 2, %s23
      %s386 = smul.u32 32, %s24
      %p387 = scmp.lt.s32.totalorder %s22, 1
      %s388 = scalar_select %p387, %s22, 1
      %p389 = scmp.lt.s32.totalorder %s386, 31
      %s390 = scalar_select %p389, %s386, 31
      %s391 = smul.addr %s388, 32
      %s392 = sadd.s32 %s390, %s391
      %s393 = smul.addr %s392, 8
      %s394 = scalar_lea.vmem %s3, %s393
      %s395 = smul.u32 32, %s24
      %s396 = smul.u32 2, %s23
      %p397 = scmp.lt.s32.totalorder %s22, 1
      %s398 = scalar_select %p397, %s22, 1
      %p399 = scmp.lt.s32.totalorder %s396, 1
      %s400 = scalar_select %p399, %s396, 1
      %s401 = smul.addr %s398, 2
      %s402 = sadd.s32 %s400, %s401
      %s403 = smul.addr %s402, 4
      %s404 = scalar_lea.vmem %s6, %s403
      %s405 = smul.u32 2, %s23
      %p407 = scmp.eq.s32.totalorder %s24, 0
      // Predicated region
      $region45: #{dual_attention.5} parent=43 // pred_check
        %p408 = pneg %p407
      $region46: #{dual_attention.5} parent=43 // pred_check_branch
        %410 = sbr.rel (%p408) target = $region48
      $region47: #{dual_attention.5} parent=43 // pred_region
        %v411 = vlaneseq
        %vm412 = vcmp.ge.s32.totalorder %v411, 0
        %vm413 = vcmp.lt.s32.totalorder %v411, 256
        %vm414 = vmand %vm412, %vm413
        %415 = vst.msk [vmem:[#allocation2] sm:$0x3] %vm414, -inf
        %416 = vst.msk [vmem:[#allocation3] sm:$0x3] %vm414, 0.0
        %417 = vst [vmem:[#allocation4] sm:$0xff] 0.0
        %418 = vst [vmem:[#allocation5] sm:$0xff] 0.0
      $region48: #{dual_attention.5} parent=43 // pred_fallthru
        _
      %v419 = vld [vmem:[%s364] sm:$0xf]
      %s420 = scalar_lea.vmem %s364, 4
      %v421 = vld [vmem:[%s420] sm:$0xf]
      %s422 = scalar_lea.vmem %s364, 8
      %v423 = vld [vmem:[%s422] sm:$0xf]
      %v424 = vld [vmem:[%s374] sm:$0xf]
      %v425 = vld [vmem:[%s384] sm:$0xf]
      %v426 = vld [vmem:[%s394] sm:$0xff]
      %v427 = vld [vmem:[%s394 + $0x8] sm:$0xff]
      %v428 = vld [vmem:[%s394 + $0x10] sm:$0xff]
      %v429 = vld [vmem:[%s394 + $0x18] sm:$0xff]
      %v430 = vld [vmem:[%s394 + $0x20] sm:$0xff]
      %v431 = vld [vmem:[%s394 + $0x28] sm:$0xff]
      %v432 = vld [vmem:[%s394 + $0x30] sm:$0xff]
      %v433 = vld [vmem:[%s394 + $0x38] sm:$0xff]
      %v434 = vld [vmem:[%s394 + $0x40] sm:$0xff]
      %v435 = vld [vmem:[%s394 + $0x48] sm:$0xff]
      %v436 = vld [vmem:[%s394 + $0x50] sm:$0xff]
      %v437 = vld [vmem:[%s394 + $0x58] sm:$0xff]
      %v438 = vld [vmem:[%s394 + $0x60] sm:$0xff]
      %v439 = vld [vmem:[%s394 + $0x68] sm:$0xff]
      %v440 = vld [vmem:[%s394 + $0x70] sm:$0xff]
      %v441 = vld [vmem:[%s394 + $0x78] sm:$0xff]
      %v442 = vld [vmem:[%s394 + $0x80] sm:$0xff]
      %v443 = vld [vmem:[%s394 + $0x88] sm:$0xff]
      %v444 = vld [vmem:[%s394 + $0x90] sm:$0xff]
      %v445 = vld [vmem:[%s394 + $0x98] sm:$0xff]
      %v446 = vld [vmem:[%s394 + $0xa0] sm:$0xff]
      %v447 = vld [vmem:[%s394 + $0xa8] sm:$0xff]
      %v448 = vld [vmem:[%s394 + $0xb0] sm:$0xff]
      %v449 = vld [vmem:[%s394 + $0xb8] sm:$0xff]
      %v450 = vld [vmem:[%s394 + $0xc0] sm:$0xff]
      %v451 = vld [vmem:[%s394 + $0xc8] sm:$0xff]
      %v452 = vld [vmem:[%s394 + $0xd0] sm:$0xff]
      %v453 = vld [vmem:[%s394 + $0xd8] sm:$0xff]
      %v454 = vld [vmem:[%s394 + $0xe0] sm:$0xff]
      %v455 = vld [vmem:[%s394 + $0xe8] sm:$0xff]
      %v456 = vld [vmem:[%s394 + $0xf0] sm:$0xff]
      %v457 = vld [vmem:[%s394 + $0xf8] sm:$0xff]
      %v460 = vunpack.c.l.s4 1983009808
      %v461 = vunpack.c.0.s8 %v460
      %v462 = vlaneseq
      %v463 = vshrl.u32 %v462, 7
      %v464 = vsub.s32 %v461, %v463
      %v465 = vrot.slane %v421, %v464
      %v466 = vcombine.high %v465, %v465
      %469 = vxpose.xlu0.c.b16.start [1/8] %v465, 128
      %470 = vxpose.xlu0.c.b16.cont [2/8] 0, 128
      %471 = vxpose.xlu0.c.b16.cont [3/8] 0, 128
      %472 = vxpose.xlu0.c.b16.cont [4/8] 0, 128
      %473 = vxpose.xlu0.c.b16.cont [5/8] 0, 128
      %474 = vxpose.xlu0.c.b16.cont [6/8] 0, 128
      %475 = vxpose.xlu0.c.b16.cont [7/8] 0, 128
      %476 = vxpose.xlu0.c.b16.end [8/8] 0, 128
      %v477 = vpop.trf.xlu0
      %v478 = vpop.trf.xlu0
      %v479 = vpop.trf.xlu0
      %v480 = vpop.trf.xlu0
      %v481 = vpop.trf.xlu0
      %v482 = vpop.trf.xlu0
      %v483 = vpop.trf.xlu0
      %v484 = vpop.trf.xlu0
      %485 = vxpose.xlu0.c.b16.start [1/8] %v466, 128
      %486 = vxpose.xlu0.c.b16.cont [2/8] 0, 128
      %487 = vxpose.xlu0.c.b16.cont [3/8] 0, 128
      %488 = vxpose.xlu0.c.b16.cont [4/8] 0, 128
      %489 = vxpose.xlu0.c.b16.cont [5/8] 0, 128
      %490 = vxpose.xlu0.c.b16.cont [6/8] 0, 128
      %491 = vxpose.xlu0.c.b16.cont [7/8] 0, 128
      %492 = vxpose.xlu0.c.b16.end [8/8] 0, 128
      %v493 = vpop.trf.xlu0
      %v494 = vpop.trf.xlu0
      %v495 = vpop.trf.xlu0
      %v496 = vpop.trf.xlu0
      %v497 = vpop.trf.xlu0
      %v498 = vpop.trf.xlu0
      %v499 = vpop.trf.xlu0
      %v500 = vpop.trf.xlu0
      %v503 = vunpack.c.l.s4 1983009808
      %v504 = vunpack.c.0.s8 %v503
      %v505 = vlaneseq
      %v506 = vshrl.u32 %v505, 7
      %v507 = vsub.s32 %v504, %v506
      %v508 = vrot.slane %v425, %v507
      %v509 = vcombine.high %v508, %v508
      %vm510 = vcmask 31744
      %v512 = vsel %vm510, %v477, 0
      %v515 = vsel %vm510, %v478, 0
      %v518 = vsel %vm510, %v479, 0
      %v521 = vsel %vm510, %v480, 0
      %v524 = vsel %vm510, %v481, 0
      %v527 = vsel %vm510, %v482, 0
      %v530 = vsel %vm510, %v483, 0
      %v533 = vsel %vm510, %v484, 0
      %v536 = vsel %vm510, %v493, 0
      %v539 = vsel %vm510, %v494, 0
      %v542 = vsel %vm510, %v495, 0
      %v545 = vsel %vm510, %v496, 0
      %v548 = vsel %vm510, %v497, 0
      %v551 = vsel %vm510, %v498, 0
      %v554 = vsel %vm510, %v499, 0
      %v557 = vsel %vm510, %v500, 0
      %vm559 = vcmask 1041408
      %v561 = vsel %vm559, %v508, 0
      %v564 = vsel %vm559, %v509, 0
      %566 = vmatprep.subr.bf16.mxu0 %v564
      %567 = vmatpush1.bf16.msra.mxu0 %v561
      %568 = vmatprep.subr.bf16.mxu0 0
      %569 = vmatpush1.bf16.msra.mxu0 0
      %570 = vmatprep.subr.bf16.mxu0 0
      %571 = vmatpush1.bf16.msra.mxu0 0
      %572 = vmatprep.subr.bf16.mxu0 0
      %573 = vmatpush1.bf16.msra.mxu0 0
      %574 = vmatprep.subr.bf16.mxu0 0
      %575 = vmatpush1.bf16.msra.mxu0 0
      %576 = vmatprep.subr.bf16.mxu0 0
      %577 = vmatpush1.bf16.msra.mxu0 0
      %578 = vmatprep.subr.bf16.mxu0 0
      %579 = vmatpush1.bf16.msra.mxu0 0
      %580 = vmatprep.subr.bf16.mxu0 0
      %581 = vmatpush1.bf16.msra.mxu0 0
      %582 = vmatprep.subr.bf16.mxu0 0
      %583 = vmatpush1.bf16.msra.mxu0 0
      %584 = vmatprep.subr.bf16.mxu0 0
      %585 = vmatpush1.bf16.msra.mxu0 0
      %586 = vmatprep.subr.bf16.mxu0 0
      %587 = vmatpush1.bf16.msra.mxu0 0
      %588 = vmatprep.subr.bf16.mxu0 0
      %589 = vmatpush1.bf16.msra.mxu0 0
      %590 = vmatprep.subr.bf16.mxu0 0
      %591 = vmatpush1.bf16.msra.mxu0 0
      %592 = vmatprep.subr.bf16.mxu0 0
      %593 = vmatpush1.bf16.msra.mxu0 0
      %594 = vmatprep.subr.bf16.mxu0 0
      %595 = vmatpush1.bf16.msra.mxu0 0
      %596 = vmatprep.subr.bf16.mxu0 0
      %597 = vmatpush1.bf16.msra.mxu0 0
      %598 = vmatprep.mubr.bf16.mxu0 0
      %599 = vmatmul.mubr.bf16.gmra.mrb[0].mxu0 %v512
      %v600 = vpop.f32.mrb[0].mxu0
      %v601 = vadd.f32 0.0, %v600
      %v602 = vpop.f32.mrb[0].mxu0
      %v603 = vadd.f32 0.0, %v602
      %v604 = vpop.f32.mrb[0].mxu0
      %v605 = vadd.f32 0.0, %v604
      %v606 = vpop.f32.mrb[0].mxu0
      %v607 = vadd.f32 0.0, %v606
      %608 = vmatprep.mubr.bf16.mxu0 0
      %609 = vmatmul.mubr.bf16.gmra.mrb[0].mxu0 %v515
      %v610 = vpop.f32.mrb[0].mxu0
      %v611 = vadd.f32 0.0, %v610
      %v612 = vpop.f32.mrb[0].mxu0
      %v613 = vadd.f32 0.0, %v612
      %v614 = vpop.f32.mrb[0].mxu0
      %v615 = vadd.f32 0.0, %v614
      %v616 = vpop.f32.mrb[0].mxu0
      %v617 = vadd.f32 0.0, %v616
      %618 = vmatprep.mubr.bf16.mxu0 0
      %619 = vmatmul.mubr.bf16.gmra.mrb[0].mxu0 %v518
      %v620 = vpop.f32.mrb[0].mxu0
      %v621 = vadd.f32 0.0, %v620
      %v622 = vpop.f32.mrb[0].mxu0
      %v623 = vadd.f32 0.0, %v622
      %v624 = vpop.f32.mrb[0].mxu0
      %v625 = vadd.f32 0.0, %v624
      %v626 = vpop.f32.mrb[0].mxu0
      %v627 = vadd.f32 0.0, %v626
      %628 = vmatprep.mubr.bf16.mxu0 0
      %629 = vmatmul.mubr.bf16.gmra.mrb[0].mxu0 %v521
      %v630 = vpop.f32.mrb[0].mxu0
      %v631 = vadd.f32 0.0, %v630
      %v632 = vpop.f32.mrb[0].mxu0
      %v633 = vadd.f32 0.0, %v632
      %v634 = vpop.f32.mrb[0].mxu0
      %v635 = vadd.f32 0.0, %v634
      %v636 = vpop.f32.mrb[0].mxu0
      %v637 = vadd.f32 0.0, %v636
      %638 = vmatprep.mubr.bf16.mxu0 0
      %639 = vmatmul.mubr.bf16.gmra.mrb[0].mxu0 %v524
      %v640 = vpop.f32.mrb[0].mxu0
      %v641 = vadd.f32 0.0, %v640
      %v642 = vpop.f32.mrb[0].mxu0
      %v643 = vadd.f32 0.0, %v642
      %v644 = vpop.f32.mrb[0].mxu0
      %v645 = vadd.f32 0.0, %v644
      %v646 = vpop.f32.mrb[0].mxu0
      %v647 = vadd.f32 0.0, %v646
      %648 = vmatprep.mubr.bf16.mxu0 0
      %649 = vmatmul.mubr.bf16.gmra.mrb[0].mxu0 %v527
      %v650 = vpop.f32.mrb[0].mxu0
      %v651 = vadd.f32 0.0, %v650
      %v652 = vpop.f32.mrb[0].mxu0
      %v653 = vadd.f32 0.0, %v652
      %v654 = vpop.f32.mrb[0].mxu0
      %v655 = vadd.f32 0.0, %v654
      %v656 = vpop.f32.mrb[0].mxu0
      %v657 = vadd.f32 0.0, %v656
      %658 = vmatprep.mubr.bf16.mxu0 0
      %659 = vmatmul.mubr.bf16.gmra.mrb[0].mxu0 %v530
      %v660 = vpop.f32.mrb[0].mxu0
      %v661 = vadd.f32 0.0, %v660
      %v662 = vpop.f32.mrb[0].mxu0
      %v663 = vadd.f32 0.0, %v662
      %v664 = vpop.f32.mrb[0].mxu0
      %v665 = vadd.f32 0.0, %v664
      %v666 = vpop.f32.mrb[0].mxu0
      %v667 = vadd.f32 0.0, %v666
      %668 = vmatprep.mubr.bf16.mxu0 0
      %669 = vmatmul.mubr.bf16.gmra.mrb[0].mxu0 %v533
      %v670 = vpop.f32.mrb[0].mxu0
      %v671 = vadd.f32 0.0, %v670
      %v672 = vpop.f32.mrb[0].mxu0
      %v673 = vadd.f32 0.0, %v672
      %v674 = vpop.f32.mrb[0].mxu0
      %v675 = vadd.f32 0.0, %v674
      %v676 = vpop.f32.mrb[0].mxu0
      %v677 = vadd.f32 0.0, %v676
      %678 = vmatprep.mubr.bf16.mxu0 0
      %679 = vmatmul.mubr.bf16.gmra.mrb[0].mxu0 %v536
      %v680 = vpop.f32.mrb[0].mxu0
      %v681 = vadd.f32 0.0, %v680
      %v682 = vpop.f32.mrb[0].mxu0
      %v683 = vadd.f32 0.0, %v682
      %v684 = vpop.f32.mrb[0].mxu0
      %v685 = vadd.f32 0.0, %v684
      %v686 = vpop.f32.mrb[0].mxu0
      %v687 = vadd.f32 0.0, %v686
      %688 = vmatprep.mubr.bf16.mxu0 0
      %689 = vmatmul.mubr.bf16.gmra.mrb[0].mxu0 %v539
      %v690 = vpop.f32.mrb[0].mxu0
      %v691 = vadd.f32 0.0, %v690
      %v692 = vpop.f32.mrb[0].mxu0
      %v693 = vadd.f32 0.0, %v692
      %v694 = vpop.f32.mrb[0].mxu0
      %v695 = vadd.f32 0.0, %v694
      %v696 = vpop.f32.mrb[0].mxu0
      %v697 = vadd.f32 0.0, %v696
      %698 = vmatprep.mubr.bf16.mxu0 0
      %699 = vmatmul.mubr.bf16.gmra.mrb[0].mxu0 %v542
      %v700 = vpop.f32.mrb[0].mxu0
      %v701 = vadd.f32 0.0, %v700
      %v702 = vpop.f32.mrb[0].mxu0
      %v703 = vadd.f32 0.0, %v702
      %v704 = vpop.f32.mrb[0].mxu0
      %v705 = vadd.f32 0.0, %v704
      %v706 = vpop.f32.mrb[0].mxu0
      %v707 = vadd.f32 0.0, %v706
      %708 = vmatprep.mubr.bf16.mxu0 0
      %709 = vmatmul.mubr.bf16.gmra.mrb[0].mxu0 %v545
      %v710 = vpop.f32.mrb[0].mxu0
      %v711 = vadd.f32 0.0, %v710
      %v712 = vpop.f32.mrb[0].mxu0
      %v713 = vadd.f32 0.0, %v712
      %v714 = vpop.f32.mrb[0].mxu0
      %v715 = vadd.f32 0.0, %v714
      %v716 = vpop.f32.mrb[0].mxu0
      %v717 = vadd.f32 0.0, %v716
      %718 = vmatprep.mubr.bf16.mxu0 0
      %719 = vmatmul.mubr.bf16.gmra.mrb[0].mxu0 %v548
      %v720 = vpop.f32.mrb[0].mxu0
      %v721 = vadd.f32 0.0, %v720
      %v722 = vpop.f32.mrb[0].mxu0
      %v723 = vadd.f32 0.0, %v722
      %v724 = vpop.f32.mrb[0].mxu0
      %v725 = vadd.f32 0.0, %v724
      %v726 = vpop.f32.mrb[0].mxu0
      %v727 = vadd.f32 0.0, %v726
      %728 = vmatprep.mubr.bf16.mxu0 0
      %729 = vmatmul.mubr.bf16.gmra.mrb[0].mxu0 %v551
      %v730 = vpop.f32.mrb[0].mxu0
      %v731 = vadd.f32 0.0, %v730
      %v732 = vpop.f32.mrb[0].mxu0
      %v733 = vadd.f32 0.0, %v732
      %v734 = vpop.f32.mrb[0].mxu0
      %v735 = vadd.f32 0.0, %v734
      %v736 = vpop.f32.mrb[0].mxu0
      %v737 = vadd.f32 0.0, %v736
      %738 = vmatprep.mubr.bf16.mxu0 0
      %739 = vmatmul.mubr.bf16.gmra.mrb[0].mxu0 %v554
      %v740 = vpop.f32.mrb[0].mxu0
      %v741 = vadd.f32 0.0, %v740
      %v742 = vpop.f32.mrb[0].mxu0
      %v743 = vadd.f32 0.0, %v742
      %v744 = vpop.f32.mrb[0].mxu0
      %v745 = vadd.f32 0.0, %v744
      %v746 = vpop.f32.mrb[0].mxu0
      %v747 = vadd.f32 0.0, %v746
      %748 = vmatprep.mubr.bf16.mxu0 0
      %749 = vmatmul.mubr.bf16.gmra.mrb[0].mxu0 %v557
      %v750 = vpop.f32.mrb[0].mxu0
      %v751 = vadd.f32 0.0, %v750
      %v752 = vpop.f32.mrb[0].mxu0
      %v753 = vadd.f32 0.0, %v752
      %v754 = vpop.f32.mrb[0].mxu0
      %v755 = vadd.f32 0.0, %v754
      %v756 = vpop.f32.mrb[0].mxu0
      %v757 = vadd.f32 0.0, %v756
      %758 = vdwg.mxu0
      %v759 = vld [vmem:[#allocation2] sm:$0x3]
      %v760 = vmax.f32 %v601, %v611
      %v761 = vmax.f32 %v605, %v615
      %v762 = vmax.f32 %v760, %v621
      %v763 = vmax.f32 %v761, %v625
      %v764 = vmax.f32 %v762, %v631
      %v765 = vmax.f32 %v763, %v635
      %v766 = vmax.f32 %v764, %v641
      %v767 = vmax.f32 %v765, %v645
      %v768 = vmax.f32 %v766, %v651
      %v769 = vmax.f32 %v767, %v655
      %v770 = vmax.f32 %v768, %v661
      %v771 = vmax.f32 %v769, %v665
      %v772 = vmax.f32 %v770, %v671
      %v773 = vmax.f32 %v771, %v675
      %v774 = vmax.f32 %v772, %v681
      %v775 = vmax.f32 %v773, %v685
      %v776 = vmax.f32 %v774, %v691
      %v777 = vmax.f32 %v775, %v695
      %v778 = vmax.f32 %v776, %v701
      %v779 = vmax.f32 %v777, %v705
      %v780 = vmax.f32 %v778, %v711
      %v781 = vmax.f32 %v779, %v715
      %v782 = vmax.f32 %v780, %v721
      %v783 = vmax.f32 %v781, %v725
      %v784 = vmax.f32 %v782, %v731
      %v785 = vmax.f32 %v783, %v735
      %v786 = vmax.f32 %v784, %v741
      %v787 = vmax.f32 %v785, %v745
      %v788 = vmax.f32 %v786, %v751
      %v789 = vmax.f32 %v787, %v755
      %v790 = vmax.f32 %v788, %v789
      %v791 = vrot.slane %v790, 4
      %v792 = vmax.f32 %v790, %v791
      %v793 = vrot.slane %v792, 2
      %v794 = vmax.f32 %v792, %v793
      %v795 = vrot.slane %v794, 1
      %v796 = vmax.f32 %v794, %v795
      %v797 = vmax.f32 %v603, %v613
      %v798 = vmax.f32 %v607, %v617
      %v799 = vmax.f32 %v797, %v623
      %v800 = vmax.f32 %v798, %v627
      %v801 = vmax.f32 %v799, %v633
      %v802 = vmax.f32 %v800, %v637
      %v803 = vmax.f32 %v801, %v643
      %v804 = vmax.f32 %v802, %v647
      %v805 = vmax.f32 %v803, %v653
      %v806 = vmax.f32 %v804, %v657
      %v807 = vmax.f32 %v805, %v663
      %v808 = vmax.f32 %v806, %v667
      %v809 = vmax.f32 %v807, %v673
      %v810 = vmax.f32 %v808, %v677
      %v811 = vmax.f32 %v809, %v683
      %v812 = vmax.f32 %v810, %v687
      %v813 = vmax.f32 %v811, %v693
      %v814 = vmax.f32 %v812, %v697
      %v815 = vmax.f32 %v813, %v703
      %v816 = vmax.f32 %v814, %v707
      %v817 = vmax.f32 %v815, %v713
      %v818 = vmax.f32 %v816, %v717
      %v819 = vmax.f32 %v817, %v723
      %v820 = vmax.f32 %v818, %v727
      %v821 = vmax.f32 %v819, %v733
      %v822 = vmax.f32 %v820, %v737
      %v823 = vmax.f32 %v821, %v743
      %v824 = vmax.f32 %v822, %v747
      %v825 = vmax.f32 %v823, %v753
      %v826 = vmax.f32 %v824, %v757
      %v827 = vmax.f32 %v825, %v826
      %v828 = vrot.slane %v827, 4
      %v829 = vmax.f32 %v827, %v828
      %v830 = vrot.slane %v829, 2
      %v831 = vmax.f32 %v829, %v830
      %v832 = vrot.slane %v831, 1
      %v833 = vmax.f32 %v831, %v832
      %v836 = vcombine.low %v796, %v833
      %v838 = vunpack.c.l.s4 1966171168
      %v839 = vunpack.c.0.s8 %v838
      %v840 = vlaneseq
      %v841 = vshrl.u32 %v840, 7
      %v842 = vsub.s32 %v839, %v841
      %v843 = vrot.slane %v836, %v842
      %v845 = vunpack.c.l.s4 1966171168
      %v846 = vunpack.c.0.s8 %v845
      %v847 = vlaneseq
      %v848 = vshrl.u32 %v847, 7
      %v849 = vsub.s32 %v846, %v848
      %v850 = vrot.slane %v843, %v849
      %v852 = vmax.f32 %v759, %v850
      %v853 = vsub.f32 %v759, %v852
      %v854 = vmul.f32 %v853, 1.442695
      %v855 = vpow.pop %v854
      %v857 = vlaneseq
      %v858 = vshrl.u32 %v857, 7
      %v859 = vsub.s32 0, %v858
      %v860 = vrot.slane %v852, %v859
      %v861 = vlaneseq
      %v862 = vshrl.u32 %v861, 7
      %v863 = vsub.s32 1, %v862
      %v864 = vrot.slane %v852, %v863
      %v867 = vsub.f32 %v601, %v860
      %v868 = vsub.f32 %v603, %v864
      %v869 = vsub.f32 %v605, %v860
      %v870 = vsub.f32 %v607, %v864
      %v871 = vsub.f32 %v611, %v860
      %v872 = vsub.f32 %v613, %v864
      %v873 = vsub.f32 %v615, %v860
      %v874 = vsub.f32 %v617, %v864
      %v875 = vsub.f32 %v621, %v860
      %v876 = vsub.f32 %v623, %v864
      %v877 = vsub.f32 %v625, %v860
      %v878 = vsub.f32 %v627, %v864
      %v879 = vsub.f32 %v631, %v860
      %v880 = vsub.f32 %v633, %v864
      %v881 = vsub.f32 %v635, %v860
      %v882 = vsub.f32 %v637, %v864
      %v883 = vsub.f32 %v641, %v860
      %v884 = vsub.f32 %v643, %v864
      %v885 = vsub.f32 %v645, %v860
      %v886 = vsub.f32 %v647, %v864
      %v887 = vsub.f32 %v651, %v860
      %v888 = vsub.f32 %v653, %v864
      %v889 = vsub.f32 %v655, %v860
      %v890 = vsub.f32 %v657, %v864
      %v891 = vsub.f32 %v661, %v860
      %v892 = vsub.f32 %v663, %v864
      %v893 = vsub.f32 %v665, %v860
      %v894 = vsub.f32 %v667, %v864
      %v895 = vsub.f32 %v671, %v860
      %v896 = vsub.f32 %v673, %v864
      %v897 = vsub.f32 %v675, %v860
      %v898 = vsub.f32 %v677, %v864
      %v899 = vsub.f32 %v681, %v860
      %v900 = vsub.f32 %v683, %v864
      %v901 = vsub.f32 %v685, %v860
      %v902 = vsub.f32 %v687, %v864
      %v903 = vsub.f32 %v691, %v860
      %v904 = vsub.f32 %v693, %v864
      %v905 = vsub.f32 %v695, %v860
      %v906 = vsub.f32 %v697, %v864
      %v907 = vsub.f32 %v701, %v860
      %v908 = vsub.f32 %v703, %v864
      %v909 = vsub.f32 %v705, %v860
      %v910 = vsub.f32 %v707, %v864
      %v911 = vsub.f32 %v711, %v860
      %v912 = vsub.f32 %v713, %v864
      %v913 = vsub.f32 %v715, %v860
      %v914 = vsub.f32 %v717, %v864
      %v915 = vsub.f32 %v721, %v860
      %v916 = vsub.f32 %v723, %v864
      %v917 = vsub.f32 %v725, %v860
      %v918 = vsub.f32 %v727, %v864
      %v919 = vsub.f32 %v731, %v860
      %v920 = vsub.f32 %v733, %v864
      %v921 = vsub.f32 %v735, %v860
      %v922 = vsub.f32 %v737, %v864
      %v923 = vsub.f32 %v741, %v860
      %v924 = vsub.f32 %v743, %v864
      %v925 = vsub.f32 %v745, %v860
      %v926 = vsub.f32 %v747, %v864
      %v927 = vsub.f32 %v751, %v860
      %v928 = vsub.f32 %v753, %v864
      %v929 = vsub.f32 %v755, %v860
      %v930 = vsub.f32 %v757, %v864
      %v931 = vpack.c.bf16 %v869, %v867
      %v932 = vpack.c.bf16 %v870, %v868
      %v933 = vpack.c.bf16 %v873, %v871
      %v934 = vpack.c.bf16 %v874, %v872
      %v935 = vpack.c.bf16 %v877, %v875
      %v936 = vpack.c.bf16 %v878, %v876
      %v937 = vpack.c.bf16 %v881, %v879
      %v938 = vpack.c.bf16 %v882, %v880
      %v939 = vpack.c.bf16 %v885, %v883
      %v940 = vpack.c.bf16 %v886, %v884
      %v941 = vpack.c.bf16 %v889, %v887
      %v942 = vpack.c.bf16 %v890, %v888
      %v943 = vpack.c.bf16 %v893, %v891
      %v944 = vpack.c.bf16 %v894, %v892
      %v945 = vpack.c.bf16 %v897, %v895
      %v946 = vpack.c.bf16 %v898, %v896
      %v947 = vpack.c.bf16 %v901, %v899
      %v948 = vpack.c.bf16 %v902, %v900
      %v949 = vpack.c.bf16 %v905, %v903
      %v950 = vpack.c.bf16 %v906, %v904
      %v951 = vpack.c.bf16 %v909, %v907
      %v952 = vpack.c.bf16 %v910, %v908
      %v953 = vpack.c.bf16 %v913, %v911
      %v954 = vpack.c.bf16 %v914, %v912
      %v955 = vpack.c.bf16 %v917, %v915
      %v956 = vpack.c.bf16 %v918, %v916
      %v957 = vpack.c.bf16 %v921, %v919
      %v958 = vpack.c.bf16 %v922, %v920
      %v959 = vpack.c.bf16 %v925, %v923
      %v960 = vpack.c.bf16 %v926, %v924
      %v961 = vpack.c.bf16 %v929, %v927
      %v962 = vpack.c.bf16 %v930, %v928
      %v964 = vmul.bf16 %v931, 1069105081
      %v965 = vpow.bf16.pop %v964
      %v967 = vmul.bf16 %v932, 1069105081
      %v968 = vpow.bf16.pop %v967
      %v970 = vmul.bf16 %v933, 1069105081
      %v971 = vpow.bf16.pop %v970
      %v973 = vmul.bf16 %v934, 1069105081
      %v974 = vpow.bf16.pop %v973
      %v976 = vmul.bf16 %v935, 1069105081
      %v977 = vpow.bf16.pop %v976
      %v979 = vmul.bf16 %v936, 1069105081
      %v980 = vpow.bf16.pop %v979
      %v982 = vmul.bf16 %v937, 1069105081
      %v983 = vpow.bf16.pop %v982
      %v985 = vmul.bf16 %v938, 1069105081
      %v986 = vpow.bf16.pop %v985
      %v988 = vmul.bf16 %v939, 1069105081
      %v989 = vpow.bf16.pop %v988
      %v991 = vmul.bf16 %v940, 1069105081
      %v992 = vpow.bf16.pop %v991
      %v994 = vmul.bf16 %v941, 1069105081
      %v995 = vpow.bf16.pop %v994
      %v997 = vmul.bf16 %v942, 1069105081
      %v998 = vpow.bf16.pop %v997
      %v1000 = vmul.bf16 %v943, 1069105081
      %v1001 = vpow.bf16.pop %v1000
      %v1003 = vmul.bf16 %v944, 1069105081
      %v1004 = vpow.bf16.pop %v1003
      %v1006 = vmul.bf16 %v945, 1069105081
      %v1007 = vpow.bf16.pop %v1006
      %v1009 = vmul.bf16 %v946, 1069105081
      %v1010 = vpow.bf16.pop %v1009
      %v1012 = vmul.bf16 %v947, 1069105081
      %v1013 = vpow.bf16.pop %v1012
      %v1015 = vmul.bf16 %v948, 1069105081
      %v1016 = vpow.bf16.pop %v1015
      %v1018 = vmul.bf16 %v949, 1069105081
      %v1019 = vpow.bf16.pop %v1018
      %v1021 = vmul.bf16 %v950, 1069105081
      %v1022 = vpow.bf16.pop %v1021
      %v1024 = vmul.bf16 %v951, 1069105081
      %v1025 = vpow.bf16.pop %v1024
      %v1027 = vmul.bf16 %v952, 1069105081
      %v1028 = vpow.bf16.pop %v1027
      %v1030 = vmul.bf16 %v953, 1069105081
      %v1031 = vpow.bf16.pop %v1030
      %v1033 = vmul.bf16 %v954, 1069105081
      %v1034 = vpow.bf16.pop %v1033
      %v1036 = vmul.bf16 %v955, 1069105081
      %v1037 = vpow.bf16.pop %v1036
      %v1039 = vmul.bf16 %v956, 1069105081
      %v1040 = vpow.bf16.pop %v1039
      %v1042 = vmul.bf16 %v957, 1069105081
      %v1043 = vpow.bf16.pop %v1042
      %v1045 = vmul.bf16 %v958, 1069105081
      %v1046 = vpow.bf16.pop %v1045
      %v1048 = vmul.bf16 %v959, 1069105081
      %v1049 = vpow.bf16.pop %v1048
      %v1051 = vmul.bf16 %v960, 1069105081
      %v1052 = vpow.bf16.pop %v1051
      %v1054 = vmul.bf16 %v961, 1069105081
      %v1055 = vpow.bf16.pop %v1054
      %v1057 = vmul.bf16 %v962, 1069105081
      %v1058 = vpow.bf16.pop %v1057
      %v1059 = vld [vmem:[#allocation3] sm:$0x3]
      %v1060 = vmul.f32 %v855, %v1059
      %v1061 = vunpack.c.l.bf16 %v965
      %v1062 = vunpack.c.l.bf16 %v968
      %v1063 = vunpack.c.h.bf16 %v965
      %v1064 = vunpack.c.h.bf16 %v968
      %v1065 = vunpack.c.l.bf16 %v971
      %v1066 = vunpack.c.l.bf16 %v974
      %v1067 = vunpack.c.h.bf16 %v971
      %v1068 = vunpack.c.h.bf16 %v974
      %v1069 = vunpack.c.l.bf16 %v977
      %v1070 = vunpack.c.l.bf16 %v980
      %v1071 = vunpack.c.h.bf16 %v977
      %v1072 = vunpack.c.h.bf16 %v980
      %v1073 = vunpack.c.l.bf16 %v983
      %v1074 = vunpack.c.l.bf16 %v986
      %v1075 = vunpack.c.h.bf16 %v983
      %v1076 = vunpack.c.h.bf16 %v986
      %v1077 = vunpack.c.l.bf16 %v989
      %v1078 = vunpack.c.l.bf16 %v992
      %v1079 = vunpack.c.h.bf16 %v989
      %v1080 = vunpack.c.h.bf16 %v992
      %v1081 = vunpack.c.l.bf16 %v995
      %v1082 = vunpack.c.l.bf16 %v998
      %v1083 = vunpack.c.h.bf16 %v995
      %v1084 = vunpack.c.h.bf16 %v998
      %v1085 = vunpack.c.l.bf16 %v1001
      %v1086 = vunpack.c.l.bf16 %v1004
      %v1087 = vunpack.c.h.bf16 %v1001
      %v1088 = vunpack.c.h.bf16 %v1004
      %v1089 = vunpack.c.l.bf16 %v1007
      %v1090 = vunpack.c.l.bf16 %v1010
      %v1091 = vunpack.c.h.bf16 %v1007
      %v1092 = vunpack.c.h.bf16 %v1010
      %v1093 = vunpack.c.l.bf16 %v1013
      %v1094 = vunpack.c.l.bf16 %v1016
      %v1095 = vunpack.c.h.bf16 %v1013
      %v1096 = vunpack.c.h.bf16 %v1016
      %v1097 = vunpack.c.l.bf16 %v1019
      %v1098 = vunpack.c.l.bf16 %v1022
      %v1099 = vunpack.c.h.bf16 %v1019
      %v1100 = vunpack.c.h.bf16 %v1022
      %v1101 = vunpack.c.l.bf16 %v1025
      %v1102 = vunpack.c.l.bf16 %v1028
      %v1103 = vunpack.c.h.bf16 %v1025
      %v1104 = vunpack.c.h.bf16 %v1028
      %v1105 = vunpack.c.l.bf16 %v1031
      %v1106 = vunpack.c.l.bf16 %v1034
      %v1107 = vunpack.c.h.bf16 %v1031
      %v1108 = vunpack.c.h.bf16 %v1034
      %v1109 = vunpack.c.l.bf16 %v1037
      %v1110 = vunpack.c.l.bf16 %v1040
      %v1111 = vunpack.c.h.bf16 %v1037
      %v1112 = vunpack.c.h.bf16 %v1040
      %v1113 = vunpack.c.l.bf16 %v1043
      %v1114 = vunpack.c.l.bf16 %v1046
      %v1115 = vunpack.c.h.bf16 %v1043
      %v1116 = vunpack.c.h.bf16 %v1046
      %v1117 = vunpack.c.l.bf16 %v1049
      %v1118 = vunpack.c.l.bf16 %v1052
      %v1119 = vunpack.c.h.bf16 %v1049
      %v1120 = vunpack.c.h.bf16 %v1052
      %v1121 = vunpack.c.l.bf16 %v1055
      %v1122 = vunpack.c.l.bf16 %v1058
      %v1123 = vunpack.c.h.bf16 %v1055
      %v1124 = vunpack.c.h.bf16 %v1058
      %v1125 = vadd.f32 %v1061, %v1063
      %v1126 = vadd.f32 %v1125, %v1065
      %v1127 = vadd.f32 %v1126, %v1067
      %v1128 = vadd.f32 %v1127, %v1069
      %v1129 = vadd.f32 %v1128, %v1071
      %v1130 = vadd.f32 %v1129, %v1073
      %v1131 = vadd.f32 %v1130, %v1075
      %v1132 = vadd.f32 %v1131, %v1077
      %v1133 = vadd.f32 %v1132, %v1079
      %v1134 = vadd.f32 %v1133, %v1081
      %v1135 = vadd.f32 %v1134, %v1083
      %v1136 = vadd.f32 %v1135, %v1085
      %v1137 = vadd.f32 %v1136, %v1087
      %v1138 = vadd.f32 %v1137, %v1089
      %v1139 = vadd.f32 %v1138, %v1091
      %v1140 = vadd.f32 %v1139, %v1093
      %v1141 = vadd.f32 %v1140, %v1095
      %v1142 = vadd.f32 %v1141, %v1097
      %v1143 = vadd.f32 %v1142, %v1099
      %v1144 = vadd.f32 %v1143, %v1101
      %v1145 = vadd.f32 %v1144, %v1103
      %v1146 = vadd.f32 %v1145, %v1105
      %v1147 = vadd.f32 %v1146, %v1107
      %v1148 = vadd.f32 %v1147, %v1109
      %v1149 = vadd.f32 %v1148, %v1111
      %v1150 = vadd.f32 %v1149, %v1113
      %v1151 = vadd.f32 %v1150, %v1115
      %v1152 = vadd.f32 %v1151, %v1117
      %v1153 = vadd.f32 %v1152, %v1119
      %v1154 = vadd.f32 %v1153, %v1121
      %v1155 = vadd.f32 %v1154, %v1123
      %v1156 = vrot.slane %v1155, 4
      %v1157 = vadd.f32 %v1155, %v1156
      %v1158 = vrot.slane %v1157, 2
      %v1159 = vadd.f32 %v1157, %v1158
      %v1160 = vrot.slane %v1159, 1
      %v1161 = vadd.f32 %v1159, %v1160
      %v1162 = vadd.f32 %v1062, %v1064
      %v1163 = vadd.f32 %v1162, %v1066
      %v1164 = vadd.f32 %v1163, %v1068
      %v1165 = vadd.f32 %v1164, %v1070
      %v1166 = vadd.f32 %v1165, %v1072
      %v1167 = vadd.f32 %v1166, %v1074
      %v1168 = vadd.f32 %v1167, %v1076
      %v1169 = vadd.f32 %v1168, %v1078
      %v1170 = vadd.f32 %v1169, %v1080
      %v1171 = vadd.f32 %v1170, %v1082
      %v1172 = vadd.f32 %v1171, %v1084
      %v1173 = vadd.f32 %v1172, %v1086
      %v1174 = vadd.f32 %v1173, %v1088
      %v1175 = vadd.f32 %v1174, %v1090
      %v1176 = vadd.f32 %v1175, %v1092
      %v1177 = vadd.f32 %v1176, %v1094
      %v1178 = vadd.f32 %v1177, %v1096
      %v1179 = vadd.f32 %v1178, %v1098
      %v1180 = vadd.f32 %v1179, %v1100
      %v1181 = vadd.f32 %v1180, %v1102
      %v1182 = vadd.f32 %v1181, %v1104
      %v1183 = vadd.f32 %v1182, %v1106
      %v1184 = vadd.f32 %v1183, %v1108
      %v1185 = vadd.f32 %v1184, %v1110
      %v1186 = vadd.f32 %v1185, %v1112
      %v1187 = vadd.f32 %v1186, %v1114
      %v1188 = vadd.f32 %v1187, %v1116
      %v1189 = vadd.f32 %v1188, %v1118
      %v1190 = vadd.f32 %v1189, %v1120
      %v1191 = vadd.f32 %v1190, %v1122
      %v1192 = vadd.f32 %v1191, %v1124
      %v1193 = vrot.slane %v1192, 4
      %v1194 = vadd.f32 %v1192, %v1193
      %v1195 = vrot.slane %v1194, 2
      %v1196 = vadd.f32 %v1194, %v1195
      %v1197 = vrot.slane %v1196, 1
      %v1198 = vadd.f32 %v1196, %v1197
      %v1201 = vcombine.low %v1161, %v1198
      %v1203 = vunpack.c.l.s4 1966171168
      %v1204 = vunpack.c.0.s8 %v1203
      %v1205 = vlaneseq
      %v1206 = vshrl.u32 %v1205, 7
      %v1207 = vsub.s32 %v1204, %v1206
      %v1208 = vrot.slane %v1201, %v1207
      %v1210 = vunpack.c.l.s4 1966171168
      %v1211 = vunpack.c.0.s8 %v1210
      %v1212 = vlaneseq
      %v1213 = vshrl.u32 %v1212, 7
      %v1214 = vsub.s32 %v1211, %v1213
      %v1215 = vrot.slane %v1208, %v1214
      %v1217 = vadd.f32 %v1060, %v1215
      %v1218 = vlaneseq
      %vm1219 = vcmp.ge.s32.totalorder %v1218, 0
      %vm1220 = vcmp.lt.s32.totalorder %v1218, 256
      %vm1221 = vmand %vm1219, %vm1220
      %1222 = vst.msk [vmem:[#allocation3] sm:$0x3] %vm1221, %v1217
      %v1223 = vld [vmem:[#allocation4] sm:$0xff]
      %v1225 = vlaneseq
      %v1226 = vshrl.u32 %v1225, 7
      %v1227 = vsub.s32 0, %v1226
      %v1228 = vrot.slane %v855, %v1227
      %v1229 = vlaneseq
      %v1230 = vshrl.u32 %v1229, 7
      %v1231 = vsub.s32 1, %v1230
      %v1232 = vrot.slane %v855, %v1231
      %v1236 = vcombine.high %v1223, %v1223
      %v1238 = vmul.f32 %v1228, %v1223
      %v1239 = vmul.f32 %v1232, %v1236
      %v1242 = vunpack.c.l.s4 1983009808
      %v1243 = vunpack.c.0.s8 %v1242
      %v1244 = vlaneseq
      %v1245 = vshrl.u32 %v1244, 7
      %v1246 = vsub.s32 %v1243, %v1245
      %v1247 = vrot.slane %v423, %v1246
      %v1248 = vcombine.high %v1247, %v1247
      %1251 = vmatprep.subr.bf16.mxu0 %v968
      %1252 = vmatpush1.bf16.msra.mxu0 %v965
      %1253 = vmatprep.subr.bf16.mxu0 %v974
      %1254 = vmatpush1.bf16.msra.mxu0 %v971
      %1255 = vmatprep.subr.bf16.mxu0 %v980
      %1256 = vmatpush1.bf16.msra.mxu0 %v977
      %1257 = vmatprep.subr.bf16.mxu0 %v986
      %1258 = vmatpush1.bf16.msra.mxu0 %v983
      %1259 = vmatprep.subr.bf16.mxu0 %v992
      %1260 = vmatpush1.bf16.msra.mxu0 %v989
      %1261 = vmatprep.subr.bf16.mxu0 %v998
      %1262 = vmatpush1.bf16.msra.mxu0 %v995
      %1263 = vmatprep.subr.bf16.mxu0 %v1004
      %1264 = vmatpush1.bf16.msra.mxu0 %v1001
      %1265 = vmatprep.subr.bf16.mxu0 %v1010
      %1266 = vmatpush1.bf16.msra.mxu0 %v1007
      %1267 = vmatprep.subr.bf16.mxu0 %v1016
      %1268 = vmatpush1.bf16.msra.mxu0 %v1013
      %1269 = vmatprep.subr.bf16.mxu0 %v1022
      %1270 = vmatpush1.bf16.msra.mxu0 %v1019
      %1271 = vmatprep.subr.bf16.mxu0 %v1028
      %1272 = vmatpush1.bf16.msra.mxu0 %v1025
      %1273 = vmatprep.subr.bf16.mxu0 %v1034
      %1274 = vmatpush1.bf16.msra.mxu0 %v1031
      %1275 = vmatprep.subr.bf16.mxu0 %v1040
      %1276 = vmatpush1.bf16.msra.mxu0 %v1037
      %1277 = vmatprep.subr.bf16.mxu0 %v1046
      %1278 = vmatpush1.bf16.msra.mxu0 %v1043
      %1279 = vmatprep.subr.bf16.mxu0 %v1052
      %1280 = vmatpush1.bf16.msra.mxu0 %v1049
      %1281 = vmatprep.subr.bf16.mxu0 %v1058
      %1282 = vmatpush1.bf16.msra.mxu0 %v1055
      %1283 = vmatprep.mubr.bf16.mxu0 %v1248
      %1284 = vmatmul.mubr.bf16.gmra.mrb[0].mxu0 %v1247
      %v1285 = vpop.f32.mrb[0].mxu0
      %v1286 = vadd.f32 0.0, %v1285
      %v1287 = vpop.f32.mrb[0].mxu0
      %v1288 = vadd.f32 0.0, %v1287
      %v1289 = vpop.f32.mrb[0].mxu0
      %v1290 = vpop.f32.mrb[0].mxu0
      %1291 = vdwg.mxu0
      %v1292 = vadd.f32 %v1238, %v1286
      %v1293 = vadd.f32 %v1239, %v1288
      %v1296 = vcombine.low %v1292, %v1293
      %1298 = vst [vmem:[#allocation4] sm:$0xff] %v1296
      %1299 = vst.msk [vmem:[#allocation2] sm:$0x3] %vm1221, %v852
      %v1302 = vunpack.c.l.s4 1983009808
      %v1303 = vunpack.c.0.s8 %v1302
      %v1304 = vlaneseq
      %v1305 = vshrl.u32 %v1304, 7
      %v1306 = vsub.s32 %v1303, %v1305
      %v1307 = vrot.slane %v419, %v1306
      %v1308 = vcombine.high %v1307, %v1307
      %1311 = vxpose.xlu0.c.b16.start [1/8] %v1307, 128
      %1312 = vxpose.xlu0.c.b16.cont [2/8] 0, 128
      %1313 = vxpose.xlu0.c.b16.cont [3/8] 0, 128
      %1314 = vxpose.xlu0.c.b16.cont [4/8] 0, 128
      %1315 = vxpose.xlu0.c.b16.cont [5/8] 0, 128
      %1316 = vxpose.xlu0.c.b16.cont [6/8] 0, 128
      %1317 = vxpose.xlu0.c.b16.cont [7/8] 0, 128
      %1318 = vxpose.xlu0.c.b16.end [8/8] 0, 128
      %v1319 = vpop.trf.xlu0
      %v1320 = vpop.trf.xlu0
      %v1321 = vpop.trf.xlu0
      %v1322 = vpop.trf.xlu0
      %v1323 = vpop.trf.xlu0
      %v1324 = vpop.trf.xlu0
      %v1325 = vpop.trf.xlu0
      %v1326 = vpop.trf.xlu0
      %1327 = vxpose.xlu0.c.b16.start [1/8] %v1308, 128
      %1328 = vxpose.xlu0.c.b16.cont [2/8] 0, 128
      %1329 = vxpose.xlu0.c.b16.cont [3/8] 0, 128
      %1330 = vxpose.xlu0.c.b16.cont [4/8] 0, 128
      %1331 = vxpose.xlu0.c.b16.cont [5/8] 0, 128
      %1332 = vxpose.xlu0.c.b16.cont [6/8] 0, 128
      %1333 = vxpose.xlu0.c.b16.cont [7/8] 0, 128
      %1334 = vxpose.xlu0.c.b16.end [8/8] 0, 128
      %v1335 = vpop.trf.xlu0
      %v1336 = vpop.trf.xlu0
      %v1337 = vpop.trf.xlu0
      %v1338 = vpop.trf.xlu0
      %v1339 = vpop.trf.xlu0
      %v1340 = vpop.trf.xlu0
      %v1341 = vpop.trf.xlu0
      %v1342 = vpop.trf.xlu0
      %v1345 = vunpack.c.l.s4 1983009808
      %v1346 = vunpack.c.0.s8 %v1345
      %v1347 = vlaneseq
      %v1348 = vshrl.u32 %v1347, 7
      %v1349 = vsub.s32 %v1346, %v1348
      %v1350 = vrot.slane %v424, %v1349
      %v1351 = vcombine.high %v1350, %v1350
      %v1353 = vsel %vm510, %v1319, 0
      %v1356 = vsel %vm510, %v1320, 0
      %v1359 = vsel %vm510, %v1321, 0
      %v1362 = vsel %vm510, %v1322, 0
      %v1365 = vsel %vm510, %v1323, 0
      %v1368 = vsel %vm510, %v1324, 0
      %v1371 = vsel %vm510, %v1325, 0
      %v1374 = vsel %vm510, %v1326, 0
      %v1377 = vsel %vm510, %v1335, 0
      %v1380 = vsel %vm510, %v1336, 0
      %v1383 = vsel %vm510, %v1337, 0
      %v1386 = vsel %vm510, %v1338, 0
      %v1389 = vsel %vm510, %v1339, 0
      %v1392 = vsel %vm510, %v1340, 0
      %v1395 = vsel %vm510, %v1341, 0
      %v1398 = vsel %vm510, %v1342, 0
      %v1401 = vsel %vm559, %v1350, 0
      %v1404 = vsel %vm559, %v1351, 0
      %1406 = vmatprep.subr.bf16.mxu0 %v1404
      %1407 = vmatpush1.bf16.msra.mxu0 %v1401
      %1408 = vmatprep.subr.bf16.mxu0 0
      %1409 = vmatpush1.bf16.msra.mxu0 0
      %1410 = vmatprep.subr.bf16.mxu0 0
      %1411 = vmatpush1.bf16.msra.mxu0 0
      %1412 = vmatprep.subr.bf16.mxu0 0
      %1413 = vmatpush1.bf16.msra.mxu0 0
      %1414 = vmatprep.subr.bf16.mxu0 0
      %1415 = vmatpush1.bf16.msra.mxu0 0
      %1416 = vmatprep.subr.bf16.mxu0 0
      %1417 = vmatpush1.bf16.msra.mxu0 0
      %1418 = vmatprep.subr.bf16.mxu0 0
      %1419 = vmatpush1.bf16.msra.mxu0 0
      %1420 = vmatprep.subr.bf16.mxu0 0
      %1421 = vmatpush1.bf16.msra.mxu0 0
      %1422 = vmatprep.subr.bf16.mxu0 0
      %1423 = vmatpush1.bf16.msra.mxu0 0
      %1424 = vmatprep.subr.bf16.mxu0 0
      %1425 = vmatpush1.bf16.msra.mxu0 0
      %1426 = vmatprep.subr.bf16.mxu0 0
      %1427 = vmatpush1.bf16.msra.mxu0 0
      %1428 = vmatprep.subr.bf16.mxu0 0
      %1429 = vmatpush1.bf16.msra.mxu0 0
      %1430 = vmatprep.subr.bf16.mxu0 0
      %1431 = vmatpush1.bf16.msra.mxu0 0
      %1432 = vmatprep.subr.bf16.mxu0 0
      %1433 = vmatpush1.bf16.msra.mxu0 0
      %1434 = vmatprep.subr.bf16.mxu0 0
      %1435 = vmatpush1.bf16.msra.mxu0 0
      %1436 = vmatprep.subr.bf16.mxu0 0
      %1437 = vmatpush1.bf16.msra.mxu0 0
      %1438 = vmatprep.mubr.bf16.mxu0 0
      %1439 = vmatmul.mubr.bf16.gmra.mrb[0].mxu0 %v1353
      %v1440 = vpop.f32.mrb[0].mxu0
      %v1441 = vadd.f32 0.0, %v1440
      %v1442 = vpop.f32.mrb[0].mxu0
      %v1443 = vadd.f32 0.0, %v1442
      %v1444 = vpop.f32.mrb[0].mxu0
      %v1445 = vadd.f32 0.0, %v1444
      %v1446 = vpop.f32.mrb[0].mxu0
      %v1447 = vadd.f32 0.0, %v1446
      %1448 = vmatprep.mubr.bf16.mxu0 0
      %1449 = vmatmul.mubr.bf16.gmra.mrb[0].mxu0 %v1356
      %v1450 = vpop.f32.mrb[0].mxu0
      %v1451 = vadd.f32 0.0, %v1450
      %v1452 = vpop.f32.mrb[0].mxu0
      %v1453 = vadd.f32 0.0, %v1452
      %v1454 = vpop.f32.mrb[0].mxu0
      %v1455 = vadd.f32 0.0, %v1454
      %v1456 = vpop.f32.mrb[0].mxu0
      %v1457 = vadd.f32 0.0, %v1456
      %1458 = vmatprep.mubr.bf16.mxu0 0
      %1459 = vmatmul.mubr.bf16.gmra.mrb[0].mxu0 %v1359
      %v1460 = vpop.f32.mrb[0].mxu0
      %v1461 = vadd.f32 0.0, %v1460
      %v1462 = vpop.f32.mrb[0].mxu0
      %v1463 = vadd.f32 0.0, %v1462
      %v1464 = vpop.f32.mrb[0].mxu0
      %v1465 = vadd.f32 0.0, %v1464
      %v1466 = vpop.f32.mrb[0].mxu0
      %v1467 = vadd.f32 0.0, %v1466
      %1468 = vmatprep.mubr.bf16.mxu0 0
      %1469 = vmatmul.mubr.bf16.gmra.mrb[0].mxu0 %v1362
      %v1470 = vpop.f32.mrb[0].mxu0
      %v1471 = vadd.f32 0.0, %v1470
      %v1472 = vpop.f32.mrb[0].mxu0
      %v1473 = vadd.f32 0.0, %v1472
      %v1474 = vpop.f32.mrb[0].mxu0
      %v1475 = vadd.f32 0.0, %v1474
      %v1476 = vpop.f32.mrb[0].mxu0
      %v1477 = vadd.f32 0.0, %v1476
      %1478 = vmatprep.mubr.bf16.mxu0 0
      %1479 = vmatmul.mubr.bf16.gmra.mrb[0].mxu0 %v1365
      %v1480 = vpop.f32.mrb[0].mxu0
      %v1481 = vadd.f32 0.0, %v1480
      %v1482 = vpop.f32.mrb[0].mxu0
      %v1483 = vadd.f32 0.0, %v1482
      %v1484 = vpop.f32.mrb[0].mxu0
      %v1485 = vadd.f32 0.0, %v1484
      %v1486 = vpop.f32.mrb[0].mxu0
      %v1487 = vadd.f32 0.0, %v1486
      %1488 = vmatprep.mubr.bf16.mxu0 0
      %1489 = vmatmul.mubr.bf16.gmra.mrb[0].mxu0 %v1368
      %v1490 = vpop.f32.mrb[0].mxu0
      %v1491 = vadd.f32 0.0, %v1490
      %v1492 = vpop.f32.mrb[0].mxu0
      %v1493 = vadd.f32 0.0, %v1492
      %v1494 = vpop.f32.mrb[0].mxu0
      %v1495 = vadd.f32 0.0, %v1494
      %v1496 = vpop.f32.mrb[0].mxu0
      %v1497 = vadd.f32 0.0, %v1496
      %1498 = vmatprep.mubr.bf16.mxu0 0
      %1499 = vmatmul.mubr.bf16.gmra.mrb[0].mxu0 %v1371
      %v1500 = vpop.f32.mrb[0].mxu0
      %v1501 = vadd.f32 0.0, %v1500
      %v1502 = vpop.f32.mrb[0].mxu0
      %v1503 = vadd.f32 0.0, %v1502
      %v1504 = vpop.f32.mrb[0].mxu0
      %v1505 = vadd.f32 0.0, %v1504
      %v1506 = vpop.f32.mrb[0].mxu0
      %v1507 = vadd.f32 0.0, %v1506
      %1508 = vmatprep.mubr.bf16.mxu0 0
      %1509 = vmatmul.mubr.bf16.gmra.mrb[0].mxu0 %v1374
      %v1510 = vpop.f32.mrb[0].mxu0
      %v1511 = vadd.f32 0.0, %v1510
      %v1512 = vpop.f32.mrb[0].mxu0
      %v1513 = vadd.f32 0.0, %v1512
      %v1514 = vpop.f32.mrb[0].mxu0
      %v1515 = vadd.f32 0.0, %v1514
      %v1516 = vpop.f32.mrb[0].mxu0
      %v1517 = vadd.f32 0.0, %v1516
      %1518 = vmatprep.mubr.bf16.mxu0 0
      %1519 = vmatmul.mubr.bf16.gmra.mrb[0].mxu0 %v1377
      %v1520 = vpop.f32.mrb[0].mxu0
      %v1521 = vadd.f32 0.0, %v1520
      %v1522 = vpop.f32.mrb[0].mxu0
      %v1523 = vadd.f32 0.0, %v1522
      %v1524 = vpop.f32.mrb[0].mxu0
      %v1525 = vadd.f32 0.0, %v1524
      %v1526 = vpop.f32.mrb[0].mxu0
      %v1527 = vadd.f32 0.0, %v1526
      %1528 = vmatprep.mubr.bf16.mxu0 0
      %1529 = vmatmul.mubr.bf16.gmra.mrb[0].mxu0 %v1380
      %v1530 = vpop.f32.mrb[0].mxu0
      %v1531 = vadd.f32 0.0, %v1530
      %v1532 = vpop.f32.mrb[0].mxu0
      %v1533 = vadd.f32 0.0, %v1532
      %v1534 = vpop.f32.mrb[0].mxu0
      %v1535 = vadd.f32 0.0, %v1534
      %v1536 = vpop.f32.mrb[0].mxu0
      %v1537 = vadd.f32 0.0, %v1536
      %1538 = vmatprep.mubr.bf16.mxu0 0
      %1539 = vmatmul.mubr.bf16.gmra.mrb[0].mxu0 %v1383
      %v1540 = vpop.f32.mrb[0].mxu0
      %v1541 = vadd.f32 0.0, %v1540
      %v1542 = vpop.f32.mrb[0].mxu0
      %v1543 = vadd.f32 0.0, %v1542
      %v1544 = vpop.f32.mrb[0].mxu0
      %v1545 = vadd.f32 0.0, %v1544
      %v1546 = vpop.f32.mrb[0].mxu0
      %v1547 = vadd.f32 0.0, %v1546
      %1548 = vmatprep.mubr.bf16.mxu0 0
      %1549 = vmatmul.mubr.bf16.gmra.mrb[0].mxu0 %v1386
      %v1550 = vpop.f32.mrb[0].mxu0
      %v1551 = vadd.f32 0.0, %v1550
      %v1552 = vpop.f32.mrb[0].mxu0
      %v1553 = vadd.f32 0.0, %v1552
      %v1554 = vpop.f32.mrb[0].mxu0
      %v1555 = vadd.f32 0.0, %v1554
      %v1556 = vpop.f32.mrb[0].mxu0
      %v1557 = vadd.f32 0.0, %v1556
      %1558 = vmatprep.mubr.bf16.mxu0 0
      %1559 = vmatmul.mubr.bf16.gmra.mrb[0].mxu0 %v1389
      %v1560 = vpop.f32.mrb[0].mxu0
      %v1561 = vadd.f32 0.0, %v1560
      %v1562 = vpop.f32.mrb[0].mxu0
      %v1563 = vadd.f32 0.0, %v1562
      %v1564 = vpop.f32.mrb[0].mxu0
      %v1565 = vadd.f32 0.0, %v1564
      %v1566 = vpop.f32.mrb[0].mxu0
      %v1567 = vadd.f32 0.0, %v1566
      %1568 = vmatprep.mubr.bf16.mxu0 0
      %1569 = vmatmul.mubr.bf16.gmra.mrb[0].mxu0 %v1392
      %v1570 = vpop.f32.mrb[0].mxu0
      %v1571 = vadd.f32 0.0, %v1570
      %v1572 = vpop.f32.mrb[0].mxu0
      %v1573 = vadd.f32 0.0, %v1572
      %v1574 = vpop.f32.mrb[0].mxu0
      %v1575 = vadd.f32 0.0, %v1574
      %v1576 = vpop.f32.mrb[0].mxu0
      %v1577 = vadd.f32 0.0, %v1576
      %1578 = vmatprep.mubr.bf16.mxu0 0
      %1579 = vmatmul.mubr.bf16.gmra.mrb[0].mxu0 %v1395
      %v1580 = vpop.f32.mrb[0].mxu0
      %v1581 = vadd.f32 0.0, %v1580
      %v1582 = vpop.f32.mrb[0].mxu0
      %v1583 = vadd.f32 0.0, %v1582
      %v1584 = vpop.f32.mrb[0].mxu0
      %v1585 = vadd.f32 0.0, %v1584
      %v1586 = vpop.f32.mrb[0].mxu0
      %v1587 = vadd.f32 0.0, %v1586
      %1588 = vmatprep.mubr.bf16.mxu0 0
      %1589 = vmatmul.mubr.bf16.gmra.mrb[0].mxu0 %v1398
      %v1590 = vpop.f32.mrb[0].mxu0
      %v1591 = vadd.f32 0.0, %v1590
      %v1592 = vpop.f32.mrb[0].mxu0
      %v1593 = vadd.f32 0.0, %v1592
      %v1594 = vpop.f32.mrb[0].mxu0
      %v1595 = vadd.f32 0.0, %v1594
      %v1596 = vpop.f32.mrb[0].mxu0
      %v1597 = vadd.f32 0.0, %v1596
      %1598 = vdwg.mxu0
      %1600 = vset.pattern.permute.xlu0 0
      %1601 = vperm.xlu0 %1600, %v426
      %v1602 = vpop.permute.xlu0 %1601
      %1605 = vset.pattern.permute.xlu0 0
      %1606 = vperm.xlu0 %1605, %v427
      %v1607 = vpop.permute.xlu0 %1606
      %1610 = vset.pattern.permute.xlu0 0
      %1611 = vperm.xlu0 %1610, %v428
      %v1612 = vpop.permute.xlu0 %1611
      %1615 = vset.pattern.permute.xlu0 0
      %1616 = vperm.xlu0 %1615, %v429
      %v1617 = vpop.permute.xlu0 %1616
      %1620 = vset.pattern.permute.xlu0 0
      %1621 = vperm.xlu0 %1620, %v430
      %v1622 = vpop.permute.xlu0 %1621
      %1625 = vset.pattern.permute.xlu0 0
      %1626 = vperm.xlu0 %1625, %v431
      %v1627 = vpop.permute.xlu0 %1626
      %1630 = vset.pattern.permute.xlu0 0
      %1631 = vperm.xlu0 %1630, %v432
      %v1632 = vpop.permute.xlu0 %1631
      %1635 = vset.pattern.permute.xlu0 0
      %1636 = vperm.xlu0 %1635, %v433
      %v1637 = vpop.permute.xlu0 %1636
      %1640 = vset.pattern.permute.xlu0 0
      %1641 = vperm.xlu0 %1640, %v434
      %v1642 = vpop.permute.xlu0 %1641
      %1645 = vset.pattern.permute.xlu0 0
      %1646 = vperm.xlu0 %1645, %v435
      %v1647 = vpop.permute.xlu0 %1646
      %1650 = vset.pattern.permute.xlu0 0
      %1651 = vperm.xlu0 %1650, %v436
      %v1652 = vpop.permute.xlu0 %1651
      %1655 = vset.pattern.permute.xlu0 0
      %1656 = vperm.xlu0 %1655, %v437
      %v1657 = vpop.permute.xlu0 %1656
      %1660 = vset.pattern.permute.xlu0 0
      %1661 = vperm.xlu0 %1660, %v438
      %v1662 = vpop.permute.xlu0 %1661
      %1665 = vset.pattern.permute.xlu0 0
      %1666 = vperm.xlu0 %1665, %v439
      %v1667 = vpop.permute.xlu0 %1666
      %1670 = vset.pattern.permute.xlu0 0
      %1671 = vperm.xlu0 %1670, %v440
      %v1672 = vpop.permute.xlu0 %1671
      %1675 = vset.pattern.permute.xlu0 0
      %1676 = vperm.xlu0 %1675, %v441
      %v1677 = vpop.permute.xlu0 %1676
      %1680 = vset.pattern.permute.xlu0 0
      %1681 = vperm.xlu0 %1680, %v442
      %v1682 = vpop.permute.xlu0 %1681
      %1685 = vset.pattern.permute.xlu0 0
      %1686 = vperm.xlu0 %1685, %v443
      %v1687 = vpop.permute.xlu0 %1686
      %1690 = vset.pattern.permute.xlu0 0
      %1691 = vperm.xlu0 %1690, %v444
      %v1692 = vpop.permute.xlu0 %1691
      %1695 = vset.pattern.permute.xlu0 0
      %1696 = vperm.xlu0 %1695, %v445
      %v1697 = vpop.permute.xlu0 %1696
      %1700 = vset.pattern.permute.xlu0 0
      %1701 = vperm.xlu0 %1700, %v446
      %v1702 = vpop.permute.xlu0 %1701
      %1705 = vset.pattern.permute.xlu0 0
      %1706 = vperm.xlu0 %1705, %v447
      %v1707 = vpop.permute.xlu0 %1706
      %1710 = vset.pattern.permute.xlu0 0
      %1711 = vperm.xlu0 %1710, %v448
      %v1712 = vpop.permute.xlu0 %1711
      %1715 = vset.pattern.permute.xlu0 0
      %1716 = vperm.xlu0 %1715, %v449
      %v1717 = vpop.permute.xlu0 %1716
      %1720 = vset.pattern.permute.xlu0 0
      %1721 = vperm.xlu0 %1720, %v450
      %v1722 = vpop.permute.xlu0 %1721
      %1725 = vset.pattern.permute.xlu0 0
      %1726 = vperm.xlu0 %1725, %v451
      %v1727 = vpop.permute.xlu0 %1726
      %1730 = vset.pattern.permute.xlu0 0
      %1731 = vperm.xlu0 %1730, %v452
      %v1732 = vpop.permute.xlu0 %1731
      %1735 = vset.pattern.permute.xlu0 0
      %1736 = vperm.xlu0 %1735, %v453
      %v1737 = vpop.permute.xlu0 %1736
      %1740 = vset.pattern.permute.xlu0 0
      %1741 = vperm.xlu0 %1740, %v454
      %v1742 = vpop.permute.xlu0 %1741
      %1745 = vset.pattern.permute.xlu0 0
      %1746 = vperm.xlu0 %1745, %v455
      %v1747 = vpop.permute.xlu0 %1746
      %1750 = vset.pattern.permute.xlu0 0
      %1751 = vperm.xlu0 %1750, %v456
      %v1752 = vpop.permute.xlu0 %1751
      %1755 = vset.pattern.permute.xlu0 0
      %1756 = vperm.xlu0 %1755, %v457
      %v1757 = vpop.permute.xlu0 %1756
      %v1759 = vsub.f32 %v1441, %v1602
      %v1760 = vsub.f32 %v1443, %v1602
      %v1761 = vsub.f32 %v1445, %v1607
      %v1762 = vsub.f32 %v1447, %v1607
      %v1763 = vsub.f32 %v1451, %v1612
      %v1764 = vsub.f32 %v1453, %v1612
      %v1765 = vsub.f32 %v1455, %v1617
      %v1766 = vsub.f32 %v1457, %v1617
      %v1767 = vsub.f32 %v1461, %v1622
      %v1768 = vsub.f32 %v1463, %v1622
      %v1769 = vsub.f32 %v1465, %v1627
      %v1770 = vsub.f32 %v1467, %v1627
      %v1771 = vsub.f32 %v1471, %v1632
      %v1772 = vsub.f32 %v1473, %v1632
      %v1773 = vsub.f32 %v1475, %v1637
      %v1774 = vsub.f32 %v1477, %v1637
      %v1775 = vsub.f32 %v1481, %v1642
      %v1776 = vsub.f32 %v1483, %v1642
      %v1777 = vsub.f32 %v1485, %v1647
      %v1778 = vsub.f32 %v1487, %v1647
      %v1779 = vsub.f32 %v1491, %v1652
      %v1780 = vsub.f32 %v1493, %v1652
      %v1781 = vsub.f32 %v1495, %v1657
      %v1782 = vsub.f32 %v1497, %v1657
      %v1783 = vsub.f32 %v1501, %v1662
      %v1784 = vsub.f32 %v1503, %v1662
      %v1785 = vsub.f32 %v1505, %v1667
      %v1786 = vsub.f32 %v1507, %v1667
      %v1787 = vsub.f32 %v1511, %v1672
      %v1788 = vsub.f32 %v1513, %v1672
      %v1789 = vsub.f32 %v1515, %v1677
      %v1790 = vsub.f32 %v1517, %v1677
      %v1791 = vsub.f32 %v1521, %v1682
      %v1792 = vsub.f32 %v1523, %v1682
      %v1793 = vsub.f32 %v1525, %v1687
      %v1794 = vsub.f32 %v1527, %v1687
      %v1795 = vsub.f32 %v1531, %v1692
      %v1796 = vsub.f32 %v1533, %v1692
      %v1797 = vsub.f32 %v1535, %v1697
      %v1798 = vsub.f32 %v1537, %v1697
      %v1799 = vsub.f32 %v1541, %v1702
      %v1800 = vsub.f32 %v1543, %v1702
      %v1801 = vsub.f32 %v1545, %v1707
      %v1802 = vsub.f32 %v1547, %v1707
      %v1803 = vsub.f32 %v1551, %v1712
      %v1804 = vsub.f32 %v1553, %v1712
      %v1805 = vsub.f32 %v1555, %v1717
      %v1806 = vsub.f32 %v1557, %v1717
      %v1807 = vsub.f32 %v1561, %v1722
      %v1808 = vsub.f32 %v1563, %v1722
      %v1809 = vsub.f32 %v1565, %v1727
      %v1810 = vsub.f32 %v1567, %v1727
      %v1811 = vsub.f32 %v1571, %v1732
      %v1812 = vsub.f32 %v1573, %v1732
      %v1813 = vsub.f32 %v1575, %v1737
      %v1814 = vsub.f32 %v1577, %v1737
      %v1815 = vsub.f32 %v1581, %v1742
      %v1816 = vsub.f32 %v1583, %v1742
      %v1817 = vsub.f32 %v1585, %v1747
      %v1818 = vsub.f32 %v1587, %v1747
      %v1819 = vsub.f32 %v1591, %v1752
      %v1820 = vsub.f32 %v1593, %v1752
      %v1821 = vsub.f32 %v1595, %v1757
      %v1822 = vsub.f32 %v1597, %v1757
      %v1823 = vpack.c.bf16 %v1761, %v1759
      %v1824 = vpack.c.bf16 %v1762, %v1760
      %v1825 = vpack.c.bf16 %v1765, %v1763
      %v1826 = vpack.c.bf16 %v1766, %v1764
      %v1827 = vpack.c.bf16 %v1769, %v1767
      %v1828 = vpack.c.bf16 %v1770, %v1768
      %v1829 = vpack.c.bf16 %v1773, %v1771
      %v1830 = vpack.c.bf16 %v1774, %v1772
      %v1831 = vpack.c.bf16 %v1777, %v1775
      %v1832 = vpack.c.bf16 %v1778, %v1776
      %v1833 = vpack.c.bf16 %v1781, %v1779
      %v1834 = vpack.c.bf16 %v1782, %v1780
      %v1835 = vpack.c.bf16 %v1785, %v1783
      %v1836 = vpack.c.bf16 %v1786, %v1784
      %v1837 = vpack.c.bf16 %v1789, %v1787
      %v1838 = vpack.c.bf16 %v1790, %v1788
      %v1839 = vpack.c.bf16 %v1793, %v1791
      %v1840 = vpack.c.bf16 %v1794, %v1792
      %v1841 = vpack.c.bf16 %v1797, %v1795
      %v1842 = vpack.c.bf16 %v1798, %v1796
      %v1843 = vpack.c.bf16 %v1801, %v1799
      %v1844 = vpack.c.bf16 %v1802, %v1800
      %v1845 = vpack.c.bf16 %v1805, %v1803
      %v1846 = vpack.c.bf16 %v1806, %v1804
      %v1847 = vpack.c.bf16 %v1809, %v1807
      %v1848 = vpack.c.bf16 %v1810, %v1808
      %v1849 = vpack.c.bf16 %v1813, %v1811
      %v1850 = vpack.c.bf16 %v1814, %v1812
      %v1851 = vpack.c.bf16 %v1817, %v1815
      %v1852 = vpack.c.bf16 %v1818, %v1816
      %v1853 = vpack.c.bf16 %v1821, %v1819
      %v1854 = vpack.c.bf16 %v1822, %v1820
      %v1856 = vmul.bf16 %v1823, 1069105081
      %v1857 = vpow.bf16.pop %v1856
      %v1859 = vmul.bf16 %v1824, 1069105081
      %v1860 = vpow.bf16.pop %v1859
      %v1862 = vmul.bf16 %v1825, 1069105081
      %v1863 = vpow.bf16.pop %v1862
      %v1865 = vmul.bf16 %v1826, 1069105081
      %v1866 = vpow.bf16.pop %v1865
      %v1868 = vmul.bf16 %v1827, 1069105081
      %v1869 = vpow.bf16.pop %v1868
      %v1871 = vmul.bf16 %v1828, 1069105081
      %v1872 = vpow.bf16.pop %v1871
      %v1874 = vmul.bf16 %v1829, 1069105081
      %v1875 = vpow.bf16.pop %v1874
      %v1877 = vmul.bf16 %v1830, 1069105081
      %v1878 = vpow.bf16.pop %v1877
      %v1880 = vmul.bf16 %v1831, 1069105081
      %v1881 = vpow.bf16.pop %v1880
      %v1883 = vmul.bf16 %v1832, 1069105081
      %v1884 = vpow.bf16.pop %v1883
      %v1886 = vmul.bf16 %v1833, 1069105081
      %v1887 = vpow.bf16.pop %v1886
      %v1889 = vmul.bf16 %v1834, 1069105081
      %v1890 = vpow.bf16.pop %v1889
      %v1892 = vmul.bf16 %v1835, 1069105081
      %v1893 = vpow.bf16.pop %v1892
      %v1895 = vmul.bf16 %v1836, 1069105081
      %v1896 = vpow.bf16.pop %v1895
      %v1898 = vmul.bf16 %v1837, 1069105081
      %v1899 = vpow.bf16.pop %v1898
      %v1901 = vmul.bf16 %v1838, 1069105081
      %v1902 = vpow.bf16.pop %v1901
      %v1904 = vmul.bf16 %v1839, 1069105081
      %v1905 = vpow.bf16.pop %v1904
      %v1907 = vmul.bf16 %v1840, 1069105081
      %v1908 = vpow.bf16.pop %v1907
      %v1910 = vmul.bf16 %v1841, 1069105081
      %v1911 = vpow.bf16.pop %v1910
      %v1913 = vmul.bf16 %v1842, 1069105081
      %v1914 = vpow.bf16.pop %v1913
      %v1916 = vmul.bf16 %v1843, 1069105081
      %v1917 = vpow.bf16.pop %v1916
      %v1919 = vmul.bf16 %v1844, 1069105081
      %v1920 = vpow.bf16.pop %v1919
      %v1922 = vmul.bf16 %v1845, 1069105081
      %v1923 = vpow.bf16.pop %v1922
      %v1925 = vmul.bf16 %v1846, 1069105081
      %v1926 = vpow.bf16.pop %v1925
      %v1928 = vmul.bf16 %v1847, 1069105081
      %v1929 = vpow.bf16.pop %v1928
      %v1931 = vmul.bf16 %v1848, 1069105081
      %v1932 = vpow.bf16.pop %v1931
      %v1934 = vmul.bf16 %v1849, 1069105081
      %v1935 = vpow.bf16.pop %v1934
      %v1937 = vmul.bf16 %v1850, 1069105081
      %v1938 = vpow.bf16.pop %v1937
      %v1940 = vmul.bf16 %v1851, 1069105081
      %v1941 = vpow.bf16.pop %v1940
      %v1943 = vmul.bf16 %v1852, 1069105081
      %v1944 = vpow.bf16.pop %v1943
      %v1946 = vmul.bf16 %v1853, 1069105081
      %v1947 = vpow.bf16.pop %v1946
      %v1949 = vmul.bf16 %v1854, 1069105081
      %v1950 = vpow.bf16.pop %v1949
      %v1951 = vld [vmem:[#allocation5] sm:$0xff]
      %1952 = vmatprep.subr.bf16.mxu0 %v1860
      %1953 = vmatpush1.bf16.msra.mxu0 %v1857
      %1954 = vmatprep.subr.bf16.mxu0 %v1866
      %1955 = vmatpush1.bf16.msra.mxu0 %v1863
      %1956 = vmatprep.subr.bf16.mxu0 %v1872
      %1957 = vmatpush1.bf16.msra.mxu0 %v1869
      %1958 = vmatprep.subr.bf16.mxu0 %v1878
      %1959 = vmatpush1.bf16.msra.mxu0 %v1875
      %1960 = vmatprep.subr.bf16.mxu0 %v1884
      %1961 = vmatpush1.bf16.msra.mxu0 %v1881
      %1962 = vmatprep.subr.bf16.mxu0 %v1890
      %1963 = vmatpush1.bf16.msra.mxu0 %v1887
      %1964 = vmatprep.subr.bf16.mxu0 %v1896
      %1965 = vmatpush1.bf16.msra.mxu0 %v1893
      %1966 = vmatprep.subr.bf16.mxu0 %v1902
      %1967 = vmatpush1.bf16.msra.mxu0 %v1899
      %1968 = vmatprep.subr.bf16.mxu0 %v1908
      %1969 = vmatpush1.bf16.msra.mxu0 %v1905
      %1970 = vmatprep.subr.bf16.mxu0 %v1914
      %1971 = vmatpush1.bf16.msra.mxu0 %v1911
      %1972 = vmatprep.subr.bf16.mxu0 %v1920
      %1973 = vmatpush1.bf16.msra.mxu0 %v1917
      %1974 = vmatprep.subr.bf16.mxu0 %v1926
      %1975 = vmatpush1.bf16.msra.mxu0 %v1923
      %1976 = vmatprep.subr.bf16.mxu0 %v1932
      %1977 = vmatpush1.bf16.msra.mxu0 %v1929
      %1978 = vmatprep.subr.bf16.mxu0 %v1938
      %1979 = vmatpush1.bf16.msra.mxu0 %v1935
      %1980 = vmatprep.subr.bf16.mxu0 %v1944
      %1981 = vmatpush1.bf16.msra.mxu0 %v1941
      %1982 = vmatprep.subr.bf16.mxu0 %v1950
      %1983 = vmatpush1.bf16.msra.mxu0 %v1947
      %1984 = vmatprep.mubr.bf16.mxu0 %v1308
      %1985 = vmatmul.mubr.bf16.gmra.mrb[0].mxu0 %v1307
      %v1986 = vpop.f32.mrb[0].mxu0
      %v1987 = vadd.f32 0.0, %v1986
      %v1988 = vpop.f32.mrb[0].mxu0
      %v1989 = vadd.f32 0.0, %v1988
      %v1990 = vpop.f32.mrb[0].mxu0
      %v1991 = vpop.f32.mrb[0].mxu0
      %1992 = vdwg.mxu0
      %v1995 = vcombine.low %v1987, %v1989
      %v1997 = vadd.f32 %v1951, %v1995
      %1998 = vst [vmem:[#allocation5] sm:$0xff] %v1997
      // Predicated region
      $region49: #{dual_attention.5} parent=43 // pred_check
        %p1999 = pneg %p407
      $region50: #{dual_attention.5} parent=43 // pred_check_branch
        %2001 = sbr.rel (%p1999) target = $region52
      $region51: #{dual_attention.5} parent=43 // pred_region
        %v2002 = vld [vmem:[#allocation4] sm:$0xff]
        %v2003 = vld [vmem:[#allocation3] sm:$0x3]
        %v2004 = vrcp.pop %v2003
        %v2006 = vlaneseq
        %v2007 = vshrl.u32 %v2006, 7
        %v2008 = vsub.s32 0, %v2007
        %v2009 = vrot.slane %v2004, %v2008
        %v2010 = vlaneseq
        %v2011 = vshrl.u32 %v2010, 7
        %v2012 = vsub.s32 1, %v2011
        %v2013 = vrot.slane %v2004, %v2012
        %v2014 = vcombine.low %v2009, %v2013
        %v2016 = vmul.f32 %v2002, %v2014
        %v2017 = vld [vmem:[%s4] sm:$0x3]
        %v2019 = vcombine.high %v2016, %v2016
        %v2021 = vpack.c.bf16 %v2016, %v2016
        %v2022 = vpack.c.bf16 %v2019, %v2019
        %s2023 = scalar_lea.vmem %s4, 2
        %v2024 = vld [vmem:[%s2023] sm:$0x3]
        %v2025 = vld [vmem:[#allocation5] sm:$0xff]
        %v2027 = vcombine.high %v2025, %v2025
        %v2029 = vpack.c.bf16 %v2025, %v2025
        %v2030 = vpack.c.bf16 %v2027, %v2027
        %v2032 = vsel %vm510, %v2024, 0
        %v2035 = vsel %vm559, %v2029, 0
        %v2038 = vsel %vm559, %v2030, 0
        %2040 = vmatprep.subr.bf16.mxu0 %v2038
        %2041 = vmatpush1.bf16.msra.mxu0 %v2035
        %2042 = vmatprep.subr.bf16.mxu0 0
        %2043 = vmatpush1.bf16.msra.mxu0 0
        %2044 = vmatprep.subr.bf16.mxu0 0
        %2045 = vmatpush1.bf16.msra.mxu0 0
        %2046 = vmatprep.subr.bf16.mxu0 0
        %2047 = vmatpush1.bf16.msra.mxu0 0
        %2048 = vmatprep.subr.bf16.mxu0 0
        %2049 = vmatpush1.bf16.msra.mxu0 0
        %2050 = vmatprep.subr.bf16.mxu0 0
        %2051 = vmatpush1.bf16.msra.mxu0 0
        %2052 = vmatprep.subr.bf16.mxu0 0
        %2053 = vmatpush1.bf16.msra.mxu0 0
        %2054 = vmatprep.subr.bf16.mxu0 0
        %2055 = vmatpush1.bf16.msra.mxu0 0
        %2056 = vmatprep.subr.bf16.mxu0 0
        %2057 = vmatpush1.bf16.msra.mxu0 0
        %2058 = vmatprep.subr.bf16.mxu0 0
        %2059 = vmatpush1.bf16.msra.mxu0 0
        %2060 = vmatprep.subr.bf16.mxu0 0
        %2061 = vmatpush1.bf16.msra.mxu0 0
        %2062 = vmatprep.subr.bf16.mxu0 0
        %2063 = vmatpush1.bf16.msra.mxu0 0
        %2064 = vmatprep.subr.bf16.mxu0 0
        %2065 = vmatpush1.bf16.msra.mxu0 0
        %2066 = vmatprep.subr.bf16.mxu0 0
        %2067 = vmatpush1.bf16.msra.mxu0 0
        %2068 = vmatprep.subr.bf16.mxu0 0
        %2069 = vmatpush1.bf16.msra.mxu0 0
        %2070 = vmatprep.subr.bf16.mxu0 0
        %2071 = vmatpush1.bf16.msra.mxu0 0
        %2072 = vmatprep.mubr.bf16.mxu0 0
        %2073 = vmatmul.mubr.bf16.gmra.mrb[0].mxu0 %v2032
        %v2074 = vpop.f32.mrb[0].mxu0
        %v2075 = vadd.f32 0.0, %v2074
        %v2076 = vpop.f32.mrb[0].mxu0
        %v2077 = vadd.f32 0.0, %v2076
        %v2078 = vpop.f32.mrb[0].mxu0
        %v2079 = vpop.f32.mrb[0].mxu0
        %2080 = vdwg.mxu0
        %v2082 = vsel %vm510, %v2017, 0
        %v2085 = vsel %vm559, %v2021, 0
        %v2088 = vsel %vm559, %v2022, 0
        %2090 = vmatprep.subr.bf16.mxu0 %v2088
        %2091 = vmatpush1.bf16.msra.mxu0 %v2085
        %2092 = vmatprep.subr.bf16.mxu0 0
        %2093 = vmatpush1.bf16.msra.mxu0 0
        %2094 = vmatprep.subr.bf16.mxu0 0
        %2095 = vmatpush1.bf16.msra.mxu0 0
        %2096 = vmatprep.subr.bf16.mxu0 0
        %2097 = vmatpush1.bf16.msra.mxu0 0
        %2098 = vmatprep.subr.bf16.mxu0 0
        %2099 = vmatpush1.bf16.msra.mxu0 0
        %2100 = vmatprep.subr.bf16.mxu0 0
        %2101 = vmatpush1.bf16.msra.mxu0 0
        %2102 = vmatprep.subr.bf16.mxu0 0
        %2103 = vmatpush1.bf16.msra.mxu0 0
        %2104 = vmatprep.subr.bf16.mxu0 0
        %2105 = vmatpush1.bf16.msra.mxu0 0
        %2106 = vmatprep.subr.bf16.mxu0 0
        %2107 = vmatpush1.bf16.msra.mxu0 0
        %2108 = vmatprep.subr.bf16.mxu0 0
        %2109 = vmatpush1.bf16.msra.mxu0 0
        %2110 = vmatprep.subr.bf16.mxu0 0
        %2111 = vmatpush1.bf16.msra.mxu0 0
        %2112 = vmatprep.subr.bf16.mxu0 0
        %2113 = vmatpush1.bf16.msra.mxu0 0
        %2114 = vmatprep.subr.bf16.mxu0 0
        %2115 = vmatpush1.bf16.msra.mxu0 0
        %2116 = vmatprep.subr.bf16.mxu0 0
        %2117 = vmatpush1.bf16.msra.mxu0 0
        %2118 = vmatprep.subr.bf16.mxu0 0
        %2119 = vmatpush1.bf16.msra.mxu0 0
        %2120 = vmatprep.subr.bf16.mxu0 0
        %2121 = vmatpush1.bf16.msra.mxu0 0
        %2122 = vmatprep.mubr.bf16.mxu0 0
        %2123 = vmatmul.mubr.bf16.gmra.mrb[0].mxu0 %v2082
        %v2124 = vpop.f32.mrb[0].mxu0
        %v2125 = vadd.f32 %v2075, %v2124
        %v2126 = vpop.f32.mrb[0].mxu0
        %v2127 = vadd.f32 %v2077, %v2126
        %v2128 = vpop.f32.mrb[0].mxu0
        %v2129 = vpop.f32.mrb[0].mxu0
        %2130 = vdwg.mxu0
        %s2131 = scalar_lea.vmem %s4, 4
        %v2132 = vld [vmem:[%s2131] sm:$0x3]
        %v2134 = vsel %vm510, %v2132, 0
        %2136 = vmatprep.subr.bf16.mxu0 %v1404
        %2137 = vmatpush1.bf16.msra.mxu0 %v1401
        %2138 = vmatprep.subr.bf16.mxu0 0
        %2139 = vmatpush1.bf16.msra.mxu0 0
        %2140 = vmatprep.subr.bf16.mxu0 0
        %2141 = vmatpush1.bf16.msra.mxu0 0
        %2142 = vmatprep.subr.bf16.mxu0 0
        %2143 = vmatpush1.bf16.msra.mxu0 0
        %2144 = vmatprep.subr.bf16.mxu0 0
        %2145 = vmatpush1.bf16.msra.mxu0 0
        %2146 = vmatprep.subr.bf16.mxu0 0
        %2147 = vmatpush1.bf16.msra.mxu0 0
        %2148 = vmatprep.subr.bf16.mxu0 0
        %2149 = vmatpush1.bf16.msra.mxu0 0
        %2150 = vmatprep.subr.bf16.mxu0 0
        %2151 = vmatpush1.bf16.msra.mxu0 0
        %2152 = vmatprep.subr.bf16.mxu0 0
        %2153 = vmatpush1.bf16.msra.mxu0 0
        %2154 = vmatprep.subr.bf16.mxu0 0
        %2155 = vmatpush1.bf16.msra.mxu0 0
        %2156 = vmatprep.subr.bf16.mxu0 0
        %2157 = vmatpush1.bf16.msra.mxu0 0
        %2158 = vmatprep.subr.bf16.mxu0 0
        %2159 = vmatpush1.bf16.msra.mxu0 0
        %2160 = vmatprep.subr.bf16.mxu0 0
        %2161 = vmatpush1.bf16.msra.mxu0 0
        %2162 = vmatprep.subr.bf16.mxu0 0
        %2163 = vmatpush1.bf16.msra.mxu0 0
        %2164 = vmatprep.subr.bf16.mxu0 0
        %2165 = vmatpush1.bf16.msra.mxu0 0
        %2166 = vmatprep.subr.bf16.mxu0 0
        %2167 = vmatpush1.bf16.msra.mxu0 0
        %2168 = vmatprep.mubr.bf16.mxu0 0
        %2169 = vmatmul.mubr.bf16.gmra.mrb[0].mxu0 %v2134
        %v2170 = vpop.f32.mrb[0].mxu0
        %v2171 = vadd.f32 0.0, %v2170
        %v2172 = vpop.f32.mrb[0].mxu0
        %v2173 = vadd.f32 0.0, %v2172
        %v2174 = vpop.f32.mrb[0].mxu0
        %v2175 = vpop.f32.mrb[0].mxu0
        %2176 = vdwg.mxu0
        %v2177 = vadd.f32 %v2125, %v2171
        %v2178 = vadd.f32 %v2127, %v2173
        %v2179 = vld [vmem:[%s5] sm:$0xf]
        %2181 = vset.pattern.permute.xlu0 0
        %2182 = vperm.xlu0 %2181, %v2179
        %v2183 = vpop.permute.xlu0 %2182
        %v2185 = vadd.f32 %v2177, %v2183
        %v2186 = vadd.f32 %v2178, %v2183
        %v2189 = vcombine.low %v2185, %v2186
        %2191 = vst [vmem:[%s404] sm:$0xff] %v2189
      $region52: #{dual_attention.5} parent=43 // pred_fallthru
        _
      %s2192 = smul.u32 2, %s23
      %p2193 = scmp.lt.s32.totalorder %s22, 1
      %s2194 = scalar_select %p2193, %s22, 1
      %p2195 = scmp.lt.s32.totalorder %s2192, 1
      %s2196 = scalar_select %p2195, %s2192, 1
      %s2197 = smul.addr %s2194, 2
      %s2198 = sadd.s32 %s2196, %s2197
      %s2199 = smul.addr %s2198, 4
      %s2200 = scalar_lea.vmem %s6, %s2199
      // Predicated region
      $region53: #{dual_attention.5} parent=43 // pred_check
        %p2201 = pneg %p210
      $region54: #{dual_attention.5} parent=43 // pred_check_branch
        %2203 = sbr.rel (%p2201) target = $region56
      $region55: #{dual_attention.5} parent=43 // pred_region
        %s2204 = smul.u32 2, %s23
      $region56: #{dual_attention.5} parent=43 // pred_fallthru
        _
    $region44: #{dual_attention.5} parent=5 // pred_fallthru
      _
    %p2205 = scmp.le.s32.totalorder 2, %s12
    // Predicated region
    $region57: #{dual_attention.5} parent=5 // pred_check
      %p2206 = pneg %p2205
    $region58: #{dual_attention.5} parent=5 // pred_check_branch
      %2208 = sbr.rel (%p2206) target = $region60
    $region59: #{dual_attention.5} parent=5 // pred_region
      %s2209 = ssub.s32 %s12, 2
      // Predicated region
      $region61: #{dual_attention.5} parent=59 // pred_check
        %p2210 = pneg %p216
      $region62: #{dual_attention.5} parent=59 // pred_check_branch
        %2212 = sbr.rel (%p2210) target = $region64
      $region63: #{dual_attention.5} parent=59 // pred_region
        %s2213 = smul.u32 2, %s26
        %p2214 = scmp.lt.s32.totalorder %s25, 1
        %s2215 = scalar_select %p2214, %s25, 1
        %p2216 = scmp.lt.s32.totalorder %s2213, 1
        %s2217 = scalar_select %p2216, %s2213, 1
        %s2218 = smul.addr %s2215, 2
        %s2219 = sadd.s32 %s2217, %s2218
        %s2220 = smul.addr %s2219, 4
        %s2221 = scalar_lea.vmem %s6, %s2220
      $region64: #{dual_attention.5} parent=59 // pred_fallthru
        _
    $region60: #{dual_attention.5} parent=5 // pred_fallthru
      _
  $region6: #{dual_attention.5} parent=0 // loop_footer
    %s16 = sadd.s32 1, %s12
  $region7: #{dual_attention.5} parent=0 // loop_footer_branch
    %11 = sbr.rel target = $region3
  $region8: #{dual_attention.5} parent=0 // loop_exit
    _

</llo_original>
